<compile_context>
chip_gen: v5e
topology: v5e:2x2
jax: 0.10.0
libtpu: 0.0.40
codegen_flags: <defaults>
</compile_context>

<pallas_src>
import functools

import jax
import jax.numpy as jnp
from jax import lax
from jax.experimental import pallas as pl
from jax.experimental.pallas import tpu as pltpu


# ----------------------------- Pallas kernel -------------------------------

def _bottleneck_kernel(x_ref, w1_ref, b1_ref, w2_ref, b2_ref, w3_ref, b3_ref,
                       o_ref, h1pad_ref, col_ref, *, H, W, P, Cin, d):
    """Fused conv1+bn1+relu -> conv2(3x3,dil)+bn2+relu -> conv3+bn3+res+relu.

    x_ref:      (1, H, W, Cin) f32  (residual kept exact f32)
    w*_ref:     bf16 weights with BN scale folded in; b*_ref: f32 biases.
                w2_ref is (9P, P): rows ordered (tap, in_channel).
    h1pad_ref:  (H+2d, W+2d, P) bf16 VMEM scratch, zero halo of width d.
    col_ref:    (H*W, 9P) bf16 VMEM im2col scratch (fully overwritten).
    """
    Hp = H + 2 * d
    Wp = W + 2 * d
    bf16 = jnp.bfloat16

    # ---- conv1 (1x1) + bn1 + relu -----------------------------------------
    x2d = x_ref[0].reshape(H * W, Cin)                                  # f32
    h1 = jnp.dot(x2d.astype(bf16), w1_ref[...],
                 preferred_element_type=jnp.float32)
    h1 = jnp.maximum(h1 + b1_ref[...], 0.0)                             # (HW, P)

    # ---- refresh the zero halo strips (small; core-split safe) ------------
    h1pad_ref[0:d, :, :] = jnp.zeros((d, Wp, P), bf16)                  # top
    h1pad_ref[d + H:Hp, :, :] = jnp.zeros((d, Wp, P), bf16)             # bottom
    h1pad_ref[d:d + H, 0:d, :] = jnp.zeros((H, d, P), bf16)             # left
    h1pad_ref[d:d + H, d + W:Wp, :] = jnp.zeros((H, d, P), bf16)        # right

    # ---- interior write: cast h1 to bf16 exactly once ----------------------
    h1pad_ref[d:d + H, d:d + W, :] = h1.reshape(H, W, P).astype(bf16)

    # ---- conv2 (3x3, stride 1, dilation d): single K=9P matmul -------------
    # Pack the nine shifted taps into the VMEM im2col buffer; halo positions
    # pick up the zeros from the padded scratch.  col[:, t*P + ci] matches
    # w2_ref row t*P + ci (t = dy*3 + dx).
    for dy in range(3):
        for dx in range(3):
            t = dy * 3 + dx
            tap = h1pad_ref[dy * d:dy * d + H, dx * d:dx * d + W, :]
            col_ref[:, t * P:(t + 1) * P] = tap.reshape(H * W, P)

    h2 = jnp.dot(col_ref[...], w2_ref[...],
                 preferred_element_type=jnp.float32)                    # (HW, P)
    h2 = jnp.maximum(h2 + b2_ref[...], 0.0)

    # ---- conv3 (1x1) + bn3 + residual + relu --------------------------------
    out = jnp.dot(h2.astype(bf16), w3_ref[...],
                  preferred_element_type=jnp.float32)                   # (HW, Cin)
    res = x_ref[0].reshape(H * W, Cin)     # re-read residual: short live range
    out = jnp.maximum(out + b3_ref[...] + res, 0.0)
    o_ref[0] = out.reshape(H, W, Cin).astype(o_ref.dtype)


# ------------------------------- JAX glue -----------------------------------

def _prepare_params(p, eps=1e-5):
    """Fold eval-mode BN into conv weights (bf16) + per-channel f32 biases."""
    def fold(g, be, m, v):
        s = g / jnp.sqrt(v + eps)
        return s, be - m * s

    s1, b1 = fold(p["g1"], p["be1"], p["m1"], p["v1"])
    s2, b2 = fold(p["g2"], p["be2"], p["m2"], p["v2"])
    s3, b3 = fold(p["g3"], p["be3"], p["m3"], p["v3"])
    P = p["w1"].shape[1]
    return dict(
        w1=(p["w1"] * s1[None, :]).astype(jnp.bfloat16),                 # (Cin, P)
        # (3,3,P,P) HWIO -> rows ordered (tap, in_channel): (9P, P)
        w2=(p["w2"] * s2[None, None, None, :]).reshape(9 * P, P)
            .astype(jnp.bfloat16),
        w3=(p["w3"] * s3[None, :]).astype(jnp.bfloat16),                 # (P, 4P)
        b1=b1.reshape(1, -1).astype(jnp.float32),
        b2=b2.reshape(1, -1).astype(jnp.float32),
        b3=b3.reshape(1, -1).astype(jnp.float32))


def bottleneck_forward(x_nchw, p, dilation=1):
    x = jnp.transpose(x_nchw, (0, 2, 3, 1)).astype(jnp.float32)   # NCHW -> NHWC
    N, H, W, Cin = x.shape
    P = p["w1"].shape[1]
    assert Cin == 4 * P, "identity residual requires inplanes == planes*4"
    d = int(dilation)
    fp = _prepare_params(p)

    kernel = functools.partial(_bottleneck_kernel, H=H, W=W, P=P, Cin=Cin, d=d)
    full = lambda shape: pl.BlockSpec(shape, lambda n, _s=shape: (0,) * len(_s))

    out = pl.pallas_call(
        kernel,
        out_shape=jax.ShapeDtypeStruct((N, H, W, Cin), jnp.float32),
        grid=(N,),
        in_specs=[
            pl.BlockSpec((1, H, W, Cin), lambda n: (n, 0, 0, 0)),  # x (f32)
            full((Cin, P)),        # w1 (bf16, BN folded)
            full((1, P)),          # b1
            full((9 * P, P)),      # w2 (bf16, rows = tap*P + ci)
            full((1, P)),          # b2
            full((P, Cin)),        # w3
            full((1, Cin)),        # b3
        ],
        out_specs=pl.BlockSpec((1, H, W, Cin), lambda n: (n, 0, 0, 0)),
        scratch_shapes=[
            pltpu.VMEM((H + 2 * d, W + 2 * d, P), jnp.bfloat16),   # padded h1
            pltpu.VMEM((H * W, 9 * P), jnp.bfloat16),              # im2col
        ],
        compiler_params=pltpu.CompilerParams(
            dimension_semantics=("parallel",),
            vmem_limit_bytes=32 * 1024 * 1024),
    )(x, fp["w1"], fp["b1"], fp["w2"], fp["b2"], fp["w3"], fp["b3"])
    return jnp.transpose(out, (0, 3, 1, 2))                        # NHWC -> NCHW


# ------------------------------ references ----------------------------------

def _ref_forward_f32(x_nchw, p, dilation=1, eps=1e-5):
    """Pure-f32 reference matching the PyTorch module (eval-mode BN)."""
    x = jnp.transpose(x_nchw, (0, 2, 3, 1)).astype(jnp.float32)
    Cin = p["w1"].shape[0]
    P = p["w1"].shape[1]

    def conv(h, w_hwio, pad, dil):
        return lax.conv_general_dilated(
            h, w_hwio, window_strides=(1, 1),
            padding=[(pad, pad), (pad, pad)], rhs_dilation=(dil, dil),
            dimension_numbers=("NHWC", "HWIO", "NHWC"))

    def bn(h, g, be, m, v):
        return (h - m) / jnp.sqrt(v + eps) * g + be

    h = jax.nn.relu(bn(conv(x, p["w1"].reshape(1, 1, Cin, P), 0, 1),
                       p["g1"], p["be1"], p["m1"], p["v1"]))
    h = jax.nn.relu(bn(conv(h, p["w2"], dilation, dilation),
                       p["g2"], p["be2"], p["m2"], p["v2"]))
    h = bn(conv(h, p["w3"].reshape(1, 1, P, Cin), 0, 1),
           p["g3"], p["be3"], p["m3"], p["v3"])
    return jnp.transpose(jax.nn.relu(h + x), (0, 3, 1, 2))


def _ref_forward_matched(x_nchw, p, dilation=1):
    """Reference with the kernel's exact numerics: BN folded into bf16
    weights, bf16 matmul operands (incl. a single K=9P conv2 contraction on a
    bf16 im2col), f32 accumulation / bias / relu / residual."""
    fp = _prepare_params(p)
    x = jnp.transpose(x_nchw, (0, 2, 3, 1)).astype(jnp.float32)
    N, H, W, Cin = x.shape
    P = p["w1"].shape[1]
    d = int(dilation)
    mm = functools.partial(jnp.einsum, "nmk,kc->nmc",
                           preferred_element_type=jnp.float32)
    x2 = x.reshape(N, H * W, Cin)
    h1 = jnp.maximum(mm(x2.astype(jnp.bfloat16), fp["w1"]) + fp["b1"], 0.0)
    h1b = h1.astype(jnp.bfloat16).reshape(N, H, W, P)
    h1p = jnp.pad(h1b, ((0, 0), (d, d), (d, d), (0, 0)))
    taps = []
    for dy in range(3):
        for dx in range(3):
            taps.append(h1p[:, dy * d:dy * d + H, dx * d:dx * d + W, :]
                        .reshape(N, H * W, P))
    col = jnp.concatenate(taps, axis=-1)                    # (N, HW, 9P) bf16
    h2 = jnp.maximum(mm(col, fp["w2"]) + fp["b2"], 0.0)
    out = jnp.maximum(mm(h2.astype(jnp.bfloat16), fp["w3"]) + fp["b3"] + x2, 0.0)
    return jnp.transpose(out.reshape(N, H, W, Cin), (0, 3, 1, 2))


# --------------------------------- main --------------------------------------

def _init_params(key, planes):
    Cin = 4 * planes
    ks = jax.random.split(key, 6)
    f32 = jnp.float32

    def bn_params(k, c):
        k1, k2, k3, k4 = jax.random.split(k, 4)
        return (jax.random.uniform(k1, (c,), f32, 0.8, 1.2),    # gamma
                0.1 * jax.random.normal(k2, (c,), f32),          # beta
                0.1 * jax.random.normal(k3, (c,), f32),          # running_mean
                jax.random.uniform(k4, (c,), f32, 0.8, 1.2))     # running_var

    g1, be1, m1, v1 = bn_params(ks[3], planes)
    g2, be2, m2, v2 = bn_params(ks[4], planes)
    g3, be3, m3, v3 = bn_params(ks[5], Cin)
    return dict(
        w1=0.1 * jax.random.normal(ks[0], (Cin, planes), f32),           # 1x1
        w2=0.1 * jax.random.normal(ks[1], (3, 3, planes, planes), f32),  # HWIO
        w3=0.1 * jax.random.normal(ks[2], (planes, Cin), f32),           # 1x1
        g1=g1, be1=be1, m1=m1, v1=v1,
        g2=g2, be2=be2, m2=m2, v2=v2,
        g3=g3, be3=be3, m3=m3, v3=v3)


if __name__ == "__main__":
    key = jax.random.PRNGKey(0)
    k_x, k_p = jax.random.split(key)

    # planes=64 (ResNet layer1 block) -> inplanes=256: lane-dense output,
    # realistic MXU/lane utilization while remaining a small test size.
    N, planes, H, W = 2, 64, 16, 16
    inplanes = 4 * planes
    x = jax.random.normal(k_x, (N, inplanes, H, W), jnp.float32)   # NCHW input
    params = _init_params(k_p, planes)

    out = jax.block_until_ready(bottleneck_forward(x, params, dilation=1))
    assert out.shape == (N, inplanes, H, W)

    # Tight check: reference with identical numerics (bf16 matmul operands,
    # same K=9P conv2 contraction).  Small slack for f32 reassociation and
    # bf16 rounding-boundary flips of intermediate h2.
    ref_m = jax.block_until_ready(_ref_forward_matched(x, params, dilation=1))
    assert jnp.allclose(out, ref_m, rtol=5e-3, atol=5e-3), (
        float(jnp.max(jnp.abs(out - ref_m))))

    # Loose check: pure-f32 module semantics (within bf16 matmul precision).
    ref_f = jax.block_until_ready(_ref_forward_f32(x, params, dilation=1))
    assert jnp.allclose(out, ref_f, rtol=2e-1, atol=2e-1), (
        float(jnp.max(jnp.abs(out - ref_f))))

    print("KERNEL_OK")
</pallas_src>

<mosaic_0001>
module attributes {stable_mosaic.version = 11 : i64} {
  func.func @_bottleneck_kernel(%arg0: i32, %arg1: memref<1x16x16x256xf32, #tpu.memory_space<vmem>>, %arg2: memref<256x64xbf16, #tpu.memory_space<vmem>>, %arg3: memref<1x64xf32, #tpu.memory_space<vmem>>, %arg4: memref<576x64xbf16, #tpu.memory_space<vmem>>, %arg5: memref<1x64xf32, #tpu.memory_space<vmem>>, %arg6: memref<64x256xbf16, #tpu.memory_space<vmem>>, %arg7: memref<1x256xf32, #tpu.memory_space<vmem>>, %arg8: memref<1x16x16x256xf32, #tpu.memory_space<vmem>>, %arg9: memref<18x18x64xbf16, #tpu.memory_space<vmem>>, %arg10: memref<256x576xbf16, #tpu.memory_space<vmem>>) attributes {dimension_semantics = [#tpu.dimension_semantics<parallel>], iteration_bounds = array<i64: 2>, scalar_prefetch = 0 : i64, scratch_operands = 2 : i64, tpu.core_type = #tpu.core_type<tc>, window_params = [{transform_indices = @transform_0, window_bounds = array<i64: 1, 16, 16, 256>}, {pipeline_mode = #tpu.pipeline_mode<synchronous>, transform_indices = @transform_1, window_bounds = array<i64: 256, 64>}, {pipeline_mode = #tpu.pipeline_mode<synchronous>, transform_indices = @transform_2, window_bounds = array<i64: 1, 64>}, {pipeline_mode = #tpu.pipeline_mode<synchronous>, transform_indices = @transform_3, window_bounds = array<i64: 576, 64>}, {pipeline_mode = #tpu.pipeline_mode<synchronous>, transform_indices = @transform_4, window_bounds = array<i64: 1, 64>}, {pipeline_mode = #tpu.pipeline_mode<synchronous>, transform_indices = @transform_5, window_bounds = array<i64: 64, 256>}, {pipeline_mode = #tpu.pipeline_mode<synchronous>, transform_indices = @transform_6, window_bounds = array<i64: 1, 256>}, {transform_indices = @transform_7, window_bounds = array<i64: 1, 16, 16, 256>}]} {
    %c0 = arith.constant 0 : index
    %c0_0 = arith.constant 0 : index
    %c0_1 = arith.constant 0 : index
    %c0_2 = arith.constant 0 : index
    %0 = vector.load %arg1[%c0, %c0_0, %c0_1, %c0_2] : memref<1x16x16x256xf32, #tpu.memory_space<vmem>>, vector<1x16x16x256xf32>
    %1 = vector.shape_cast %0 : vector<1x16x16x256xf32> to vector<16x16x256xf32>
    %2 = vector.shape_cast %1 : vector<16x16x256xf32> to vector<256x256xf32>
    %3 = arith.truncf %2 : vector<256x256xf32> to vector<256x256xbf16>
    %c0_3 = arith.constant 0 : index
    %c0_4 = arith.constant 0 : index
    %4 = vector.load %arg2[%c0_3, %c0_4] : memref<256x64xbf16, #tpu.memory_space<vmem>>, vector<256x64xbf16>
    %cst = arith.constant dense<0.000000e+00> : vector<256x64xf32>
    %5 = tpu.matmul %3, %4, %cst {dimension_numbers = #tpu.dot_dimension_numbers<[1], [0], [0], [1], [0, 0, 1, 1], [], []>} : vector<256x256xbf16>, vector<256x64xbf16>, vector<256x64xf32> -> vector<256x64xf32>
    %c0_5 = arith.constant 0 : index
    %c0_6 = arith.constant 0 : index
    %6 = vector.load %arg3[%c0_5, %c0_6] : memref<1x64xf32, #tpu.memory_space<vmem>>, vector<1x64xf32>
    %7 = vector.broadcast %6 : vector<1x64xf32> to vector<256x64xf32>
    %8 = arith.addf %5, %7 : vector<256x64xf32>
    %cst_7 = arith.constant 0.000000e+00 : f32
    %9 = vector.broadcast %cst_7 : f32 to vector<256x64xf32>
    %10 = arith.maximumf %8, %9 : vector<256x64xf32>
    %cst_8 = arith.constant 0.000000e+00 : bf16
    %11 = vector.broadcast %cst_8 : bf16 to vector<1x18x64xbf16>
    %c0_9 = arith.constant 0 : index
    %c0_10 = arith.constant 0 : index
    %c0_11 = arith.constant 0 : index
    %12 = vector.load %arg9[%c0_9, %c0_10, %c0_11] : memref<18x18x64xbf16, #tpu.memory_space<vmem>>, vector<1x18x64xbf16>
    tpu.vector_store %arg9[%c0_9, %c0_10, %c0_11], %11 {strides = array<i32>} : memref<18x18x64xbf16, #tpu.memory_space<vmem>>, vector<1x18x64xbf16>,
    %cst_12 = arith.constant 0.000000e+00 : bf16
    %13 = vector.broadcast %cst_12 : bf16 to vector<1x18x64xbf16>
    %c17 = arith.constant 17 : index
    %c0_13 = arith.constant 0 : index
    %c0_14 = arith.constant 0 : index
    %14 = vector.load %arg9[%c17, %c0_13, %c0_14] : memref<18x18x64xbf16, #tpu.memory_space<vmem>>, vector<1x18x64xbf16>
    tpu.vector_store %arg9[%c17, %c0_13, %c0_14], %13 {strides = array<i32>} : memref<18x18x64xbf16, #tpu.memory_space<vmem>>, vector<1x18x64xbf16>,
    %cst_15 = arith.constant 0.000000e+00 : bf16
    %15 = vector.broadcast %cst_15 : bf16 to vector<16x1x64xbf16>
    %c1 = arith.constant 1 : index
    %c0_16 = arith.constant 0 : index
    %c0_17 = arith.constant 0 : index
    %16 = vector.load %arg9[%c1, %c0_16, %c0_17] : memref<18x18x64xbf16, #tpu.memory_space<vmem>>, vector<16x1x64xbf16>
    tpu.vector_store %arg9[%c1, %c0_16, %c0_17], %15 {strides = array<i32>} : memref<18x18x64xbf16, #tpu.memory_space<vmem>>, vector<16x1x64xbf16>,
    %cst_18 = arith.constant 0.000000e+00 : bf16
    %17 = vector.broadcast %cst_18 : bf16 to vector<16x1x64xbf16>
    %c1_19 = arith.constant 1 : index
    %c17_20 = arith.constant 17 : index
    %c0_21 = arith.constant 0 : index
    %18 = vector.load %arg9[%c1_19, %c17_20, %c0_21] : memref<18x18x64xbf16, #tpu.memory_space<vmem>>, vector<16x1x64xbf16>
    tpu.vector_store %arg9[%c1_19, %c17_20, %c0_21], %17 {strides = array<i32>} : memref<18x18x64xbf16, #tpu.memory_space<vmem>>, vector<16x1x64xbf16>,
    %19 = vector.shape_cast %10 : vector<256x64xf32> to vector<16x16x64xf32>
    %20 = arith.truncf %19 : vector<16x16x64xf32> to vector<16x16x64xbf16>
    %c1_22 = arith.constant 1 : index
    %c1_23 = arith.constant 1 : index
    %c0_24 = arith.constant 0 : index
    %21 = vector.load %arg9[%c1_22, %c1_23, %c0_24] : memref<18x18x64xbf16, #tpu.memory_space<vmem>>, vector<16x16x64xbf16>
    tpu.vector_store %arg9[%c1_22, %c1_23, %c0_24], %20 {strides = array<i32>} : memref<18x18x64xbf16, #tpu.memory_space<vmem>>, vector<16x16x64xbf16>,
    %c0_25 = arith.constant 0 : index
    %c0_26 = arith.constant 0 : index
    %c0_27 = arith.constant 0 : index
    %22 = vector.load %arg9[%c0_25, %c0_26, %c0_27] : memref<18x18x64xbf16, #tpu.memory_space<vmem>>, vector<16x16x64xbf16>
    %23 = vector.shape_cast %22 : vector<16x16x64xbf16> to vector<256x64xbf16>
    %c0_28 = arith.constant 0 : index
    %c0_29 = arith.constant 0 : index
    %24 = vector.load %arg10[%c0_28, %c0_29] : memref<256x576xbf16, #tpu.memory_space<vmem>>, vector<256x64xbf16>
    tpu.vector_store %arg10[%c0_28, %c0_29], %23 {strides = array<i32>} : memref<256x576xbf16, #tpu.memory_space<vmem>>, vector<256x64xbf16>,
    %c0_30 = arith.constant 0 : index
    %c1_31 = arith.constant 1 : index
    %c0_32 = arith.constant 0 : index
    %25 = vector.load %arg9[%c0_30, %c1_31, %c0_32] : memref<18x18x64xbf16, #tpu.memory_space<vmem>>, vector<16x16x64xbf16>
    %26 = vector.shape_cast %25 : vector<16x16x64xbf16> to vector<256x64xbf16>
    %c0_33 = arith.constant 0 : index
    %c64 = arith.constant 64 : index
    %27 = vector.load %arg10[%c0_33, %c64] : memref<256x576xbf16, #tpu.memory_space<vmem>>, vector<256x64xbf16>
    tpu.vector_store %arg10[%c0_33, %c64], %26 {strides = array<i32>} : memref<256x576xbf16, #tpu.memory_space<vmem>>, vector<256x64xbf16>,
    %c0_34 = arith.constant 0 : index
    %c2 = arith.constant 2 : index
    %c0_35 = arith.constant 0 : index
    %28 = vector.load %arg9[%c0_34, %c2, %c0_35] : memref<18x18x64xbf16, #tpu.memory_space<vmem>>, vector<16x16x64xbf16>
    %29 = vector.shape_cast %28 : vector<16x16x64xbf16> to vector<256x64xbf16>
    %c0_36 = arith.constant 0 : index
    %c128 = arith.constant 128 : index
    %30 = vector.load %arg10[%c0_36, %c128] : memref<256x576xbf16, #tpu.memory_space<vmem>>, vector<256x64xbf16>
    tpu.vector_store %arg10[%c0_36, %c128], %29 {strides = array<i32>} : memref<256x576xbf16, #tpu.memory_space<vmem>>, vector<256x64xbf16>,
    %c1_37 = arith.constant 1 : index
    %c0_38 = arith.constant 0 : index
    %c0_39 = arith.constant 0 : index
    %31 = vector.load %arg9[%c1_37, %c0_38, %c0_39] : memref<18x18x64xbf16, #tpu.memory_space<vmem>>, vector<16x16x64xbf16>
    %32 = vector.shape_cast %31 : vector<16x16x64xbf16> to vector<256x64xbf16>
    %c0_40 = arith.constant 0 : index
    %c192 = arith.constant 192 : index
    %33 = vector.load %arg10[%c0_40, %c192] : memref<256x576xbf16, #tpu.memory_space<vmem>>, vector<256x64xbf16>
    tpu.vector_store %arg10[%c0_40, %c192], %32 {strides = array<i32>} : memref<256x576xbf16, #tpu.memory_space<vmem>>, vector<256x64xbf16>,
    %c1_41 = arith.constant 1 : index
    %c1_42 = arith.constant 1 : index
    %c0_43 = arith.constant 0 : index
    %34 = vector.load %arg9[%c1_41, %c1_42, %c0_43] : memref<18x18x64xbf16, #tpu.memory_space<vmem>>, vector<16x16x64xbf16>
    %35 = vector.shape_cast %34 : vector<16x16x64xbf16> to vector<256x64xbf16>
    %c0_44 = arith.constant 0 : index
    %c256 = arith.constant 256 : index
    %36 = vector.load %arg10[%c0_44, %c256] : memref<256x576xbf16, #tpu.memory_space<vmem>>, vector<256x64xbf16>
    tpu.vector_store %arg10[%c0_44, %c256], %35 {strides = array<i32>} : memref<256x576xbf16, #tpu.memory_space<vmem>>, vector<256x64xbf16>,
    %c1_45 = arith.constant 1 : index
    %c2_46 = arith.constant 2 : index
    %c0_47 = arith.constant 0 : index
    %37 = vector.load %arg9[%c1_45, %c2_46, %c0_47] : memref<18x18x64xbf16, #tpu.memory_space<vmem>>, vector<16x16x64xbf16>
    %38 = vector.shape_cast %37 : vector<16x16x64xbf16> to vector<256x64xbf16>
    %c0_48 = arith.constant 0 : index
    %c320 = arith.constant 320 : index
    %39 = vector.load %arg10[%c0_48, %c320] : memref<256x576xbf16, #tpu.memory_space<vmem>>, vector<256x64xbf16>
    tpu.vector_store %arg10[%c0_48, %c320], %38 {strides = array<i32>} : memref<256x576xbf16, #tpu.memory_space<vmem>>, vector<256x64xbf16>,
    %c2_49 = arith.constant 2 : index
    %c0_50 = arith.constant 0 : index
    %c0_51 = arith.constant 0 : index
    %40 = vector.load %arg9[%c2_49, %c0_50, %c0_51] : memref<18x18x64xbf16, #tpu.memory_space<vmem>>, vector<16x16x64xbf16>
    %41 = vector.shape_cast %40 : vector<16x16x64xbf16> to vector<256x64xbf16>
    %c0_52 = arith.constant 0 : index
    %c384 = arith.constant 384 : index
    %42 = vector.load %arg10[%c0_52, %c384] : memref<256x576xbf16, #tpu.memory_space<vmem>>, vector<256x64xbf16>
    tpu.vector_store %arg10[%c0_52, %c384], %41 {strides = array<i32>} : memref<256x576xbf16, #tpu.memory_space<vmem>>, vector<256x64xbf16>,
    %c2_53 = arith.constant 2 : index
    %c1_54 = arith.constant 1 : index
    %c0_55 = arith.constant 0 : index
    %43 = vector.load %arg9[%c2_53, %c1_54, %c0_55] : memref<18x18x64xbf16, #tpu.memory_space<vmem>>, vector<16x16x64xbf16>
    %44 = vector.shape_cast %43 : vector<16x16x64xbf16> to vector<256x64xbf16>
    %c0_56 = arith.constant 0 : index
    %c448 = arith.constant 448 : index
    %45 = vector.load %arg10[%c0_56, %c448] : memref<256x576xbf16, #tpu.memory_space<vmem>>, vector<256x64xbf16>
    tpu.vector_store %arg10[%c0_56, %c448], %44 {strides = array<i32>} : memref<256x576xbf16, #tpu.memory_space<vmem>>, vector<256x64xbf16>,
    %c2_57 = arith.constant 2 : index
    %c2_58 = arith.constant 2 : index
    %c0_59 = arith.constant 0 : index
    %46 = vector.load %arg9[%c2_57, %c2_58, %c0_59] : memref<18x18x64xbf16, #tpu.memory_space<vmem>>, vector<16x16x64xbf16>
    %47 = vector.shape_cast %46 : vector<16x16x64xbf16> to vector<256x64xbf16>
    %c0_60 = arith.constant 0 : index
    %c512 = arith.constant 512 : index
    %48 = vector.load %arg10[%c0_60, %c512] : memref<256x576xbf16, #tpu.memory_space<vmem>>, vector<256x64xbf16>
    tpu.vector_store %arg10[%c0_60, %c512], %47 {strides = array<i32>} : memref<256x576xbf16, #tpu.memory_space<vmem>>, vector<256x64xbf16>,
    %c0_61 = arith.constant 0 : index
    %c0_62 = arith.constant 0 : index
    %49 = vector.load %arg10[%c0_61, %c0_62] : memref<256x576xbf16, #tpu.memory_space<vmem>>, vector<256x576xbf16>
    %c0_63 = arith.constant 0 : index
    %c0_64 = arith.constant 0 : index
    %50 = vector.load %arg4[%c0_63, %c0_64] : memref<576x64xbf16, #tpu.memory_space<vmem>>, vector<576x64xbf16>
    %cst_65 = arith.constant dense<0.000000e+00> : vector<256x64xf32>
    %51 = tpu.matmul %49, %50, %cst_65 {dimension_numbers = #tpu.dot_dimension_numbers<[1], [0], [0], [1], [0, 0, 1, 1], [], []>} : vector<256x576xbf16>, vector<576x64xbf16>, vector<256x64xf32> -> vector<256x64xf32>
    %c0_66 = arith.constant 0 : index
    %c0_67 = arith.constant 0 : index
    %52 = vector.load %arg5[%c0_66, %c0_67] : memref<1x64xf32, #tpu.memory_space<vmem>>, vector<1x64xf32>
    %53 = vector.broadcast %52 : vector<1x64xf32> to vector<256x64xf32>
    %54 = arith.addf %51, %53 : vector<256x64xf32>
    %cst_68 = arith.constant 0.000000e+00 : f32
    %55 = vector.broadcast %cst_68 : f32 to vector<256x64xf32>
    %56 = arith.maximumf %54, %55 : vector<256x64xf32>
    %57 = arith.truncf %56 : vector<256x64xf32> to vector<256x64xbf16>
    %c0_69 = arith.constant 0 : index
    %c0_70 = arith.constant 0 : index
    %58 = vector.load %arg6[%c0_69, %c0_70] : memref<64x256xbf16, #tpu.memory_space<vmem>>, vector<64x256xbf16>
    %cst_71 = arith.constant dense<0.000000e+00> : vector<256x256xf32>
    %59 = tpu.matmul %57, %58, %cst_71 {dimension_numbers = #tpu.dot_dimension_numbers<[1], [0], [0], [1], [0, 0, 1, 1], [], []>} : vector<256x64xbf16>, vector<64x256xbf16>, vector<256x256xf32> -> vector<256x256xf32>
    %c0_72 = arith.constant 0 : index
    %c0_73 = arith.constant 0 : index
    %c0_74 = arith.constant 0 : index
    %c0_75 = arith.constant 0 : index
    %60 = vector.load %arg1[%c0_72, %c0_73, %c0_74, %c0_75] : memref<1x16x16x256xf32, #tpu.memory_space<vmem>>, vector<1x16x16x256xf32>
    %61 = vector.shape_cast %60 : vector<1x16x16x256xf32> to vector<16x16x256xf32>
    %62 = vector.shape_cast %61 : vector<16x16x256xf32> to vector<256x256xf32>
    %c0_76 = arith.constant 0 : index
    %c0_77 = arith.constant 0 : index
    %63 = vector.load %arg7[%c0_76, %c0_77] : memref<1x256xf32, #tpu.memory_space<vmem>>, vector<1x256xf32>
    %64 = vector.broadcast %63 : vector<1x256xf32> to vector<256x256xf32>
    %65 = arith.addf %59, %64 : vector<256x256xf32>
    %66 = arith.addf %65, %62 : vector<256x256xf32>
    %cst_78 = arith.constant 0.000000e+00 : f32
    %67 = vector.broadcast %cst_78 : f32 to vector<256x256xf32>
    %68 = arith.maximumf %66, %67 : vector<256x256xf32>
    %69 = vector.shape_cast %68 : vector<256x256xf32> to vector<16x16x256xf32>
    %c0_79 = arith.constant 0 : index
    %c0_80 = arith.constant 0 : index
    %c0_81 = arith.constant 0 : index
    %c0_82 = arith.constant 0 : index
    %70 = vector.load %arg8[%c0_79, %c0_80, %c0_81, %c0_82] : memref<1x16x16x256xf32, #tpu.memory_space<vmem>>, vector<1x16x16x256xf32>
    %71 = vector.shape_cast %70 : vector<1x16x16x256xf32> to vector<16x16x256xf32>
    %72 = vector.shape_cast %69 : vector<16x16x256xf32> to vector<1x16x16x256xf32>
    tpu.vector_store %arg8[%c0_79, %c0_80, %c0_81, %c0_82], %72 {strides = array<i32>} : memref<1x16x16x256xf32, #tpu.memory_space<vmem>>, vector<1x16x16x256xf32>,
    return
  }
  func.func @transform_0(%arg0: i32) -> (i32, i32, i32, i32) {
    %c0_i32 = arith.constant 0 : i32
    %c0_i32_0 = arith.constant 0 : i32
    %c0_i32_1 = arith.constant 0 : i32
    %c0_i32_2 = arith.constant 0 : i32
    return %arg0, %c0_i32, %c0_i32_0, %c0_i32_1 : i32, i32, i32, i32
  }
  func.func @transform_1(%arg0: i32) -> (i32, i32) {
    %c0_i32 = arith.constant 0 : i32
    %c0_i32_0 = arith.constant 0 : i32
    %c0_i32_1 = arith.constant 0 : i32
    return %c0_i32, %c0_i32_0 : i32, i32
  }
  func.func @transform_2(%arg0: i32) -> (i32, i32) {
    %c0_i32 = arith.constant 0 : i32
    %c0_i32_0 = arith.constant 0 : i32
    %c0_i32_1 = arith.constant 0 : i32
    return %c0_i32, %c0_i32_0 : i32, i32
  }
  func.func @transform_3(%arg0: i32) -> (i32, i32) {
    %c0_i32 = arith.constant 0 : i32
    %c0_i32_0 = arith.constant 0 : i32
    %c0_i32_1 = arith.constant 0 : i32
    return %c0_i32, %c0_i32_0 : i32, i32
  }
  func.func @transform_4(%arg0: i32) -> (i32, i32) {
    %c0_i32 = arith.constant 0 : i32
    %c0_i32_0 = arith.constant 0 : i32
    %c0_i32_1 = arith.constant 0 : i32
    return %c0_i32, %c0_i32_0 : i32, i32
  }
  func.func @transform_5(%arg0: i32) -> (i32, i32) {
    %c0_i32 = arith.constant 0 : i32
    %c0_i32_0 = arith.constant 0 : i32
    %c0_i32_1 = arith.constant 0 : i32
    return %c0_i32, %c0_i32_0 : i32, i32
  }
  func.func @transform_6(%arg0: i32) -> (i32, i32) {
    %c0_i32 = arith.constant 0 : i32
    %c0_i32_0 = arith.constant 0 : i32
    %c0_i32_1 = arith.constant 0 : i32
    return %c0_i32, %c0_i32_0 : i32, i32
  }
  func.func @transform_7(%arg0: i32) -> (i32, i32, i32, i32) {
    %c0_i32 = arith.constant 0 : i32
    %c0_i32_0 = arith.constant 0 : i32
    %c0_i32_1 = arith.constant 0 : i32
    %c0_i32_2 = arith.constant 0 : i32
    return %arg0, %c0_i32, %c0_i32_0, %c0_i32_1 : i32, i32, i32, i32
  }
}

</mosaic_0001>

<llo_original>
// kernel: tpu_custom_call.1
$region0: #{tpu_custom_call.1}
  #allocation0 [shape = 'u32[]', space=smem, size = 0x4, offset = 0x4, fixed_abs, tag = 'smem constant byte address 0x4 - core index']
  #allocation1 [shape = 'u32[72,128]{1,0:T(1,128)}', space=vmem, size = 0x9000, scoped, tag = 'internal scratch']
  #allocation2 [shape = 'bf16[18,18,64]{2,1,0:T(8,128)(2,1)}', space=vmem, size = 0x1b000, scoped, tag = 'scratch operand']
  #allocation3 [shape = 'bf16[256,576]{1,0:T(8,128)(2,1)}', space=vmem, size = 0x50000, scoped, tag = 'scratch operand']
  %s0 = inlined_call_operand.hbm [shape: f32[2,16,16,256], index: 0, kind: input, shape index: {}]
  %s1 = inlined_call_operand.vmem [shape: bf16[256,64], index: 1, kind: input, shape index: {}]
  %s2 = inlined_call_operand.vmem [shape: f32[1,64], index: 2, kind: input, shape index: {}]
  %s3 = inlined_call_operand.vmem [shape: bf16[576,64], index: 3, kind: input, shape index: {}]
  %s4 = inlined_call_operand.vmem [shape: f32[1,64], index: 4, kind: input, shape index: {}]
  %s5 = inlined_call_operand.vmem [shape: bf16[64,256], index: 5, kind: input, shape index: {}]
  %s6 = inlined_call_operand.vmem [shape: f32[1,256], index: 6, kind: input, shape index: {}]
  %s7 = inlined_call_operand.hbm [shape: f32[2,16,16,256], index: 7, kind: output, shape index: {}]
  %s8 = sld [smem:[#allocation0]]
  $region65: #{tpu_custom_call.1} parent=0
    _
  %s10 = ssub.s32 1, %s8
  %s11 = scalar_select 0, %s10, %s8
  $region1: #{tpu_custom_call.1} parent=0
    #allocation4 [shape = 'u8[524288]{0}', space=vmem, size = 0x80000, scoped, tag = 'input window, operand 0']
    #allocation5 [shape = 's32[2]{0}', space=sflag, size = 0x8, scoped, tag = 'scoped memory for tpu_custom_call.1']
    #allocation6 [shape = 's32[2]{0}', space=sflag, size = 0x8, scoped, tag = 'scoped memory for tpu_custom_call.1']
    #allocation7 [shape = 'u8[524288]{0}', space=vmem, size = 0x80000, scoped, tag = 'output window, operand 0']
    %12 = vsyncpa [#allocation5], 0
    %s13 = scalar_lea.sflag [#allocation5], 1
    %14 = vsyncpa %s13, 0
    %15 = vsyncpa [#allocation6], 0
    %s16 = scalar_lea.sflag [#allocation6], 1
    %17 = vsyncpa %s16, 0
    loop: start=0, step=1, limit=4
    $region2: #{tpu_custom_call.1} parent=1 // loop_pre_header
      _
    $region3: #{tpu_custom_call.1} parent=1 // loop_header
      %s19 = sphi 0, %s23
      %p20 = scmp.ge.s32.totalorder %s19, 4
      %s29 = sphi 0, %s31
      %s32 = sphi 0, %s29
      %s33 = sphi 0, %s32
      %s49 = sphi 0, %s33
      %s53 = sphi 0, %s53
      %s55 = sphi 0, %s53
      %s56 = sphi 0, %s55
      %s70 = sphi 0, %s56
      %s74 = sphi 0, %s74
      %s76 = sphi 0, %s74
      %s77 = sphi 0, %s76
      %s91 = sphi 0, %s77
      %s95 = sphi 0, %s95
      %s97 = sphi 0, %s95
      %s98 = sphi 0, %s97
      %s112 = sphi 0, %s98
      %s116 = sphi 0, %s116
      %s118 = sphi 0, %s116
      %s119 = sphi 0, %s118
      %s133 = sphi 0, %s119
      %s137 = sphi 0, %s137
      %s139 = sphi 0, %s137
      %s140 = sphi 0, %s139
      %s154 = sphi 0, %s140
      %s158 = sphi 0, %s158
      %s160 = sphi 0, %s158
      %s161 = sphi 0, %s160
      %s175 = sphi 0, %s161
      %s181 = sphi 0, %s183
      %s184 = sphi 0, %s181
      %s185 = sphi 0, %s184
      %s201 = sphi 0, %s185
    $region4: #{tpu_custom_call.1} parent=1 // loop_header_branch
      %22 = sbr.rel (%p20) target = $region8
    $region5: #{tpu_custom_call.1} parent=1 // loop_body
      %s24 = ssub.s32 %s19, 1
      %s25 = ssub.s32 %s19, 2
      %s26 = sadd.s32 %s19, 1
      %s27 = ssub.s32 %s19, %s26
      %p28 = scmp.eq.s32.totalorder %s27, 0
      %s30 = sadd.s32 %s29, 1
      %s31 = scalar_select %p28, %s29, %s30
      %p34 = pneg %p28
      %p35 = scmp.eq.s32.totalorder %s19, 1
      %p36 = por %p34, %p35
      %p37 = scmp.ne.s32.totalorder %s29, %s32
      %p38 = scmp.eq.s32.totalorder %s19, 0
      %p39 = por %p37, %p38
      %p40 = scmp.ne.s32.totalorder %s29, %s32
      %p41 = scmp.eq.s32.totalorder %s24, 1
      %p42 = por %p40, %p41
      %p43 = scmp.ne.s32.totalorder %s32, %s33
      %p44 = scmp.eq.s32.totalorder %s24, 0
      %p45 = por %p43, %p44
      %p46 = scmp.ne.s32.totalorder %s32, %s33
      %p47 = scmp.eq.s32.totalorder %s25, 1
      %p48 = por %p46, %p47
      %p50 = scmp.ne.s32.totalorder %s33, %s49
      %p51 = scmp.eq.s32.totalorder %s25, 0
      %p52 = por %p50, %p51
      %s54 = sadd.s32 %s53, 1
      %p57 = scmp.eq.s32.totalorder %s19, 1
      %p58 = scmp.ne.s32.totalorder %s53, %s55
      %p59 = scmp.eq.s32.totalorder %s19, 0
      %p60 = por %p58, %p59
      %p61 = scmp.ne.s32.totalorder %s53, %s55
      %p62 = scmp.eq.s32.totalorder %s24, 1
      %p63 = por %p61, %p62
      %p64 = scmp.ne.s32.totalorder %s55, %s56
      %p65 = scmp.eq.s32.totalorder %s24, 0
      %p66 = por %p64, %p65
      %p67 = scmp.ne.s32.totalorder %s55, %s56
      %p68 = scmp.eq.s32.totalorder %s25, 1
      %p69 = por %p67, %p68
      %p71 = scmp.ne.s32.totalorder %s56, %s70
      %p72 = scmp.eq.s32.totalorder %s25, 0
      %p73 = por %p71, %p72
      %s75 = sadd.s32 %s74, 1
      %p78 = scmp.eq.s32.totalorder %s19, 1
      %p79 = scmp.ne.s32.totalorder %s74, %s76
      %p80 = scmp.eq.s32.totalorder %s19, 0
      %p81 = por %p79, %p80
      %p82 = scmp.ne.s32.totalorder %s74, %s76
      %p83 = scmp.eq.s32.totalorder %s24, 1
      %p84 = por %p82, %p83
      %p85 = scmp.ne.s32.totalorder %s76, %s77
      %p86 = scmp.eq.s32.totalorder %s24, 0
      %p87 = por %p85, %p86
      %p88 = scmp.ne.s32.totalorder %s76, %s77
      %p89 = scmp.eq.s32.totalorder %s25, 1
      %p90 = por %p88, %p89
      %p92 = scmp.ne.s32.totalorder %s77, %s91
      %p93 = scmp.eq.s32.totalorder %s25, 0
      %p94 = por %p92, %p93
      %s96 = sadd.s32 %s95, 1
      %p99 = scmp.eq.s32.totalorder %s19, 1
      %p100 = scmp.ne.s32.totalorder %s95, %s97
      %p101 = scmp.eq.s32.totalorder %s19, 0
      %p102 = por %p100, %p101
      %p103 = scmp.ne.s32.totalorder %s95, %s97
      %p104 = scmp.eq.s32.totalorder %s24, 1
      %p105 = por %p103, %p104
      %p106 = scmp.ne.s32.totalorder %s97, %s98
      %p107 = scmp.eq.s32.totalorder %s24, 0
      %p108 = por %p106, %p107
      %p109 = scmp.ne.s32.totalorder %s97, %s98
      %p110 = scmp.eq.s32.totalorder %s25, 1
      %p111 = por %p109, %p110
      %p113 = scmp.ne.s32.totalorder %s98, %s112
      %p114 = scmp.eq.s32.totalorder %s25, 0
      %p115 = por %p113, %p114
      %s117 = sadd.s32 %s116, 1
      %p120 = scmp.eq.s32.totalorder %s19, 1
      %p121 = scmp.ne.s32.totalorder %s116, %s118
      %p122 = scmp.eq.s32.totalorder %s19, 0
      %p123 = por %p121, %p122
      %p124 = scmp.ne.s32.totalorder %s116, %s118
      %p125 = scmp.eq.s32.totalorder %s24, 1
      %p126 = por %p124, %p125
      %p127 = scmp.ne.s32.totalorder %s118, %s119
      %p128 = scmp.eq.s32.totalorder %s24, 0
      %p129 = por %p127, %p128
      %p130 = scmp.ne.s32.totalorder %s118, %s119
      %p131 = scmp.eq.s32.totalorder %s25, 1
      %p132 = por %p130, %p131
      %p134 = scmp.ne.s32.totalorder %s119, %s133
      %p135 = scmp.eq.s32.totalorder %s25, 0
      %p136 = por %p134, %p135
      %s138 = sadd.s32 %s137, 1
      %p141 = scmp.eq.s32.totalorder %s19, 1
      %p142 = scmp.ne.s32.totalorder %s137, %s139
      %p143 = scmp.eq.s32.totalorder %s19, 0
      %p144 = por %p142, %p143
      %p145 = scmp.ne.s32.totalorder %s137, %s139
      %p146 = scmp.eq.s32.totalorder %s24, 1
      %p147 = por %p145, %p146
      %p148 = scmp.ne.s32.totalorder %s139, %s140
      %p149 = scmp.eq.s32.totalorder %s24, 0
      %p150 = por %p148, %p149
      %p151 = scmp.ne.s32.totalorder %s139, %s140
      %p152 = scmp.eq.s32.totalorder %s25, 1
      %p153 = por %p151, %p152
      %p155 = scmp.ne.s32.totalorder %s140, %s154
      %p156 = scmp.eq.s32.totalorder %s25, 0
      %p157 = por %p155, %p156
      %s159 = sadd.s32 %s158, 1
      %p162 = scmp.eq.s32.totalorder %s19, 1
      %p163 = scmp.ne.s32.totalorder %s158, %s160
      %p164 = scmp.eq.s32.totalorder %s19, 0
      %p165 = por %p163, %p164
      %p166 = scmp.ne.s32.totalorder %s158, %s160
      %p167 = scmp.eq.s32.totalorder %s24, 1
      %p168 = por %p166, %p167
      %p169 = scmp.ne.s32.totalorder %s160, %s161
      %p170 = scmp.eq.s32.totalorder %s24, 0
      %p171 = por %p169, %p170
      %p172 = scmp.ne.s32.totalorder %s160, %s161
      %p173 = scmp.eq.s32.totalorder %s25, 1
      %p174 = por %p172, %p173
      %p176 = scmp.ne.s32.totalorder %s161, %s175
      %p177 = scmp.eq.s32.totalorder %s25, 0
      %p178 = por %p176, %p177
      %s179 = ssub.s32 %s19, %s26
      %p180 = scmp.eq.s32.totalorder %s179, 0
      %s182 = sadd.s32 %s181, 1
      %s183 = scalar_select %p180, %s181, %s182
      %p186 = pneg %p180
      %p187 = scmp.eq.s32.totalorder %s19, 1
      %p188 = por %p186, %p187
      %p189 = scmp.ne.s32.totalorder %s181, %s184
      %p190 = scmp.eq.s32.totalorder %s19, 0
      %p191 = por %p189, %p190
      %p192 = scmp.ne.s32.totalorder %s181, %s184
      %p193 = scmp.eq.s32.totalorder %s24, 1
      %p194 = por %p192, %p193
      %p195 = scmp.ne.s32.totalorder %s184, %s185
      %p196 = scmp.eq.s32.totalorder %s24, 0
      %p197 = por %p195, %p196
      %p198 = scmp.ne.s32.totalorder %s184, %s185
      %p199 = scmp.eq.s32.totalorder %s25, 1
      %p200 = por %p198, %p199
      %p202 = scmp.ne.s32.totalorder %s185, %s201
      %p203 = scmp.eq.s32.totalorder %s25, 0
      %p204 = por %p202, %p203
      %p205 = scmp.le.s32.totalorder 1, %s19
      %p206 = scmp.lt.s32.totalorder %s19, 3
      %p207 = pnand %p205, %p206
      %p208 = pneg %p207
      // Predicated region
      $region9: #{tpu_custom_call.1} parent=5 // pred_check
        _
      $region10: #{tpu_custom_call.1} parent=5 // pred_check_branch
        %210 = sbr.rel (%p207) target = $region12
      $region11: #{tpu_custom_call.1} parent=5 // pred_region
        %s211 = ssub.s32 %s19, 1
        // Predicated region
        $region13: #{tpu_custom_call.1} parent=11 // pred_check
          %p212 = pneg %p66
        $region14: #{tpu_custom_call.1} parent=11 // pred_check_branch
          %214 = sbr.rel (%p212) target = $region16
        $region15: #{tpu_custom_call.1} parent=11 // pred_region
          _
        $region16: #{tpu_custom_call.1} parent=11 // pred_fallthru
          _
        // Predicated region
        $region17: #{tpu_custom_call.1} parent=11 // pred_check
          %p215 = pneg %p87
        $region18: #{tpu_custom_call.1} parent=11 // pred_check_branch
          %217 = sbr.rel (%p215) target = $region20
        $region19: #{tpu_custom_call.1} parent=11 // pred_region
          _
        $region20: #{tpu_custom_call.1} parent=11 // pred_fallthru
          _
        // Predicated region
        $region21: #{tpu_custom_call.1} parent=11 // pred_check
          %p218 = pneg %p108
        $region22: #{tpu_custom_call.1} parent=11 // pred_check_branch
          %220 = sbr.rel (%p218) target = $region24
        $region23: #{tpu_custom_call.1} parent=11 // pred_region
          _
        $region24: #{tpu_custom_call.1} parent=11 // pred_fallthru
          _
        // Predicated region
        $region25: #{tpu_custom_call.1} parent=11 // pred_check
          %p221 = pneg %p129
        $region26: #{tpu_custom_call.1} parent=11 // pred_check_branch
          %223 = sbr.rel (%p221) target = $region28
        $region27: #{tpu_custom_call.1} parent=11 // pred_region
          _
        $region28: #{tpu_custom_call.1} parent=11 // pred_fallthru
          _
        // Predicated region
        $region29: #{tpu_custom_call.1} parent=11 // pred_check
          %p224 = pneg %p150
        $region30: #{tpu_custom_call.1} parent=11 // pred_check_branch
          %226 = sbr.rel (%p224) target = $region32
        $region31: #{tpu_custom_call.1} parent=11 // pred_region
          _
        $region32: #{tpu_custom_call.1} parent=11 // pred_fallthru
          _
        // Predicated region
        $region33: #{tpu_custom_call.1} parent=11 // pred_check
          %p227 = pneg %p171
        $region34: #{tpu_custom_call.1} parent=11 // pred_check_branch
          %229 = sbr.rel (%p227) target = $region36
        $region35: #{tpu_custom_call.1} parent=11 // pred_region
          _
        $region36: #{tpu_custom_call.1} parent=11 // pred_fallthru
          _
      $region12: #{tpu_custom_call.1} parent=5 // pred_fallthru
        _
      %p230 = scmp.lt.s32.totalorder %s19, 2
      // Predicated region
      $region37: #{tpu_custom_call.1} parent=5 // pred_check
        %p231 = pneg %p230
      $region38: #{tpu_custom_call.1} parent=5 // pred_check_branch
        %233 = sbr.rel (%p231) target = $region40
      $region39: #{tpu_custom_call.1} parent=5 // pred_region
        // Predicated region
        $region41: #{tpu_custom_call.1} parent=39 // pred_check
          %p234 = pneg %p39
        $region42: #{tpu_custom_call.1} parent=39 // pred_check_branch
          %236 = sbr.rel (%p234) target = $region44
        $region43: #{tpu_custom_call.1} parent=39 // pred_region
          %s237 = sand.u32 %s29, 1
          %s238 = scalar_lea.sflag [#allocation5], %s237
          %s239 = sand.u32 %s29, 1
          %s240 = smul.addr %s239, 512
          %s241 = scalar_lea.vmem [#allocation4], %s240
          %243 = vsyncadd %s238, 0
          %s244 = smul.addr %s19, 64
          %s245 = smul.addr %s244, 8
          %s246 = scalar_lea.hbm %s0, %s245
          %s247 = sshll.u32 %s246, 4
          %s248 = int_to_ptr.hbm [resolvable:$true] %s247
          %s249 = sshll.u32 %s241, 4
          %s250 = int_to_ptr.vmem [resolvable:$true] %s249
          %255 = dma.hbm_to_vmem [thread:$0]  %s248, 8192, %s250, %s238, 256, 256, 16
        $region44: #{tpu_custom_call.1} parent=39 // pred_fallthru
          _
      $region40: #{tpu_custom_call.1} parent=5 // pred_fallthru
        _
      %p256 = scmp.le.s32.totalorder 1, %s19
      %p257 = scmp.lt.s32.totalorder %s19, 3
      %p258 = pnand %p256, %p257
      %p259 = pneg %p258
      // Predicated region
      $region45: #{tpu_custom_call.1} parent=5 // pred_check
        _
      $region46: #{tpu_custom_call.1} parent=5 // pred_check_branch
        %261 = sbr.rel (%p258) target = $region48
      $region47: #{tpu_custom_call.1} parent=5 // pred_region
        %s262 = ssub.s32 %s19, 1
        %s263 = sand.u32 %s32, 1
        %s264 = scalar_lea.sflag [#allocation5], %s263
        %s265 = sand.u32 %s32, 1
        %s266 = smul.addr %s265, 512
        %s267 = scalar_lea.vmem [#allocation4], %s266
        // Predicated region
        $region49: #{tpu_custom_call.1} parent=47 // pred_check
          %p268 = pneg %p45
        $region50: #{tpu_custom_call.1} parent=47 // pred_check_branch
          %270 = sbr.rel (%p268) target = $region52
        $region51: #{tpu_custom_call.1} parent=47 // pred_region
          %272 = dma.done %s264, 8192
        $region52: #{tpu_custom_call.1} parent=47 // pred_fallthru
          _
        %s273 = sand.u32 %s32, 1
        %s274 = scalar_lea.sflag [#allocation5], %s273
        %s275 = sand.u32 %s32, 1
        %s276 = smul.addr %s275, 512
        %s277 = scalar_lea.vmem [#allocation4], %s276
        %p278 = pneg %p45
        %p279 = pneg %p42
        %p280 = pneg %p66
        %p281 = pneg %p63
        %p282 = pneg %p87
        %p283 = pneg %p84
        %p284 = pneg %p108
        %p285 = pneg %p105
        %p286 = pneg %p129
        %p287 = pneg %p126
        %p288 = pneg %p150
        %p289 = pneg %p147
        %p290 = pneg %p171
        %p291 = pneg %p168
        %p292 = pneg %p197
        %p293 = pneg %p194
        %s294 = sand.u32 %s184, 1
        %s295 = scalar_lea.sflag [#allocation6], %s294
        %s296 = sand.u32 %s184, 1
        %s297 = smul.addr %s296, 512
        %s298 = scalar_lea.vmem [#allocation7], %s297
        %v300 = vld [vmem:[%s267] sm:$0xff]
        %v301 = vld [vmem:[%s267 + $0x8] sm:$0xff]
        %v302 = vld [vmem:[%s267 + $0x10] sm:$0xff]
        %v303 = vld [vmem:[%s267 + $0x18] sm:$0xff]
        %v304 = vld [vmem:[%s267 + $0x20] sm:$0xff]
        %v305 = vld [vmem:[%s267 + $0x28] sm:$0xff]
        %v306 = vld [vmem:[%s267 + $0x30] sm:$0xff]
        %v307 = vld [vmem:[%s267 + $0x38] sm:$0xff]
        %v308 = vld [vmem:[%s267 + $0x40] sm:$0xff]
        %v309 = vld [vmem:[%s267 + $0x48] sm:$0xff]
        %v310 = vld [vmem:[%s267 + $0x50] sm:$0xff]
        %v311 = vld [vmem:[%s267 + $0x58] sm:$0xff]
        %v312 = vld [vmem:[%s267 + $0x60] sm:$0xff]
        %v313 = vld [vmem:[%s267 + $0x68] sm:$0xff]
        %v314 = vld [vmem:[%s267 + $0x70] sm:$0xff]
        %v315 = vld [vmem:[%s267 + $0x78] sm:$0xff]
        %v316 = vld [vmem:[%s267 + $0x80] sm:$0xff]
        %v317 = vld [vmem:[%s267 + $0x88] sm:$0xff]
        %v318 = vld [vmem:[%s267 + $0x90] sm:$0xff]
        %v319 = vld [vmem:[%s267 + $0x98] sm:$0xff]
        %v320 = vld [vmem:[%s267 + $0xa0] sm:$0xff]
        %v321 = vld [vmem:[%s267 + $0xa8] sm:$0xff]
        %v322 = vld [vmem:[%s267 + $0xb0] sm:$0xff]
        %v323 = vld [vmem:[%s267 + $0xb8] sm:$0xff]
        %v324 = vld [vmem:[%s267 + $0xc0] sm:$0xff]
        %v325 = vld [vmem:[%s267 + $0xc8] sm:$0xff]
        %v326 = vld [vmem:[%s267 + $0xd0] sm:$0xff]
        %v327 = vld [vmem:[%s267 + $0xd8] sm:$0xff]
        %v328 = vld [vmem:[%s267 + $0xe0] sm:$0xff]
        %v329 = vld [vmem:[%s267 + $0xe8] sm:$0xff]
        %v330 = vld [vmem:[%s267 + $0xf0] sm:$0xff]
        %v331 = vld [vmem:[%s267 + $0xf8] sm:$0xff]
        %v332 = vld [vmem:[%s267 + $0x100] sm:$0xff]
        %v333 = vld [vmem:[%s267 + $0x108] sm:$0xff]
        %v334 = vld [vmem:[%s267 + $0x110] sm:$0xff]
        %v335 = vld [vmem:[%s267 + $0x118] sm:$0xff]
        %v336 = vld [vmem:[%s267 + $0x120] sm:$0xff]
        %v337 = vld [vmem:[%s267 + $0x128] sm:$0xff]
        %v338 = vld [vmem:[%s267 + $0x130] sm:$0xff]
        %v339 = vld [vmem:[%s267 + $0x138] sm:$0xff]
        %v340 = vld [vmem:[%s267 + $0x140] sm:$0xff]
        %v341 = vld [vmem:[%s267 + $0x148] sm:$0xff]
        %v342 = vld [vmem:[%s267 + $0x150] sm:$0xff]
        %v343 = vld [vmem:[%s267 + $0x158] sm:$0xff]
        %v344 = vld [vmem:[%s267 + $0x160] sm:$0xff]
        %v345 = vld [vmem:[%s267 + $0x168] sm:$0xff]
        %v346 = vld [vmem:[%s267 + $0x170] sm:$0xff]
        %v347 = vld [vmem:[%s267 + $0x178] sm:$0xff]
        %v348 = vld [vmem:[%s267 + $0x180] sm:$0xff]
        %v349 = vld [vmem:[%s267 + $0x188] sm:$0xff]
        %v350 = vld [vmem:[%s267 + $0x190] sm:$0xff]
        %v351 = vld [vmem:[%s267 + $0x198] sm:$0xff]
        %v352 = vld [vmem:[%s267 + $0x1a0] sm:$0xff]
        %v353 = vld [vmem:[%s267 + $0x1a8] sm:$0xff]
        %v354 = vld [vmem:[%s267 + $0x1b0] sm:$0xff]
        %v355 = vld [vmem:[%s267 + $0x1b8] sm:$0xff]
        %v356 = vld [vmem:[%s267 + $0x1c0] sm:$0xff]
        %v357 = vld [vmem:[%s267 + $0x1c8] sm:$0xff]
        %v358 = vld [vmem:[%s267 + $0x1d0] sm:$0xff]
        %v359 = vld [vmem:[%s267 + $0x1d8] sm:$0xff]
        %v360 = vld [vmem:[%s267 + $0x1e0] sm:$0xff]
        %v361 = vld [vmem:[%s267 + $0x1e8] sm:$0xff]
        %v362 = vld [vmem:[%s267 + $0x1f0] sm:$0xff]
        %v363 = vld [vmem:[%s267 + $0x1f8] sm:$0xff]
        %v364 = vpack.c.bf16 %v302, %v300
        %v365 = vpack.c.bf16 %v303, %v301
        %v366 = vpack.c.bf16 %v306, %v304
        %v367 = vpack.c.bf16 %v307, %v305
        %v368 = vpack.c.bf16 %v310, %v308
        %v369 = vpack.c.bf16 %v311, %v309
        %v370 = vpack.c.bf16 %v314, %v312
        %v371 = vpack.c.bf16 %v315, %v313
        %v372 = vpack.c.bf16 %v318, %v316
        %v373 = vpack.c.bf16 %v319, %v317
        %v374 = vpack.c.bf16 %v322, %v320
        %v375 = vpack.c.bf16 %v323, %v321
        %v376 = vpack.c.bf16 %v326, %v324
        %v377 = vpack.c.bf16 %v327, %v325
        %v378 = vpack.c.bf16 %v330, %v328
        %v379 = vpack.c.bf16 %v331, %v329
        %v380 = vpack.c.bf16 %v334, %v332
        %v381 = vpack.c.bf16 %v335, %v333
        %v382 = vpack.c.bf16 %v338, %v336
        %v383 = vpack.c.bf16 %v339, %v337
        %v384 = vpack.c.bf16 %v342, %v340
        %v385 = vpack.c.bf16 %v343, %v341
        %v386 = vpack.c.bf16 %v346, %v344
        %v387 = vpack.c.bf16 %v347, %v345
        %v388 = vpack.c.bf16 %v350, %v348
        %v389 = vpack.c.bf16 %v351, %v349
        %v390 = vpack.c.bf16 %v354, %v352
        %v391 = vpack.c.bf16 %v355, %v353
        %v392 = vpack.c.bf16 %v358, %v356
        %v393 = vpack.c.bf16 %v359, %v357
        %v394 = vpack.c.bf16 %v362, %v360
        %v395 = vpack.c.bf16 %v363, %v361
        %v396 = vld [vmem:[%s1] sm:$0xf]
        %v397 = vld [vmem:[%s1 + $0x4] sm:$0xf]
        %v398 = vld [vmem:[%s1 + $0x8] sm:$0xf]
        %v399 = vld [vmem:[%s1 + $0xc] sm:$0xf]
        %v400 = vld [vmem:[%s1 + $0x10] sm:$0xf]
        %v401 = vld [vmem:[%s1 + $0x14] sm:$0xf]
        %v402 = vld [vmem:[%s1 + $0x18] sm:$0xf]
        %v403 = vld [vmem:[%s1 + $0x1c] sm:$0xf]
        %v404 = vld [vmem:[%s1 + $0x20] sm:$0xf]
        %v405 = vld [vmem:[%s1 + $0x24] sm:$0xf]
        %v406 = vld [vmem:[%s1 + $0x28] sm:$0xf]
        %v407 = vld [vmem:[%s1 + $0x2c] sm:$0xf]
        %v408 = vld [vmem:[%s1 + $0x30] sm:$0xf]
        %v409 = vld [vmem:[%s1 + $0x34] sm:$0xf]
        %v410 = vld [vmem:[%s1 + $0x38] sm:$0xf]
        %v411 = vld [vmem:[%s1 + $0x3c] sm:$0xf]
        %v412 = vld [vmem:[%s1 + $0x40] sm:$0xf]
        %v413 = vld [vmem:[%s1 + $0x44] sm:$0xf]
        %v414 = vld [vmem:[%s1 + $0x48] sm:$0xf]
        %v415 = vld [vmem:[%s1 + $0x4c] sm:$0xf]
        %v416 = vld [vmem:[%s1 + $0x50] sm:$0xf]
        %v417 = vld [vmem:[%s1 + $0x54] sm:$0xf]
        %v418 = vld [vmem:[%s1 + $0x58] sm:$0xf]
        %v419 = vld [vmem:[%s1 + $0x5c] sm:$0xf]
        %v420 = vld [vmem:[%s1 + $0x60] sm:$0xf]
        %v421 = vld [vmem:[%s1 + $0x64] sm:$0xf]
        %v422 = vld [vmem:[%s1 + $0x68] sm:$0xf]
        %v423 = vld [vmem:[%s1 + $0x6c] sm:$0xf]
        %v424 = vld [vmem:[%s1 + $0x70] sm:$0xf]
        %v425 = vld [vmem:[%s1 + $0x74] sm:$0xf]
        %v426 = vld [vmem:[%s1 + $0x78] sm:$0xf]
        %v427 = vld [vmem:[%s1 + $0x7c] sm:$0xf]
        %v428 = vld [vmem:[%s2] sm:$0x1]
        %v430 = vperm.slane %v428, 0
        %v464 = vunpack.c.l.b16 %v396
        %v465 = vunpack.c.l.b16 %v397
        %v466 = vunpack.c.l.b16 %v398
        %v467 = vunpack.c.l.b16 %v399
        %v468 = vunpack.c.l.b16 %v400
        %v469 = vunpack.c.l.b16 %v401
        %v470 = vunpack.c.l.b16 %v402
        %v471 = vunpack.c.l.b16 %v403
        %v472 = vunpack.c.l.b16 %v404
        %v473 = vunpack.c.l.b16 %v405
        %v474 = vunpack.c.l.b16 %v406
        %v475 = vunpack.c.l.b16 %v407
        %v476 = vunpack.c.l.b16 %v408
        %v477 = vunpack.c.l.b16 %v409
        %v478 = vunpack.c.l.b16 %v410
        %v479 = vunpack.c.l.b16 %v411
        %v480 = vunpack.c.l.b16 %v412
        %v481 = vunpack.c.l.b16 %v413
        %v482 = vunpack.c.l.b16 %v414
        %v483 = vunpack.c.l.b16 %v415
        %v484 = vunpack.c.l.b16 %v416
        %v485 = vunpack.c.l.b16 %v417
        %v486 = vunpack.c.l.b16 %v418
        %v487 = vunpack.c.l.b16 %v419
        %v488 = vunpack.c.l.b16 %v420
        %v489 = vunpack.c.l.b16 %v421
        %v490 = vunpack.c.l.b16 %v422
        %v491 = vunpack.c.l.b16 %v423
        %v492 = vunpack.c.l.b16 %v424
        %v493 = vunpack.c.l.b16 %v425
        %v494 = vunpack.c.l.b16 %v426
        %v495 = vunpack.c.l.b16 %v427
        %v496 = vpack.c.b16 %v465, %v464
        %v497 = vpack.c.b16 %v467, %v466
        %v498 = vpack.c.b16 %v469, %v468
        %v499 = vpack.c.b16 %v471, %v470
        %v500 = vpack.c.b16 %v473, %v472
        %v501 = vpack.c.b16 %v475, %v474
        %v502 = vpack.c.b16 %v477, %v476
        %v503 = vpack.c.b16 %v479, %v478
        %v504 = vpack.c.b16 %v481, %v480
        %v505 = vpack.c.b16 %v483, %v482
        %v506 = vpack.c.b16 %v485, %v484
        %v507 = vpack.c.b16 %v487, %v486
        %v508 = vpack.c.b16 %v489, %v488
        %v509 = vpack.c.b16 %v491, %v490
        %v510 = vpack.c.b16 %v493, %v492
        %v511 = vpack.c.b16 %v495, %v494
        %528 = vmatpush.bf16.msra.mxu0 %v503
        %529 = vmatpush.bf16.msra.mxu0 %v502
        %530 = vmatpush.bf16.msra.mxu0 %v501
        %531 = vmatpush.bf16.msra.mxu0 %v500
        %532 = vmatpush.bf16.msra.mxu0 %v499
        %533 = vmatpush.bf16.msra.mxu0 %v498
        %534 = vmatpush.bf16.msra.mxu0 %v497
        %535 = vmatpush.bf16.msra.mxu0 %v496
        %536 = vmatmul.bf16.gmra.mxu0 %v364
        %v537 = vpop.f32.mrf.mxu0
        %v538 = vadd.f32 %v430, %v537
        %v539 = vpop.f32.mrf.mxu0
        %v540 = vadd.f32 %v430, %v539
        %541 = vmatmul.bf16.gmra.mxu0 %v366
        %v542 = vpop.f32.mrf.mxu0
        %v543 = vadd.f32 %v430, %v542
        %v544 = vpop.f32.mrf.mxu0
        %v545 = vadd.f32 %v430, %v544
        %546 = vmatmul.bf16.gmra.mxu0 %v368
        %v547 = vpop.f32.mrf.mxu0
        %v548 = vadd.f32 %v430, %v547
        %v549 = vpop.f32.mrf.mxu0
        %v550 = vadd.f32 %v430, %v549
        %551 = vmatmul.bf16.gmra.mxu0 %v370
        %v552 = vpop.f32.mrf.mxu0
        %v553 = vadd.f32 %v430, %v552
        %v554 = vpop.f32.mrf.mxu0
        %v555 = vadd.f32 %v430, %v554
        %556 = vmatmul.bf16.gmra.mxu0 %v372
        %v557 = vpop.f32.mrf.mxu0
        %v558 = vadd.f32 %v430, %v557
        %v559 = vpop.f32.mrf.mxu0
        %v560 = vadd.f32 %v430, %v559
        %561 = vmatmul.bf16.gmra.mxu0 %v374
        %v562 = vpop.f32.mrf.mxu0
        %v563 = vadd.f32 %v430, %v562
        %v564 = vpop.f32.mrf.mxu0
        %v565 = vadd.f32 %v430, %v564
        %566 = vmatmul.bf16.gmra.mxu0 %v376
        %v567 = vpop.f32.mrf.mxu0
        %v568 = vadd.f32 %v430, %v567
        %v569 = vpop.f32.mrf.mxu0
        %v570 = vadd.f32 %v430, %v569
        %571 = vmatmul.bf16.gmra.mxu0 %v378
        %v572 = vpop.f32.mrf.mxu0
        %v573 = vadd.f32 %v430, %v572
        %v574 = vpop.f32.mrf.mxu0
        %v575 = vadd.f32 %v430, %v574
        %576 = vmatmul.bf16.gmra.mxu0 %v380
        %v577 = vpop.f32.mrf.mxu0
        %v578 = vadd.f32 %v430, %v577
        %v579 = vpop.f32.mrf.mxu0
        %v580 = vadd.f32 %v430, %v579
        %581 = vmatmul.bf16.gmra.mxu0 %v382
        %v582 = vpop.f32.mrf.mxu0
        %v583 = vadd.f32 %v430, %v582
        %v584 = vpop.f32.mrf.mxu0
        %v585 = vadd.f32 %v430, %v584
        %586 = vmatmul.bf16.gmra.mxu0 %v384
        %v587 = vpop.f32.mrf.mxu0
        %v588 = vadd.f32 %v430, %v587
        %v589 = vpop.f32.mrf.mxu0
        %v590 = vadd.f32 %v430, %v589
        %591 = vmatmul.bf16.gmra.mxu0 %v386
        %v592 = vpop.f32.mrf.mxu0
        %v593 = vadd.f32 %v430, %v592
        %v594 = vpop.f32.mrf.mxu0
        %v595 = vadd.f32 %v430, %v594
        %596 = vmatmul.bf16.gmra.mxu0 %v388
        %v597 = vpop.f32.mrf.mxu0
        %v598 = vadd.f32 %v430, %v597
        %v599 = vpop.f32.mrf.mxu0
        %v600 = vadd.f32 %v430, %v599
        %601 = vmatmul.bf16.gmra.mxu0 %v390
        %v602 = vpop.f32.mrf.mxu0
        %v603 = vadd.f32 %v430, %v602
        %v604 = vpop.f32.mrf.mxu0
        %v605 = vadd.f32 %v430, %v604
        %606 = vmatmul.bf16.gmra.mxu0 %v392
        %v607 = vpop.f32.mrf.mxu0
        %v608 = vadd.f32 %v430, %v607
        %v609 = vpop.f32.mrf.mxu0
        %v610 = vadd.f32 %v430, %v609
        %611 = vmatmul.bf16.gmra.mxu0 %v394
        %v612 = vpop.f32.mrf.mxu0
        %v613 = vadd.f32 %v430, %v612
        %v614 = vpop.f32.mrf.mxu0
        %v615 = vadd.f32 %v430, %v614
        %616 = vdwg.mxu0
        %617 = vmatpush.bf16.msra.mxu0 %v511
        %618 = vmatpush.bf16.msra.mxu0 %v510
        %619 = vmatpush.bf16.msra.mxu0 %v509
        %620 = vmatpush.bf16.msra.mxu0 %v508
        %621 = vmatpush.bf16.msra.mxu0 %v507
        %622 = vmatpush.bf16.msra.mxu0 %v506
        %623 = vmatpush.bf16.msra.mxu0 %v505
        %624 = vmatpush.bf16.msra.mxu0 %v504
        %625 = vmatmul.bf16.gmra.mxu0 %v365
        %v626 = vpop.f32.mrf.mxu0
        %v627 = vadd.f32 %v538, %v626
        %v628 = vpop.f32.mrf.mxu0
        %v629 = vadd.f32 %v540, %v628
        %630 = vmatmul.bf16.gmra.mxu0 %v367
        %v631 = vpop.f32.mrf.mxu0
        %v632 = vadd.f32 %v543, %v631
        %v633 = vpop.f32.mrf.mxu0
        %v634 = vadd.f32 %v545, %v633
        %635 = vmatmul.bf16.gmra.mxu0 %v369
        %v636 = vpop.f32.mrf.mxu0
        %v637 = vadd.f32 %v548, %v636
        %v638 = vpop.f32.mrf.mxu0
        %v639 = vadd.f32 %v550, %v638
        %640 = vmatmul.bf16.gmra.mxu0 %v371
        %v641 = vpop.f32.mrf.mxu0
        %v642 = vadd.f32 %v553, %v641
        %v643 = vpop.f32.mrf.mxu0
        %v644 = vadd.f32 %v555, %v643
        %645 = vmatmul.bf16.gmra.mxu0 %v373
        %v646 = vpop.f32.mrf.mxu0
        %v647 = vadd.f32 %v558, %v646
        %v648 = vpop.f32.mrf.mxu0
        %v649 = vadd.f32 %v560, %v648
        %650 = vmatmul.bf16.gmra.mxu0 %v375
        %v651 = vpop.f32.mrf.mxu0
        %v652 = vadd.f32 %v563, %v651
        %v653 = vpop.f32.mrf.mxu0
        %v654 = vadd.f32 %v565, %v653
        %655 = vmatmul.bf16.gmra.mxu0 %v377
        %v656 = vpop.f32.mrf.mxu0
        %v657 = vadd.f32 %v568, %v656
        %v658 = vpop.f32.mrf.mxu0
        %v659 = vadd.f32 %v570, %v658
        %660 = vmatmul.bf16.gmra.mxu0 %v379
        %v661 = vpop.f32.mrf.mxu0
        %v662 = vadd.f32 %v573, %v661
        %v663 = vpop.f32.mrf.mxu0
        %v664 = vadd.f32 %v575, %v663
        %665 = vmatmul.bf16.gmra.mxu0 %v381
        %v666 = vpop.f32.mrf.mxu0
        %v667 = vadd.f32 %v578, %v666
        %v668 = vpop.f32.mrf.mxu0
        %v669 = vadd.f32 %v580, %v668
        %670 = vmatmul.bf16.gmra.mxu0 %v383
        %v671 = vpop.f32.mrf.mxu0
        %v672 = vadd.f32 %v583, %v671
        %v673 = vpop.f32.mrf.mxu0
        %v674 = vadd.f32 %v585, %v673
        %675 = vmatmul.bf16.gmra.mxu0 %v385
        %v676 = vpop.f32.mrf.mxu0
        %v677 = vadd.f32 %v588, %v676
        %v678 = vpop.f32.mrf.mxu0
        %v679 = vadd.f32 %v590, %v678
        %680 = vmatmul.bf16.gmra.mxu0 %v387
        %v681 = vpop.f32.mrf.mxu0
        %v682 = vadd.f32 %v593, %v681
        %v683 = vpop.f32.mrf.mxu0
        %v684 = vadd.f32 %v595, %v683
        %685 = vmatmul.bf16.gmra.mxu0 %v389
        %v686 = vpop.f32.mrf.mxu0
        %v687 = vadd.f32 %v598, %v686
        %v688 = vpop.f32.mrf.mxu0
        %v689 = vadd.f32 %v600, %v688
        %690 = vmatmul.bf16.gmra.mxu0 %v391
        %v691 = vpop.f32.mrf.mxu0
        %v692 = vadd.f32 %v603, %v691
        %v693 = vpop.f32.mrf.mxu0
        %v694 = vadd.f32 %v605, %v693
        %695 = vmatmul.bf16.gmra.mxu0 %v393
        %v696 = vpop.f32.mrf.mxu0
        %v697 = vadd.f32 %v608, %v696
        %v698 = vpop.f32.mrf.mxu0
        %v699 = vadd.f32 %v610, %v698
        %700 = vmatmul.bf16.gmra.mxu0 %v395
        %v701 = vpop.f32.mrf.mxu0
        %v702 = vadd.f32 %v613, %v701
        %v703 = vpop.f32.mrf.mxu0
        %v704 = vadd.f32 %v615, %v703
        %705 = vdwg.mxu0
        %v706 = vmax.f32 %v627, 0.0
        %v707 = vmax.f32 %v629, 0.0
        %v708 = vmax.f32 %v632, 0.0
        %v709 = vmax.f32 %v634, 0.0
        %v710 = vmax.f32 %v637, 0.0
        %v711 = vmax.f32 %v639, 0.0
        %v712 = vmax.f32 %v642, 0.0
        %v713 = vmax.f32 %v644, 0.0
        %v714 = vmax.f32 %v647, 0.0
        %v715 = vmax.f32 %v649, 0.0
        %v716 = vmax.f32 %v652, 0.0
        %v717 = vmax.f32 %v654, 0.0
        %v718 = vmax.f32 %v657, 0.0
        %v719 = vmax.f32 %v659, 0.0
        %v720 = vmax.f32 %v662, 0.0
        %v721 = vmax.f32 %v664, 0.0
        %v722 = vmax.f32 %v667, 0.0
        %v723 = vmax.f32 %v669, 0.0
        %v724 = vmax.f32 %v672, 0.0
        %v725 = vmax.f32 %v674, 0.0
        %v726 = vmax.f32 %v677, 0.0
        %v727 = vmax.f32 %v679, 0.0
        %v728 = vmax.f32 %v682, 0.0
        %v729 = vmax.f32 %v684, 0.0
        %v730 = vmax.f32 %v687, 0.0
        %v731 = vmax.f32 %v689, 0.0
        %v732 = vmax.f32 %v692, 0.0
        %v733 = vmax.f32 %v694, 0.0
        %v734 = vmax.f32 %v697, 0.0
        %v735 = vmax.f32 %v699, 0.0
        %v736 = vmax.f32 %v702, 0.0
        %v737 = vmax.f32 %v704, 0.0
        %vm738 = vcmask 519168
        %739 = vst.msk [vmem:[#allocation2] sm:$0xf] %vm738, 0
        %740 = vst.msk [vmem:[#allocation2 + $0x4] sm:$0xf] %vm738, 0
        %vm741 = vcmask 516096
        %742 = vst.msk [vmem:[#allocation2 + $0x8] sm:$0x1] %vm741, 0
        %s743 = scalar_lea.vmem [#allocation2], 204
        %744 = vst.msk [vmem:[%s743] sm:$0xf] %vm738, 0
        %745 = vst.msk [vmem:[%s743 + $0x4] sm:$0xf] %vm738, 0
        %746 = vst.msk [vmem:[%s743 + $0x8] sm:$0x1] %vm741, 0
        %s747 = scalar_lea.vmem [#allocation2], 12
        %vm748 = vcmask 516096
        %vm749 = vsmask.f32 256
        %vm750 = vmand %vm748, %vm749
        %v751 = vld [vmem:[%s747] sm:$0x1]
        %v752 = vsel %vm750, 0, %v751
        %753 = vst [vmem:[%s747] sm:$0x1] %v752
        %v754 = vld [vmem:[%s747 + $0xc] sm:$0x1]
        %v755 = vsel %vm750, 0, %v754
        %756 = vst [vmem:[%s747 + $0xc] sm:$0x1] %v755
        %v757 = vld [vmem:[%s747 + $0x18] sm:$0x1]
        %v758 = vsel %vm750, 0, %v757
        %759 = vst [vmem:[%s747 + $0x18] sm:$0x1] %v758
        %v760 = vld [vmem:[%s747 + $0x24] sm:$0x1]
        %v761 = vsel %vm750, 0, %v760
        %762 = vst [vmem:[%s747 + $0x24] sm:$0x1] %v761
        %v763 = vld [vmem:[%s747 + $0x30] sm:$0x1]
        %v764 = vsel %vm750, 0, %v763
        %765 = vst [vmem:[%s747 + $0x30] sm:$0x1] %v764
        %v766 = vld [vmem:[%s747 + $0x3c] sm:$0x1]
        %v767 = vsel %vm750, 0, %v766
        %768 = vst [vmem:[%s747 + $0x3c] sm:$0x1] %v767
        %v769 = vld [vmem:[%s747 + $0x48] sm:$0x1]
        %v770 = vsel %vm750, 0, %v769
        %771 = vst [vmem:[%s747 + $0x48] sm:$0x1] %v770
        %v772 = vld [vmem:[%s747 + $0x54] sm:$0x1]
        %v773 = vsel %vm750, 0, %v772
        %774 = vst [vmem:[%s747 + $0x54] sm:$0x1] %v773
        %v775 = vld [vmem:[%s747 + $0x60] sm:$0x1]
        %v776 = vsel %vm750, 0, %v775
        %777 = vst [vmem:[%s747 + $0x60] sm:$0x1] %v776
        %v778 = vld [vmem:[%s747 + $0x6c] sm:$0x1]
        %v779 = vsel %vm750, 0, %v778
        %780 = vst [vmem:[%s747 + $0x6c] sm:$0x1] %v779
        %v781 = vld [vmem:[%s747 + $0x78] sm:$0x1]
        %v782 = vsel %vm750, 0, %v781
        %783 = vst [vmem:[%s747 + $0x78] sm:$0x1] %v782
        %v784 = vld [vmem:[%s747 + $0x84] sm:$0x1]
        %v785 = vsel %vm750, 0, %v784
        %786 = vst [vmem:[%s747 + $0x84] sm:$0x1] %v785
        %v787 = vld [vmem:[%s747 + $0x90] sm:$0x1]
        %v788 = vsel %vm750, 0, %v787
        %789 = vst [vmem:[%s747 + $0x90] sm:$0x1] %v788
        %v790 = vld [vmem:[%s747 + $0x9c] sm:$0x1]
        %v791 = vsel %vm750, 0, %v790
        %792 = vst [vmem:[%s747 + $0x9c] sm:$0x1] %v791
        %v793 = vld [vmem:[%s747 + $0xa8] sm:$0x1]
        %v794 = vsel %vm750, 0, %v793
        %795 = vst [vmem:[%s747 + $0xa8] sm:$0x1] %v794
        %v796 = vld [vmem:[%s747 + $0xb4] sm:$0x1]
        %v797 = vsel %vm750, 0, %v796
        %798 = vst [vmem:[%s747 + $0xb4] sm:$0x1] %v797
        %vm799 = vsmask.f32 7938
        %vm800 = vmand %vm748, %vm799
        %v801 = vld [vmem:[%s747 + $0x8] sm:$0x1]
        %v802 = vsel %vm800, 0, %v801
        %803 = vst [vmem:[%s747 + $0x8] sm:$0x1] %v802
        %v804 = vld [vmem:[%s747 + $0x14] sm:$0x1]
        %v805 = vsel %vm800, 0, %v804
        %806 = vst [vmem:[%s747 + $0x14] sm:$0x1] %v805
        %v807 = vld [vmem:[%s747 + $0x20] sm:$0x1]
        %v808 = vsel %vm800, 0, %v807
        %809 = vst [vmem:[%s747 + $0x20] sm:$0x1] %v808
        %v810 = vld [vmem:[%s747 + $0x2c] sm:$0x1]
        %v811 = vsel %vm800, 0, %v810
        %812 = vst [vmem:[%s747 + $0x2c] sm:$0x1] %v811
        %v813 = vld [vmem:[%s747 + $0x38] sm:$0x1]
        %v814 = vsel %vm800, 0, %v813
        %815 = vst [vmem:[%s747 + $0x38] sm:$0x1] %v814
        %v816 = vld [vmem:[%s747 + $0x44] sm:$0x1]
        %v817 = vsel %vm800, 0, %v816
        %818 = vst [vmem:[%s747 + $0x44] sm:$0x1] %v817
        %v819 = vld [vmem:[%s747 + $0x50] sm:$0x1]
        %v820 = vsel %vm800, 0, %v819
        %821 = vst [vmem:[%s747 + $0x50] sm:$0x1] %v820
        %v822 = vld [vmem:[%s747 + $0x5c] sm:$0x1]
        %v823 = vsel %vm800, 0, %v822
        %824 = vst [vmem:[%s747 + $0x5c] sm:$0x1] %v823
        %v825 = vld [vmem:[%s747 + $0x68] sm:$0x1]
        %v826 = vsel %vm800, 0, %v825
        %827 = vst [vmem:[%s747 + $0x68] sm:$0x1] %v826
        %v828 = vld [vmem:[%s747 + $0x74] sm:$0x1]
        %v829 = vsel %vm800, 0, %v828
        %830 = vst [vmem:[%s747 + $0x74] sm:$0x1] %v829
        %v831 = vld [vmem:[%s747 + $0x80] sm:$0x1]
        %v832 = vsel %vm800, 0, %v831
        %833 = vst [vmem:[%s747 + $0x80] sm:$0x1] %v832
        %v834 = vld [vmem:[%s747 + $0x8c] sm:$0x1]
        %v835 = vsel %vm800, 0, %v834
        %836 = vst [vmem:[%s747 + $0x8c] sm:$0x1] %v835
        %v837 = vld [vmem:[%s747 + $0x98] sm:$0x1]
        %v838 = vsel %vm800, 0, %v837
        %839 = vst [vmem:[%s747 + $0x98] sm:$0x1] %v838
        %v840 = vld [vmem:[%s747 + $0xa4] sm:$0x1]
        %v841 = vsel %vm800, 0, %v840
        %842 = vst [vmem:[%s747 + $0xa4] sm:$0x1] %v841
        %v843 = vld [vmem:[%s747 + $0xb0] sm:$0x1]
        %v844 = vsel %vm800, 0, %v843
        %845 = vst [vmem:[%s747 + $0xb0] sm:$0x1] %v844
        %v846 = vld [vmem:[%s747 + $0xbc] sm:$0x1]
        %v847 = vsel %vm800, 0, %v846
        %848 = vst [vmem:[%s747 + $0xbc] sm:$0x1] %v847
        %v849 = vpack.c.bf16 %v706, %v706
        %v850 = vpack.c.bf16 %v707, %v707
        %v851 = vpack.c.bf16 %v708, %v708
        %v852 = vpack.c.bf16 %v709, %v709
        %v853 = vpack.c.bf16 %v710, %v710
        %v854 = vpack.c.bf16 %v711, %v711
        %v855 = vpack.c.bf16 %v712, %v712
        %v856 = vpack.c.bf16 %v713, %v713
        %v857 = vpack.c.bf16 %v714, %v714
        %v858 = vpack.c.bf16 %v715, %v715
        %v859 = vpack.c.bf16 %v716, %v716
        %v860 = vpack.c.bf16 %v717, %v717
        %v861 = vpack.c.bf16 %v718, %v718
        %v862 = vpack.c.bf16 %v719, %v719
        %v863 = vpack.c.bf16 %v720, %v720
        %v864 = vpack.c.bf16 %v721, %v721
        %v865 = vpack.c.bf16 %v722, %v722
        %v866 = vpack.c.bf16 %v723, %v723
        %v867 = vpack.c.bf16 %v724, %v724
        %v868 = vpack.c.bf16 %v725, %v725
        %v869 = vpack.c.bf16 %v726, %v726
        %v870 = vpack.c.bf16 %v727, %v727
        %v871 = vpack.c.bf16 %v728, %v728
        %v872 = vpack.c.bf16 %v729, %v729
        %v873 = vpack.c.bf16 %v730, %v730
        %v874 = vpack.c.bf16 %v731, %v731
        %v875 = vpack.c.bf16 %v732, %v732
        %v876 = vpack.c.bf16 %v733, %v733
        %v877 = vpack.c.bf16 %v734, %v734
        %v878 = vpack.c.bf16 %v735, %v735
        %v879 = vpack.c.bf16 %v736, %v736
        %v880 = vpack.c.bf16 %v737, %v737
        %vm881 = vsmask.f32 4368
        %vm882 = vmor %vm749, %vm881
        %v884 = vshrl.u32 %v849, 16
        %v886 = vrot.slane %v884, 7
        %v887 = vshll.u32 %v849, 16
        %v889 = vor.u32 %v886, %v887
        %v890 = vrot.slane %v886, 4
        %v892 = vshrl.u32 %v850, 16
        %v894 = vrot.slane %v892, 7
        %v895 = vshll.u32 %v850, 16
        %v897 = vor.u32 %v894, %v895
        %v898 = vsel %vm882, %v890, %v897
        %v899 = vrot.slane %v894, 4
        %v901 = vshrl.u32 %v851, 16
        %v903 = vrot.slane %v901, 7
        %v904 = vshll.u32 %v851, 16
        %v906 = vor.u32 %v903, %v904
        %v907 = vrot.slane %v903, 4
        %v909 = vshrl.u32 %v852, 16
        %v911 = vrot.slane %v909, 7
        %v912 = vshll.u32 %v852, 16
        %v914 = vor.u32 %v911, %v912
        %v915 = vsel %vm882, %v907, %v914
        %v916 = vrot.slane %v911, 4
        %v918 = vshrl.u32 %v853, 16
        %v920 = vrot.slane %v918, 7
        %v921 = vshll.u32 %v853, 16
        %v923 = vor.u32 %v920, %v921
        %v924 = vrot.slane %v920, 4
        %v926 = vshrl.u32 %v854, 16
        %v928 = vrot.slane %v926, 7
        %v929 = vshll.u32 %v854, 16
        %v931 = vor.u32 %v928, %v929
        %v932 = vsel %vm882, %v924, %v931
        %v933 = vrot.slane %v928, 4
        %v935 = vshrl.u32 %v855, 16
        %v937 = vrot.slane %v935, 7
        %v938 = vshll.u32 %v855, 16
        %v940 = vor.u32 %v937, %v938
        %v941 = vrot.slane %v937, 4
        %v943 = vshrl.u32 %v856, 16
        %v945 = vrot.slane %v943, 7
        %v946 = vshll.u32 %v856, 16
        %v948 = vor.u32 %v945, %v946
        %v949 = vsel %vm882, %v941, %v948
        %v950 = vrot.slane %v945, 4
        %v952 = vshrl.u32 %v857, 16
        %v954 = vrot.slane %v952, 7
        %v955 = vshll.u32 %v857, 16
        %v957 = vor.u32 %v954, %v955
        %v958 = vrot.slane %v954, 4
        %v960 = vshrl.u32 %v858, 16
        %v962 = vrot.slane %v960, 7
        %v963 = vshll.u32 %v858, 16
        %v965 = vor.u32 %v962, %v963
        %v966 = vsel %vm882, %v958, %v965
        %v967 = vrot.slane %v962, 4
        %v969 = vshrl.u32 %v859, 16
        %v971 = vrot.slane %v969, 7
        %v972 = vshll.u32 %v859, 16
        %v974 = vor.u32 %v971, %v972
        %v975 = vrot.slane %v971, 4
        %v977 = vshrl.u32 %v860, 16
        %v979 = vrot.slane %v977, 7
        %v980 = vshll.u32 %v860, 16
        %v982 = vor.u32 %v979, %v980
        %v983 = vsel %vm882, %v975, %v982
        %v984 = vrot.slane %v979, 4
        %v986 = vshrl.u32 %v861, 16
        %v988 = vrot.slane %v986, 7
        %v989 = vshll.u32 %v861, 16
        %v991 = vor.u32 %v988, %v989
        %v992 = vrot.slane %v988, 4
        %v994 = vshrl.u32 %v862, 16
        %v996 = vrot.slane %v994, 7
        %v997 = vshll.u32 %v862, 16
        %v999 = vor.u32 %v996, %v997
        %v1000 = vsel %vm882, %v992, %v999
        %v1001 = vrot.slane %v996, 4
        %v1003 = vshrl.u32 %v863, 16
        %v1005 = vrot.slane %v1003, 7
        %v1006 = vshll.u32 %v863, 16
        %v1008 = vor.u32 %v1005, %v1006
        %v1009 = vrot.slane %v1005, 4
        %v1011 = vshrl.u32 %v864, 16
        %v1013 = vrot.slane %v1011, 7
        %v1014 = vshll.u32 %v864, 16
        %v1016 = vor.u32 %v1013, %v1014
        %v1017 = vsel %vm882, %v1009, %v1016
        %v1018 = vrot.slane %v1013, 4
        %v1020 = vshrl.u32 %v865, 16
        %v1022 = vrot.slane %v1020, 7
        %v1023 = vshll.u32 %v865, 16
        %v1025 = vor.u32 %v1022, %v1023
        %v1026 = vrot.slane %v1022, 4
        %v1028 = vshrl.u32 %v866, 16
        %v1030 = vrot.slane %v1028, 7
        %v1031 = vshll.u32 %v866, 16
        %v1033 = vor.u32 %v1030, %v1031
        %v1034 = vsel %vm882, %v1026, %v1033
        %v1035 = vrot.slane %v1030, 4
        %v1037 = vshrl.u32 %v867, 16
        %v1039 = vrot.slane %v1037, 7
        %v1040 = vshll.u32 %v867, 16
        %v1042 = vor.u32 %v1039, %v1040
        %v1043 = vrot.slane %v1039, 4
        %v1045 = vshrl.u32 %v868, 16
        %v1047 = vrot.slane %v1045, 7
        %v1048 = vshll.u32 %v868, 16
        %v1050 = vor.u32 %v1047, %v1048
        %v1051 = vsel %vm882, %v1043, %v1050
        %v1052 = vrot.slane %v1047, 4
        %v1054 = vshrl.u32 %v869, 16
        %v1056 = vrot.slane %v1054, 7
        %v1057 = vshll.u32 %v869, 16
        %v1059 = vor.u32 %v1056, %v1057
        %v1060 = vrot.slane %v1056, 4
        %v1062 = vshrl.u32 %v870, 16
        %v1064 = vrot.slane %v1062, 7
        %v1065 = vshll.u32 %v870, 16
        %v1067 = vor.u32 %v1064, %v1065
        %v1068 = vsel %vm882, %v1060, %v1067
        %v1069 = vrot.slane %v1064, 4
        %v1071 = vshrl.u32 %v871, 16
        %v1073 = vrot.slane %v1071, 7
        %v1074 = vshll.u32 %v871, 16
        %v1076 = vor.u32 %v1073, %v1074
        %v1077 = vrot.slane %v1073, 4
        %v1079 = vshrl.u32 %v872, 16
        %v1081 = vrot.slane %v1079, 7
        %v1082 = vshll.u32 %v872, 16
        %v1084 = vor.u32 %v1081, %v1082
        %v1085 = vsel %vm882, %v1077, %v1084
        %v1086 = vrot.slane %v1081, 4
        %v1088 = vshrl.u32 %v873, 16
        %v1090 = vrot.slane %v1088, 7
        %v1091 = vshll.u32 %v873, 16
        %v1093 = vor.u32 %v1090, %v1091
        %v1094 = vrot.slane %v1090, 4
        %v1096 = vshrl.u32 %v874, 16
        %v1098 = vrot.slane %v1096, 7
        %v1099 = vshll.u32 %v874, 16
        %v1101 = vor.u32 %v1098, %v1099
        %v1102 = vsel %vm882, %v1094, %v1101
        %v1103 = vrot.slane %v1098, 4
        %v1105 = vshrl.u32 %v875, 16
        %v1107 = vrot.slane %v1105, 7
        %v1108 = vshll.u32 %v875, 16
        %v1110 = vor.u32 %v1107, %v1108
        %v1111 = vrot.slane %v1107, 4
        %v1113 = vshrl.u32 %v876, 16
        %v1115 = vrot.slane %v1113, 7
        %v1116 = vshll.u32 %v876, 16
        %v1118 = vor.u32 %v1115, %v1116
        %v1119 = vsel %vm882, %v1111, %v1118
        %v1120 = vrot.slane %v1115, 4
        %v1122 = vshrl.u32 %v877, 16
        %v1124 = vrot.slane %v1122, 7
        %v1125 = vshll.u32 %v877, 16
        %v1127 = vor.u32 %v1124, %v1125
        %v1128 = vrot.slane %v1124, 4
        %v1130 = vshrl.u32 %v878, 16
        %v1132 = vrot.slane %v1130, 7
        %v1133 = vshll.u32 %v878, 16
        %v1135 = vor.u32 %v1132, %v1133
        %v1136 = vsel %vm882, %v1128, %v1135
        %v1137 = vrot.slane %v1132, 4
        %v1139 = vshrl.u32 %v879, 16
        %v1141 = vrot.slane %v1139, 7
        %v1142 = vshll.u32 %v879, 16
        %v1144 = vor.u32 %v1141, %v1142
        %v1145 = vrot.slane %v1141, 4
        %v1147 = vshrl.u32 %v880, 16
        %v1149 = vrot.slane %v1147, 7
        %v1150 = vshll.u32 %v880, 16
        %v1152 = vor.u32 %v1149, %v1150
        %v1153 = vsel %vm882, %v1145, %v1152
        %v1154 = vrot.slane %v1149, 4
        %vm1203 = vcmask 519168
        %vm1204 = vmand %vm1203, %vm799
        %v1205 = vld [vmem:[%s747] sm:$0xf]
        %v1206 = vsel %vm1204, %v889, %v1205
        %1207 = vst [vmem:[%s747] sm:$0xf] %v1206
        %1208 = vst.msk [vmem:[%s747 + $0x4] sm:$0xf] %vm738, %v898
        %v1209 = vld [vmem:[%s747 + $0x8] sm:$0x1]
        %v1210 = vsel %vm750, %v899, %v1209
        %1211 = vst [vmem:[%s747 + $0x8] sm:$0x1] %v1210
        %v1212 = vld [vmem:[%s747 + $0xc] sm:$0xf]
        %v1213 = vsel %vm1204, %v906, %v1212
        %1214 = vst [vmem:[%s747 + $0xc] sm:$0xf] %v1213
        %1215 = vst.msk [vmem:[%s747 + $0x10] sm:$0xf] %vm738, %v915
        %v1216 = vld [vmem:[%s747 + $0x14] sm:$0x1]
        %v1217 = vsel %vm750, %v916, %v1216
        %1218 = vst [vmem:[%s747 + $0x14] sm:$0x1] %v1217
        %v1219 = vld [vmem:[%s747 + $0x18] sm:$0xf]
        %v1220 = vsel %vm1204, %v923, %v1219
        %1221 = vst [vmem:[%s747 + $0x18] sm:$0xf] %v1220
        %1222 = vst.msk [vmem:[%s747 + $0x1c] sm:$0xf] %vm738, %v932
        %v1223 = vld [vmem:[%s747 + $0x20] sm:$0x1]
        %v1224 = vsel %vm750, %v933, %v1223
        %1225 = vst [vmem:[%s747 + $0x20] sm:$0x1] %v1224
        %v1226 = vld [vmem:[%s747 + $0x24] sm:$0xf]
        %v1227 = vsel %vm1204, %v940, %v1226
        %1228 = vst [vmem:[%s747 + $0x24] sm:$0xf] %v1227
        %1229 = vst.msk [vmem:[%s747 + $0x28] sm:$0xf] %vm738, %v949
        %v1230 = vld [vmem:[%s747 + $0x2c] sm:$0x1]
        %v1231 = vsel %vm750, %v950, %v1230
        %1232 = vst [vmem:[%s747 + $0x2c] sm:$0x1] %v1231
        %v1233 = vld [vmem:[%s747 + $0x30] sm:$0xf]
        %v1234 = vsel %vm1204, %v957, %v1233
        %1235 = vst [vmem:[%s747 + $0x30] sm:$0xf] %v1234
        %1236 = vst.msk [vmem:[%s747 + $0x34] sm:$0xf] %vm738, %v966
        %v1237 = vld [vmem:[%s747 + $0x38] sm:$0x1]
        %v1238 = vsel %vm750, %v967, %v1237
        %1239 = vst [vmem:[%s747 + $0x38] sm:$0x1] %v1238
        %v1240 = vld [vmem:[%s747 + $0x3c] sm:$0xf]
        %v1241 = vsel %vm1204, %v974, %v1240
        %1242 = vst [vmem:[%s747 + $0x3c] sm:$0xf] %v1241
        %1243 = vst.msk [vmem:[%s747 + $0x40] sm:$0xf] %vm738, %v983
        %v1244 = vld [vmem:[%s747 + $0x44] sm:$0x1]
        %v1245 = vsel %vm750, %v984, %v1244
        %1246 = vst [vmem:[%s747 + $0x44] sm:$0x1] %v1245
        %v1247 = vld [vmem:[%s747 + $0x48] sm:$0xf]
        %v1248 = vsel %vm1204, %v991, %v1247
        %1249 = vst [vmem:[%s747 + $0x48] sm:$0xf] %v1248
        %1250 = vst.msk [vmem:[%s747 + $0x4c] sm:$0xf] %vm738, %v1000
        %v1251 = vld [vmem:[%s747 + $0x50] sm:$0x1]
        %v1252 = vsel %vm750, %v1001, %v1251
        %1253 = vst [vmem:[%s747 + $0x50] sm:$0x1] %v1252
        %v1254 = vld [vmem:[%s747 + $0x54] sm:$0xf]
        %v1255 = vsel %vm1204, %v1008, %v1254
        %1256 = vst [vmem:[%s747 + $0x54] sm:$0xf] %v1255
        %1257 = vst.msk [vmem:[%s747 + $0x58] sm:$0xf] %vm738, %v1017
        %v1258 = vld [vmem:[%s747 + $0x5c] sm:$0x1]
        %v1259 = vsel %vm750, %v1018, %v1258
        %1260 = vst [vmem:[%s747 + $0x5c] sm:$0x1] %v1259
        %v1261 = vld [vmem:[%s747 + $0x60] sm:$0xf]
        %v1262 = vsel %vm1204, %v1025, %v1261
        %1263 = vst [vmem:[%s747 + $0x60] sm:$0xf] %v1262
        %1264 = vst.msk [vmem:[%s747 + $0x64] sm:$0xf] %vm738, %v1034
        %v1265 = vld [vmem:[%s747 + $0x68] sm:$0x1]
        %v1266 = vsel %vm750, %v1035, %v1265
        %1267 = vst [vmem:[%s747 + $0x68] sm:$0x1] %v1266
        %v1268 = vld [vmem:[%s747 + $0x6c] sm:$0xf]
        %v1269 = vsel %vm1204, %v1042, %v1268
        %1270 = vst [vmem:[%s747 + $0x6c] sm:$0xf] %v1269
        %1271 = vst.msk [vmem:[%s747 + $0x70] sm:$0xf] %vm738, %v1051
        %v1272 = vld [vmem:[%s747 + $0x74] sm:$0x1]
        %v1273 = vsel %vm750, %v1052, %v1272
        %1274 = vst [vmem:[%s747 + $0x74] sm:$0x1] %v1273
        %v1275 = vld [vmem:[%s747 + $0x78] sm:$0xf]
        %v1276 = vsel %vm1204, %v1059, %v1275
        %1277 = vst [vmem:[%s747 + $0x78] sm:$0xf] %v1276
        %1278 = vst.msk [vmem:[%s747 + $0x7c] sm:$0xf] %vm738, %v1068
        %v1279 = vld [vmem:[%s747 + $0x80] sm:$0x1]
        %v1280 = vsel %vm750, %v1069, %v1279
        %1281 = vst [vmem:[%s747 + $0x80] sm:$0x1] %v1280
        %v1282 = vld [vmem:[%s747 + $0x84] sm:$0xf]
        %v1283 = vsel %vm1204, %v1076, %v1282
        %1284 = vst [vmem:[%s747 + $0x84] sm:$0xf] %v1283
        %1285 = vst.msk [vmem:[%s747 + $0x88] sm:$0xf] %vm738, %v1085
        %v1286 = vld [vmem:[%s747 + $0x8c] sm:$0x1]
        %v1287 = vsel %vm750, %v1086, %v1286
        %1288 = vst [vmem:[%s747 + $0x8c] sm:$0x1] %v1287
        %v1289 = vld [vmem:[%s747 + $0x90] sm:$0xf]
        %v1290 = vsel %vm1204, %v1093, %v1289
        %1291 = vst [vmem:[%s747 + $0x90] sm:$0xf] %v1290
        %1292 = vst.msk [vmem:[%s747 + $0x94] sm:$0xf] %vm738, %v1102
        %v1293 = vld [vmem:[%s747 + $0x98] sm:$0x1]
        %v1294 = vsel %vm750, %v1103, %v1293
        %1295 = vst [vmem:[%s747 + $0x98] sm:$0x1] %v1294
        %v1296 = vld [vmem:[%s747 + $0x9c] sm:$0xf]
        %v1297 = vsel %vm1204, %v1110, %v1296
        %1298 = vst [vmem:[%s747 + $0x9c] sm:$0xf] %v1297
        %1299 = vst.msk [vmem:[%s747 + $0xa0] sm:$0xf] %vm738, %v1119
        %v1300 = vld [vmem:[%s747 + $0xa4] sm:$0x1]
        %v1301 = vsel %vm750, %v1120, %v1300
        %1302 = vst [vmem:[%s747 + $0xa4] sm:$0x1] %v1301
        %v1303 = vld [vmem:[%s747 + $0xa8] sm:$0xf]
        %v1304 = vsel %vm1204, %v1127, %v1303
        %1305 = vst [vmem:[%s747 + $0xa8] sm:$0xf] %v1304
        %1306 = vst.msk [vmem:[%s747 + $0xac] sm:$0xf] %vm738, %v1136
        %v1307 = vld [vmem:[%s747 + $0xb0] sm:$0x1]
        %v1308 = vsel %vm750, %v1137, %v1307
        %1309 = vst [vmem:[%s747 + $0xb0] sm:$0x1] %v1308
        %v1310 = vld [vmem:[%s747 + $0xb4] sm:$0xf]
        %v1311 = vsel %vm1204, %v1144, %v1310
        %1312 = vst [vmem:[%s747 + $0xb4] sm:$0xf] %v1311
        %1313 = vst.msk [vmem:[%s747 + $0xb8] sm:$0xf] %vm738, %v1153
        %v1314 = vld [vmem:[%s747 + $0xbc] sm:$0x1]
        %v1315 = vsel %vm750, %v1154, %v1314
        %1316 = vst [vmem:[%s747 + $0xbc] sm:$0x1] %v1315
        %v1317 = vld [vmem:[#allocation2] sm:$0xf]
        %v1318 = vld [vmem:[#allocation2 + $0x4] sm:$0xf]
        %v1319 = vld [vmem:[#allocation2 + $0xc] sm:$0xf]
        %v1320 = vld [vmem:[#allocation2 + $0x10] sm:$0xf]
        %v1321 = vld [vmem:[#allocation2 + $0x18] sm:$0xf]
        %v1322 = vld [vmem:[#allocation2 + $0x1c] sm:$0xf]
        %v1323 = vld [vmem:[#allocation2 + $0x24] sm:$0xf]
        %v1324 = vld [vmem:[#allocation2 + $0x28] sm:$0xf]
        %v1325 = vld [vmem:[#allocation2 + $0x30] sm:$0xf]
        %v1326 = vld [vmem:[#allocation2 + $0x34] sm:$0xf]
        %v1327 = vld [vmem:[#allocation2 + $0x3c] sm:$0xf]
        %v1328 = vld [vmem:[#allocation2 + $0x40] sm:$0xf]
        %v1329 = vld [vmem:[#allocation2 + $0x48] sm:$0xf]
        %v1330 = vld [vmem:[#allocation2 + $0x4c] sm:$0xf]
        %v1331 = vld [vmem:[#allocation2 + $0x54] sm:$0xf]
        %v1332 = vld [vmem:[#allocation2 + $0x58] sm:$0xf]
        %v1333 = vld [vmem:[#allocation2 + $0x60] sm:$0xf]
        %v1334 = vld [vmem:[#allocation2 + $0x64] sm:$0xf]
        %v1335 = vld [vmem:[#allocation2 + $0x6c] sm:$0xf]
        %v1336 = vld [vmem:[#allocation2 + $0x70] sm:$0xf]
        %v1337 = vld [vmem:[#allocation2 + $0x78] sm:$0xf]
        %v1338 = vld [vmem:[#allocation2 + $0x7c] sm:$0xf]
        %v1339 = vld [vmem:[#allocation2 + $0x84] sm:$0xf]
        %v1340 = vld [vmem:[#allocation2 + $0x88] sm:$0xf]
        %v1341 = vld [vmem:[#allocation2 + $0x90] sm:$0xf]
        %v1342 = vld [vmem:[#allocation2 + $0x94] sm:$0xf]
        %v1343 = vld [vmem:[#allocation2 + $0x9c] sm:$0xf]
        %v1344 = vld [vmem:[#allocation2 + $0xa0] sm:$0xf]
        %v1345 = vld [vmem:[#allocation2 + $0xa8] sm:$0xf]
        %v1346 = vld [vmem:[#allocation2 + $0xac] sm:$0xf]
        %v1347 = vld [vmem:[#allocation2 + $0xb4] sm:$0xf]
        %v1348 = vld [vmem:[#allocation2 + $0xb8] sm:$0xf]
        %1349 = vst.msk [vmem:[#allocation3] sm:$0xf] %vm738, %v1317
        %1350 = vst.msk [vmem:[#allocation3 + $0x14] sm:$0xf] %vm738, %v1318
        %1351 = vst.msk [vmem:[#allocation3 + $0x28] sm:$0xf] %vm738, %v1319
        %1352 = vst.msk [vmem:[#allocation3 + $0x3c] sm:$0xf] %vm738, %v1320
        %1353 = vst.msk [vmem:[#allocation3 + $0x50] sm:$0xf] %vm738, %v1321
        %1354 = vst.msk [vmem:[#allocation3 + $0x64] sm:$0xf] %vm738, %v1322
        %1355 = vst.msk [vmem:[#allocation3 + $0x78] sm:$0xf] %vm738, %v1323
        %1356 = vst.msk [vmem:[#allocation3 + $0x8c] sm:$0xf] %vm738, %v1324
        %1357 = vst.msk [vmem:[#allocation3 + $0xa0] sm:$0xf] %vm738, %v1325
        %1358 = vst.msk [vmem:[#allocation3 + $0xb4] sm:$0xf] %vm738, %v1326
        %1359 = vst.msk [vmem:[#allocation3 + $0xc8] sm:$0xf] %vm738, %v1327
        %1360 = vst.msk [vmem:[#allocation3 + $0xdc] sm:$0xf] %vm738, %v1328
        %1361 = vst.msk [vmem:[#allocation3 + $0xf0] sm:$0xf] %vm738, %v1329
        %1362 = vst.msk [vmem:[#allocation3 + $0x104] sm:$0xf] %vm738, %v1330
        %1363 = vst.msk [vmem:[#allocation3 + $0x118] sm:$0xf] %vm738, %v1331
        %1364 = vst.msk [vmem:[#allocation3 + $0x12c] sm:$0xf] %vm738, %v1332
        %1365 = vst.msk [vmem:[#allocation3 + $0x140] sm:$0xf] %vm738, %v1333
        %1366 = vst.msk [vmem:[#allocation3 + $0x154] sm:$0xf] %vm738, %v1334
        %1367 = vst.msk [vmem:[#allocation3 + $0x168] sm:$0xf] %vm738, %v1335
        %1368 = vst.msk [vmem:[#allocation3 + $0x17c] sm:$0xf] %vm738, %v1336
        %1369 = vst.msk [vmem:[#allocation3 + $0x190] sm:$0xf] %vm738, %v1337
        %1370 = vst.msk [vmem:[#allocation3 + $0x1a4] sm:$0xf] %vm738, %v1338
        %1371 = vst.msk [vmem:[#allocation3 + $0x1b8] sm:$0xf] %vm738, %v1339
        %1372 = vst.msk [vmem:[#allocation3 + $0x1cc] sm:$0xf] %vm738, %v1340
        %1373 = vst.msk [vmem:[#allocation3 + $0x1e0] sm:$0xf] %vm738, %v1341
        %1374 = vst.msk [vmem:[#allocation3 + $0x1f4] sm:$0xf] %vm738, %v1342
        %1375 = vst.msk [vmem:[#allocation3 + $0x208] sm:$0xf] %vm738, %v1343
        %1376 = vst.msk [vmem:[#allocation3 + $0x21c] sm:$0xf] %vm738, %v1344
        %1377 = vst.msk [vmem:[#allocation3 + $0x230] sm:$0xf] %vm738, %v1345
        %1378 = vst.msk [vmem:[#allocation3 + $0x244] sm:$0xf] %vm738, %v1346
        %1379 = vst.msk [vmem:[#allocation3 + $0x258] sm:$0xf] %vm738, %v1347
        %1380 = vst.msk [vmem:[#allocation3 + $0x26c] sm:$0xf] %vm738, %v1348
        %v1381 = vld [vmem:[#allocation2] sm:$0xf]
        %v1382 = vld [vmem:[#allocation2 + $0x4] sm:$0xf]
        %v1383 = vld [vmem:[#allocation2 + $0x8] sm:$0x1]
        %v1384 = vld [vmem:[#allocation2 + $0xc] sm:$0xf]
        %v1385 = vld [vmem:[#allocation2 + $0x10] sm:$0xf]
        %v1386 = vld [vmem:[#allocation2 + $0x14] sm:$0x1]
        %v1387 = vld [vmem:[#allocation2 + $0x18] sm:$0xf]
        %v1388 = vld [vmem:[#allocation2 + $0x1c] sm:$0xf]
        %v1389 = vld [vmem:[#allocation2 + $0x20] sm:$0x1]
        %v1390 = vld [vmem:[#allocation2 + $0x24] sm:$0xf]
        %v1391 = vld [vmem:[#allocation2 + $0x28] sm:$0xf]
        %v1392 = vld [vmem:[#allocation2 + $0x2c] sm:$0x1]
        %v1393 = vld [vmem:[#allocation2 + $0x30] sm:$0xf]
        %v1394 = vld [vmem:[#allocation2 + $0x34] sm:$0xf]
        %v1395 = vld [vmem:[#allocation2 + $0x38] sm:$0x1]
        %v1396 = vld [vmem:[#allocation2 + $0x3c] sm:$0xf]
        %v1397 = vld [vmem:[#allocation2 + $0x40] sm:$0xf]
        %v1398 = vld [vmem:[#allocation2 + $0x44] sm:$0x1]
        %v1399 = vld [vmem:[#allocation2 + $0x48] sm:$0xf]
        %v1400 = vld [vmem:[#allocation2 + $0x4c] sm:$0xf]
        %v1401 = vld [vmem:[#allocation2 + $0x50] sm:$0x1]
        %v1402 = vld [vmem:[#allocation2 + $0x54] sm:$0xf]
        %v1403 = vld [vmem:[#allocation2 + $0x58] sm:$0xf]
        %v1404 = vld [vmem:[#allocation2 + $0x5c] sm:$0x1]
        %v1405 = vld [vmem:[#allocation2 + $0x60] sm:$0xf]
        %v1406 = vld [vmem:[#allocation2 + $0x64] sm:$0xf]
        %v1407 = vld [vmem:[#allocation2 + $0x68] sm:$0x1]
        %v1408 = vld [vmem:[#allocation2 + $0x6c] sm:$0xf]
        %v1409 = vld [vmem:[#allocation2 + $0x70] sm:$0xf]
        %v1410 = vld [vmem:[#allocation2 + $0x74] sm:$0x1]
        %v1411 = vld [vmem:[#allocation2 + $0x78] sm:$0xf]
        %v1412 = vld [vmem:[#allocation2 + $0x7c] sm:$0xf]
        %v1413 = vld [vmem:[#allocation2 + $0x80] sm:$0x1]
        %v1414 = vld [vmem:[#allocation2 + $0x84] sm:$0xf]
        %v1415 = vld [vmem:[#allocation2 + $0x88] sm:$0xf]
        %v1416 = vld [vmem:[#allocation2 + $0x8c] sm:$0x1]
        %v1417 = vld [vmem:[#allocation2 + $0x90] sm:$0xf]
        %v1418 = vld [vmem:[#allocation2 + $0x94] sm:$0xf]
        %v1419 = vld [vmem:[#allocation2 + $0x98] sm:$0x1]
        %v1420 = vld [vmem:[#allocation2 + $0x9c] sm:$0xf]
        %v1421 = vld [vmem:[#allocation2 + $0xa0] sm:$0xf]
        %v1422 = vld [vmem:[#allocation2 + $0xa4] sm:$0x1]
        %v1423 = vld [vmem:[#allocation2 + $0xa8] sm:$0xf]
        %v1424 = vld [vmem:[#allocation2 + $0xac] sm:$0xf]
        %v1425 = vld [vmem:[#allocation2 + $0xb0] sm:$0x1]
        %v1426 = vld [vmem:[#allocation2 + $0xb4] sm:$0xf]
        %v1427 = vld [vmem:[#allocation2 + $0xb8] sm:$0xf]
        %v1428 = vld [vmem:[#allocation2 + $0xbc] sm:$0x1]
        %vm1429 = vsmask.f32 3328
        %vm1430 = vsmask.f32 7440
        %vm1431 = vmor %vm1429, %vm1430
        %v1433 = vshrl.u32 %v1381, 16
        %v1435 = vrot.slane %v1433, 4
        %v1436 = vshll.u32 %v1381, 16
        %v1438 = vrot.slane %v1436, 5
        %v1439 = vor.u32 %v1435, %v1438
        %v1440 = vrot.slane %v1439, 4
        %v1442 = vshll.u32 %v1382, 16
        %v1444 = vrot.slane %v1442, 5
        %v1445 = vsel %vm1431, %v1440, %v1444
        %v1446 = vshrl.u32 %v1382, 16
        %v1448 = vrot.slane %v1446, 4
        %v1449 = vor.u32 %v1448, %v1444
        %v1450 = vrot.slane %v1449, 4
        %v1452 = vshll.u32 %v1383, 16
        %v1454 = vrot.slane %v1452, 5
        %v1455 = vsel %vm1431, %v1450, %v1454
        %v1457 = vshrl.u32 %v1384, 16
        %v1459 = vrot.slane %v1457, 4
        %v1460 = vshll.u32 %v1384, 16
        %v1462 = vrot.slane %v1460, 5
        %v1463 = vor.u32 %v1459, %v1462
        %v1464 = vrot.slane %v1463, 4
        %v1466 = vshll.u32 %v1385, 16
        %v1468 = vrot.slane %v1466, 5
        %v1469 = vsel %vm1431, %v1464, %v1468
        %v1470 = vshrl.u32 %v1385, 16
        %v1472 = vrot.slane %v1470, 4
        %v1473 = vor.u32 %v1472, %v1468
        %v1474 = vrot.slane %v1473, 4
        %v1476 = vshll.u32 %v1386, 16
        %v1478 = vrot.slane %v1476, 5
        %v1479 = vsel %vm1431, %v1474, %v1478
        %v1481 = vshrl.u32 %v1387, 16
        %v1483 = vrot.slane %v1481, 4
        %v1484 = vshll.u32 %v1387, 16
        %v1486 = vrot.slane %v1484, 5
        %v1487 = vor.u32 %v1483, %v1486
        %v1488 = vrot.slane %v1487, 4
        %v1490 = vshll.u32 %v1388, 16
        %v1492 = vrot.slane %v1490, 5
        %v1493 = vsel %vm1431, %v1488, %v1492
        %v1494 = vshrl.u32 %v1388, 16
        %v1496 = vrot.slane %v1494, 4
        %v1497 = vor.u32 %v1496, %v1492
        %v1498 = vrot.slane %v1497, 4
        %v1500 = vshll.u32 %v1389, 16
        %v1502 = vrot.slane %v1500, 5
        %v1503 = vsel %vm1431, %v1498, %v1502
        %v1505 = vshrl.u32 %v1390, 16
        %v1507 = vrot.slane %v1505, 4
        %v1508 = vshll.u32 %v1390, 16
        %v1510 = vrot.slane %v1508, 5
        %v1511 = vor.u32 %v1507, %v1510
        %v1512 = vrot.slane %v1511, 4
        %v1514 = vshll.u32 %v1391, 16
        %v1516 = vrot.slane %v1514, 5
        %v1517 = vsel %vm1431, %v1512, %v1516
        %v1518 = vshrl.u32 %v1391, 16
        %v1520 = vrot.slane %v1518, 4
        %v1521 = vor.u32 %v1520, %v1516
        %v1522 = vrot.slane %v1521, 4
        %v1524 = vshll.u32 %v1392, 16
        %v1526 = vrot.slane %v1524, 5
        %v1527 = vsel %vm1431, %v1522, %v1526
        %v1529 = vshrl.u32 %v1393, 16
        %v1531 = vrot.slane %v1529, 4
        %v1532 = vshll.u32 %v1393, 16
        %v1534 = vrot.slane %v1532, 5
        %v1535 = vor.u32 %v1531, %v1534
        %v1536 = vrot.slane %v1535, 4
        %v1538 = vshll.u32 %v1394, 16
        %v1540 = vrot.slane %v1538, 5
        %v1541 = vsel %vm1431, %v1536, %v1540
        %v1542 = vshrl.u32 %v1394, 16
        %v1544 = vrot.slane %v1542, 4
        %v1545 = vor.u32 %v1544, %v1540
        %v1546 = vrot.slane %v1545, 4
        %v1548 = vshll.u32 %v1395, 16
        %v1550 = vrot.slane %v1548, 5
        %v1551 = vsel %vm1431, %v1546, %v1550
        %v1553 = vshrl.u32 %v1396, 16
        %v1555 = vrot.slane %v1553, 4
        %v1556 = vshll.u32 %v1396, 16
        %v1558 = vrot.slane %v1556, 5
        %v1559 = vor.u32 %v1555, %v1558
        %v1560 = vrot.slane %v1559, 4
        %v1562 = vshll.u32 %v1397, 16
        %v1564 = vrot.slane %v1562, 5
        %v1565 = vsel %vm1431, %v1560, %v1564
        %v1566 = vshrl.u32 %v1397, 16
        %v1568 = vrot.slane %v1566, 4
        %v1569 = vor.u32 %v1568, %v1564
        %v1570 = vrot.slane %v1569, 4
        %v1572 = vshll.u32 %v1398, 16
        %v1574 = vrot.slane %v1572, 5
        %v1575 = vsel %vm1431, %v1570, %v1574
        %v1577 = vshrl.u32 %v1399, 16
        %v1579 = vrot.slane %v1577, 4
        %v1580 = vshll.u32 %v1399, 16
        %v1582 = vrot.slane %v1580, 5
        %v1583 = vor.u32 %v1579, %v1582
        %v1584 = vrot.slane %v1583, 4
        %v1586 = vshll.u32 %v1400, 16
        %v1588 = vrot.slane %v1586, 5
        %v1589 = vsel %vm1431, %v1584, %v1588
        %v1590 = vshrl.u32 %v1400, 16
        %v1592 = vrot.slane %v1590, 4
        %v1593 = vor.u32 %v1592, %v1588
        %v1594 = vrot.slane %v1593, 4
        %v1596 = vshll.u32 %v1401, 16
        %v1598 = vrot.slane %v1596, 5
        %v1599 = vsel %vm1431, %v1594, %v1598
        %v1601 = vshrl.u32 %v1402, 16
        %v1603 = vrot.slane %v1601, 4
        %v1604 = vshll.u32 %v1402, 16
        %v1606 = vrot.slane %v1604, 5
        %v1607 = vor.u32 %v1603, %v1606
        %v1608 = vrot.slane %v1607, 4
        %v1610 = vshll.u32 %v1403, 16
        %v1612 = vrot.slane %v1610, 5
        %v1613 = vsel %vm1431, %v1608, %v1612
        %v1614 = vshrl.u32 %v1403, 16
        %v1616 = vrot.slane %v1614, 4
        %v1617 = vor.u32 %v1616, %v1612
        %v1618 = vrot.slane %v1617, 4
        %v1620 = vshll.u32 %v1404, 16
        %v1622 = vrot.slane %v1620, 5
        %v1623 = vsel %vm1431, %v1618, %v1622
        %v1625 = vshrl.u32 %v1405, 16
        %v1627 = vrot.slane %v1625, 4
        %v1628 = vshll.u32 %v1405, 16
        %v1630 = vrot.slane %v1628, 5
        %v1631 = vor.u32 %v1627, %v1630
        %v1632 = vrot.slane %v1631, 4
        %v1634 = vshll.u32 %v1406, 16
        %v1636 = vrot.slane %v1634, 5
        %v1637 = vsel %vm1431, %v1632, %v1636
        %v1638 = vshrl.u32 %v1406, 16
        %v1640 = vrot.slane %v1638, 4
        %v1641 = vor.u32 %v1640, %v1636
        %v1642 = vrot.slane %v1641, 4
        %v1644 = vshll.u32 %v1407, 16
        %v1646 = vrot.slane %v1644, 5
        %v1647 = vsel %vm1431, %v1642, %v1646
        %v1649 = vshrl.u32 %v1408, 16
        %v1651 = vrot.slane %v1649, 4
        %v1652 = vshll.u32 %v1408, 16
        %v1654 = vrot.slane %v1652, 5
        %v1655 = vor.u32 %v1651, %v1654
        %v1656 = vrot.slane %v1655, 4
        %v1658 = vshll.u32 %v1409, 16
        %v1660 = vrot.slane %v1658, 5
        %v1661 = vsel %vm1431, %v1656, %v1660
        %v1662 = vshrl.u32 %v1409, 16
        %v1664 = vrot.slane %v1662, 4
        %v1665 = vor.u32 %v1664, %v1660
        %v1666 = vrot.slane %v1665, 4
        %v1668 = vshll.u32 %v1410, 16
        %v1670 = vrot.slane %v1668, 5
        %v1671 = vsel %vm1431, %v1666, %v1670
        %v1673 = vshrl.u32 %v1411, 16
        %v1675 = vrot.slane %v1673, 4
        %v1676 = vshll.u32 %v1411, 16
        %v1678 = vrot.slane %v1676, 5
        %v1679 = vor.u32 %v1675, %v1678
        %v1680 = vrot.slane %v1679, 4
        %v1682 = vshll.u32 %v1412, 16
        %v1684 = vrot.slane %v1682, 5
        %v1685 = vsel %vm1431, %v1680, %v1684
        %v1686 = vshrl.u32 %v1412, 16
        %v1688 = vrot.slane %v1686, 4
        %v1689 = vor.u32 %v1688, %v1684
        %v1690 = vrot.slane %v1689, 4
        %v1692 = vshll.u32 %v1413, 16
        %v1694 = vrot.slane %v1692, 5
        %v1695 = vsel %vm1431, %v1690, %v1694
        %v1697 = vshrl.u32 %v1414, 16
        %v1699 = vrot.slane %v1697, 4
        %v1700 = vshll.u32 %v1414, 16
        %v1702 = vrot.slane %v1700, 5
        %v1703 = vor.u32 %v1699, %v1702
        %v1704 = vrot.slane %v1703, 4
        %v1706 = vshll.u32 %v1415, 16
        %v1708 = vrot.slane %v1706, 5
        %v1709 = vsel %vm1431, %v1704, %v1708
        %v1710 = vshrl.u32 %v1415, 16
        %v1712 = vrot.slane %v1710, 4
        %v1713 = vor.u32 %v1712, %v1708
        %v1714 = vrot.slane %v1713, 4
        %v1716 = vshll.u32 %v1416, 16
        %v1718 = vrot.slane %v1716, 5
        %v1719 = vsel %vm1431, %v1714, %v1718
        %v1721 = vshrl.u32 %v1417, 16
        %v1723 = vrot.slane %v1721, 4
        %v1724 = vshll.u32 %v1417, 16
        %v1726 = vrot.slane %v1724, 5
        %v1727 = vor.u32 %v1723, %v1726
        %v1728 = vrot.slane %v1727, 4
        %v1730 = vshll.u32 %v1418, 16
        %v1732 = vrot.slane %v1730, 5
        %v1733 = vsel %vm1431, %v1728, %v1732
        %v1734 = vshrl.u32 %v1418, 16
        %v1736 = vrot.slane %v1734, 4
        %v1737 = vor.u32 %v1736, %v1732
        %v1738 = vrot.slane %v1737, 4
        %v1740 = vshll.u32 %v1419, 16
        %v1742 = vrot.slane %v1740, 5
        %v1743 = vsel %vm1431, %v1738, %v1742
        %v1745 = vshrl.u32 %v1420, 16
        %v1747 = vrot.slane %v1745, 4
        %v1748 = vshll.u32 %v1420, 16
        %v1750 = vrot.slane %v1748, 5
        %v1751 = vor.u32 %v1747, %v1750
        %v1752 = vrot.slane %v1751, 4
        %v1754 = vshll.u32 %v1421, 16
        %v1756 = vrot.slane %v1754, 5
        %v1757 = vsel %vm1431, %v1752, %v1756
        %v1758 = vshrl.u32 %v1421, 16
        %v1760 = vrot.slane %v1758, 4
        %v1761 = vor.u32 %v1760, %v1756
        %v1762 = vrot.slane %v1761, 4
        %v1764 = vshll.u32 %v1422, 16
        %v1766 = vrot.slane %v1764, 5
        %v1767 = vsel %vm1431, %v1762, %v1766
        %v1769 = vshrl.u32 %v1423, 16
        %v1771 = vrot.slane %v1769, 4
        %v1772 = vshll.u32 %v1423, 16
        %v1774 = vrot.slane %v1772, 5
        %v1775 = vor.u32 %v1771, %v1774
        %v1776 = vrot.slane %v1775, 4
        %v1778 = vshll.u32 %v1424, 16
        %v1780 = vrot.slane %v1778, 5
        %v1781 = vsel %vm1431, %v1776, %v1780
        %v1782 = vshrl.u32 %v1424, 16
        %v1784 = vrot.slane %v1782, 4
        %v1785 = vor.u32 %v1784, %v1780
        %v1786 = vrot.slane %v1785, 4
        %v1788 = vshll.u32 %v1425, 16
        %v1790 = vrot.slane %v1788, 5
        %v1791 = vsel %vm1431, %v1786, %v1790
        %v1793 = vshrl.u32 %v1426, 16
        %v1795 = vrot.slane %v1793, 4
        %v1796 = vshll.u32 %v1426, 16
        %v1798 = vrot.slane %v1796, 5
        %v1799 = vor.u32 %v1795, %v1798
        %v1800 = vrot.slane %v1799, 4
        %v1802 = vshll.u32 %v1427, 16
        %v1804 = vrot.slane %v1802, 5
        %v1805 = vsel %vm1431, %v1800, %v1804
        %v1806 = vshrl.u32 %v1427, 16
        %v1808 = vrot.slane %v1806, 4
        %v1809 = vor.u32 %v1808, %v1804
        %v1810 = vrot.slane %v1809, 4
        %v1812 = vshll.u32 %v1428, 16
        %v1814 = vrot.slane %v1812, 5
        %v1815 = vsel %vm1431, %v1810, %v1814
        %1816 = vrot.lane.b32.xlu0 %v1445, 64
        %v1817 = vpop.permute.xlu0 %1816
        %1818 = vrot.lane.b32.xlu0 %v1455, 64
        %v1819 = vpop.permute.xlu0 %1818
        %1820 = vrot.lane.b32.xlu0 %v1469, 64
        %v1821 = vpop.permute.xlu0 %1820
        %1822 = vrot.lane.b32.xlu0 %v1479, 64
        %v1823 = vpop.permute.xlu0 %1822
        %1824 = vrot.lane.b32.xlu0 %v1493, 64
        %v1825 = vpop.permute.xlu0 %1824
        %1826 = vrot.lane.b32.xlu0 %v1503, 64
        %v1827 = vpop.permute.xlu0 %1826
        %1828 = vrot.lane.b32.xlu0 %v1517, 64
        %v1829 = vpop.permute.xlu0 %1828
        %1830 = vrot.lane.b32.xlu0 %v1527, 64
        %v1831 = vpop.permute.xlu0 %1830
        %1832 = vrot.lane.b32.xlu0 %v1541, 64
        %v1833 = vpop.permute.xlu0 %1832
        %1834 = vrot.lane.b32.xlu0 %v1551, 64
        %v1835 = vpop.permute.xlu0 %1834
        %1836 = vrot.lane.b32.xlu0 %v1565, 64
        %v1837 = vpop.permute.xlu0 %1836
        %1838 = vrot.lane.b32.xlu0 %v1575, 64
        %v1839 = vpop.permute.xlu0 %1838
        %1840 = vrot.lane.b32.xlu0 %v1589, 64
        %v1841 = vpop.permute.xlu0 %1840
        %1842 = vrot.lane.b32.xlu0 %v1599, 64
        %v1843 = vpop.permute.xlu0 %1842
        %1844 = vrot.lane.b32.xlu0 %v1613, 64
        %v1845 = vpop.permute.xlu0 %1844
        %1846 = vrot.lane.b32.xlu0 %v1623, 64
        %v1847 = vpop.permute.xlu0 %1846
        %1848 = vrot.lane.b32.xlu0 %v1637, 64
        %v1849 = vpop.permute.xlu0 %1848
        %1850 = vrot.lane.b32.xlu0 %v1647, 64
        %v1851 = vpop.permute.xlu0 %1850
        %1852 = vrot.lane.b32.xlu0 %v1661, 64
        %v1853 = vpop.permute.xlu0 %1852
        %1854 = vrot.lane.b32.xlu0 %v1671, 64
        %v1855 = vpop.permute.xlu0 %1854
        %1856 = vrot.lane.b32.xlu0 %v1685, 64
        %v1857 = vpop.permute.xlu0 %1856
        %1858 = vrot.lane.b32.xlu0 %v1695, 64
        %v1859 = vpop.permute.xlu0 %1858
        %1860 = vrot.lane.b32.xlu0 %v1709, 64
        %v1861 = vpop.permute.xlu0 %1860
        %1862 = vrot.lane.b32.xlu0 %v1719, 64
        %v1863 = vpop.permute.xlu0 %1862
        %1864 = vrot.lane.b32.xlu0 %v1733, 64
        %v1865 = vpop.permute.xlu0 %1864
        %1866 = vrot.lane.b32.xlu0 %v1743, 64
        %v1867 = vpop.permute.xlu0 %1866
        %1868 = vrot.lane.b32.xlu0 %v1757, 64
        %v1869 = vpop.permute.xlu0 %1868
        %1870 = vrot.lane.b32.xlu0 %v1767, 64
        %v1871 = vpop.permute.xlu0 %1870
        %1872 = vrot.lane.b32.xlu0 %v1781, 64
        %v1873 = vpop.permute.xlu0 %1872
        %1874 = vrot.lane.b32.xlu0 %v1791, 64
        %v1875 = vpop.permute.xlu0 %1874
        %1876 = vrot.lane.b32.xlu0 %v1805, 64
        %v1877 = vpop.permute.xlu0 %1876
        %1878 = vrot.lane.b32.xlu0 %v1815, 64
        %v1879 = vpop.permute.xlu0 %1878
        %vm1912 = vcmask 1043968
        %1913 = vst.msk [vmem:[#allocation3] sm:$0xf] %vm1912, %v1817
        %1914 = vst.msk [vmem:[#allocation3 + $0x14] sm:$0xf] %vm1912, %v1819
        %1915 = vst.msk [vmem:[#allocation3 + $0x28] sm:$0xf] %vm1912, %v1821
        %1916 = vst.msk [vmem:[#allocation3 + $0x3c] sm:$0xf] %vm1912, %v1823
        %1917 = vst.msk [vmem:[#allocation3 + $0x50] sm:$0xf] %vm1912, %v1825
        %1918 = vst.msk [vmem:[#allocation3 + $0x64] sm:$0xf] %vm1912, %v1827
        %1919 = vst.msk [vmem:[#allocation3 + $0x78] sm:$0xf] %vm1912, %v1829
        %1920 = vst.msk [vmem:[#allocation3 + $0x8c] sm:$0xf] %vm1912, %v1831
        %1921 = vst.msk [vmem:[#allocation3 + $0xa0] sm:$0xf] %vm1912, %v1833
        %1922 = vst.msk [vmem:[#allocation3 + $0xb4] sm:$0xf] %vm1912, %v1835
        %1923 = vst.msk [vmem:[#allocation3 + $0xc8] sm:$0xf] %vm1912, %v1837
        %1924 = vst.msk [vmem:[#allocation3 + $0xdc] sm:$0xf] %vm1912, %v1839
        %1925 = vst.msk [vmem:[#allocation3 + $0xf0] sm:$0xf] %vm1912, %v1841
        %1926 = vst.msk [vmem:[#allocation3 + $0x104] sm:$0xf] %vm1912, %v1843
        %1927 = vst.msk [vmem:[#allocation3 + $0x118] sm:$0xf] %vm1912, %v1845
        %1928 = vst.msk [vmem:[#allocation3 + $0x12c] sm:$0xf] %vm1912, %v1847
        %1929 = vst.msk [vmem:[#allocation3 + $0x140] sm:$0xf] %vm1912, %v1849
        %1930 = vst.msk [vmem:[#allocation3 + $0x154] sm:$0xf] %vm1912, %v1851
        %1931 = vst.msk [vmem:[#allocation3 + $0x168] sm:$0xf] %vm1912, %v1853
        %1932 = vst.msk [vmem:[#allocation3 + $0x17c] sm:$0xf] %vm1912, %v1855
        %1933 = vst.msk [vmem:[#allocation3 + $0x190] sm:$0xf] %vm1912, %v1857
        %1934 = vst.msk [vmem:[#allocation3 + $0x1a4] sm:$0xf] %vm1912, %v1859
        %1935 = vst.msk [vmem:[#allocation3 + $0x1b8] sm:$0xf] %vm1912, %v1861
        %1936 = vst.msk [vmem:[#allocation3 + $0x1cc] sm:$0xf] %vm1912, %v1863
        %1937 = vst.msk [vmem:[#allocation3 + $0x1e0] sm:$0xf] %vm1912, %v1865
        %1938 = vst.msk [vmem:[#allocation3 + $0x1f4] sm:$0xf] %vm1912, %v1867
        %1939 = vst.msk [vmem:[#allocation3 + $0x208] sm:$0xf] %vm1912, %v1869
        %1940 = vst.msk [vmem:[#allocation3 + $0x21c] sm:$0xf] %vm1912, %v1871
        %1941 = vst.msk [vmem:[#allocation3 + $0x230] sm:$0xf] %vm1912, %v1873
        %1942 = vst.msk [vmem:[#allocation3 + $0x244] sm:$0xf] %vm1912, %v1875
        %1943 = vst.msk [vmem:[#allocation3 + $0x258] sm:$0xf] %vm1912, %v1877
        %1944 = vst.msk [vmem:[#allocation3 + $0x26c] sm:$0xf] %vm1912, %v1879
        %v1945 = vld [vmem:[#allocation2] sm:$0xe]
        %v1946 = vld [vmem:[#allocation2 + $0x4] sm:$0xf]
        %v1947 = vld [vmem:[#allocation2 + $0x8] sm:$0x1]
        %v1948 = vld [vmem:[#allocation2 + $0xc] sm:$0xe]
        %v1949 = vld [vmem:[#allocation2 + $0x10] sm:$0xf]
        %v1950 = vld [vmem:[#allocation2 + $0x14] sm:$0x1]
        %v1951 = vld [vmem:[#allocation2 + $0x18] sm:$0xe]
        %v1952 = vld [vmem:[#allocation2 + $0x1c] sm:$0xf]
        %v1953 = vld [vmem:[#allocation2 + $0x20] sm:$0x1]
        %v1954 = vld [vmem:[#allocation2 + $0x24] sm:$0xe]
        %v1955 = vld [vmem:[#allocation2 + $0x28] sm:$0xf]
        %v1956 = vld [vmem:[#allocation2 + $0x2c] sm:$0x1]
        %v1957 = vld [vmem:[#allocation2 + $0x30] sm:$0xe]
        %v1958 = vld [vmem:[#allocation2 + $0x34] sm:$0xf]
        %v1959 = vld [vmem:[#allocation2 + $0x38] sm:$0x1]
        %v1960 = vld [vmem:[#allocation2 + $0x3c] sm:$0xe]
        %v1961 = vld [vmem:[#allocation2 + $0x40] sm:$0xf]
        %v1962 = vld [vmem:[#allocation2 + $0x44] sm:$0x1]
        %v1963 = vld [vmem:[#allocation2 + $0x48] sm:$0xe]
        %v1964 = vld [vmem:[#allocation2 + $0x4c] sm:$0xf]
        %v1965 = vld [vmem:[#allocation2 + $0x50] sm:$0x1]
        %v1966 = vld [vmem:[#allocation2 + $0x54] sm:$0xe]
        %v1967 = vld [vmem:[#allocation2 + $0x58] sm:$0xf]
        %v1968 = vld [vmem:[#allocation2 + $0x5c] sm:$0x1]
        %v1969 = vld [vmem:[#allocation2 + $0x60] sm:$0xe]
        %v1970 = vld [vmem:[#allocation2 + $0x64] sm:$0xf]
        %v1971 = vld [vmem:[#allocation2 + $0x68] sm:$0x1]
        %v1972 = vld [vmem:[#allocation2 + $0x6c] sm:$0xe]
        %v1973 = vld [vmem:[#allocation2 + $0x70] sm:$0xf]
        %v1974 = vld [vmem:[#allocation2 + $0x74] sm:$0x1]
        %v1975 = vld [vmem:[#allocation2 + $0x78] sm:$0xe]
        %v1976 = vld [vmem:[#allocation2 + $0x7c] sm:$0xf]
        %v1977 = vld [vmem:[#allocation2 + $0x80] sm:$0x1]
        %v1978 = vld [vmem:[#allocation2 + $0x84] sm:$0xe]
        %v1979 = vld [vmem:[#allocation2 + $0x88] sm:$0xf]
        %v1980 = vld [vmem:[#allocation2 + $0x8c] sm:$0x1]
        %v1981 = vld [vmem:[#allocation2 + $0x90] sm:$0xe]
        %v1982 = vld [vmem:[#allocation2 + $0x94] sm:$0xf]
        %v1983 = vld [vmem:[#allocation2 + $0x98] sm:$0x1]
        %v1984 = vld [vmem:[#allocation2 + $0x9c] sm:$0xe]
        %v1985 = vld [vmem:[#allocation2 + $0xa0] sm:$0xf]
        %v1986 = vld [vmem:[#allocation2 + $0xa4] sm:$0x1]
        %v1987 = vld [vmem:[#allocation2 + $0xa8] sm:$0xe]
        %v1988 = vld [vmem:[#allocation2 + $0xac] sm:$0xf]
        %v1989 = vld [vmem:[#allocation2 + $0xb0] sm:$0x1]
        %v1990 = vld [vmem:[#allocation2 + $0xb4] sm:$0xe]
        %v1991 = vld [vmem:[#allocation2 + $0xb8] sm:$0xf]
        %v1992 = vld [vmem:[#allocation2 + $0xbc] sm:$0x1]
        %vm2041 = vcmask 1042432
        %vm2042 = vcmask 1046532
        %vm2043 = vmor %vm2041, %vm2042
        %v2044 = vrot.slane %v1945, 5
        %v2045 = vrot.slane %v2044, 4
        %v2046 = vrot.slane %v1946, 5
        %v2047 = vsel %vm2043, %v2045, %v2046
        %v2048 = vrot.slane %v2046, 4
        %v2049 = vrot.slane %v1947, 5
        %v2050 = vsel %vm2043, %v2048, %v2049
        %v2051 = vrot.slane %v1948, 5
        %v2052 = vrot.slane %v2051, 4
        %v2053 = vrot.slane %v1949, 5
        %v2054 = vsel %vm2043, %v2052, %v2053
        %v2055 = vrot.slane %v2053, 4
        %v2056 = vrot.slane %v1950, 5
        %v2057 = vsel %vm2043, %v2055, %v2056
        %v2058 = vrot.slane %v1951, 5
        %v2059 = vrot.slane %v2058, 4
        %v2060 = vrot.slane %v1952, 5
        %v2061 = vsel %vm2043, %v2059, %v2060
        %v2062 = vrot.slane %v2060, 4
        %v2063 = vrot.slane %v1953, 5
        %v2064 = vsel %vm2043, %v2062, %v2063
        %v2065 = vrot.slane %v1954, 5
        %v2066 = vrot.slane %v2065, 4
        %v2067 = vrot.slane %v1955, 5
        %v2068 = vsel %vm2043, %v2066, %v2067
        %v2069 = vrot.slane %v2067, 4
        %v2070 = vrot.slane %v1956, 5
        %v2071 = vsel %vm2043, %v2069, %v2070
        %v2072 = vrot.slane %v1957, 5
        %v2073 = vrot.slane %v2072, 4
        %v2074 = vrot.slane %v1958, 5
        %v2075 = vsel %vm2043, %v2073, %v2074
        %v2076 = vrot.slane %v2074, 4
        %v2077 = vrot.slane %v1959, 5
        %v2078 = vsel %vm2043, %v2076, %v2077
        %v2079 = vrot.slane %v1960, 5
        %v2080 = vrot.slane %v2079, 4
        %v2081 = vrot.slane %v1961, 5
        %v2082 = vsel %vm2043, %v2080, %v2081
        %v2083 = vrot.slane %v2081, 4
        %v2084 = vrot.slane %v1962, 5
        %v2085 = vsel %vm2043, %v2083, %v2084
        %v2086 = vrot.slane %v1963, 5
        %v2087 = vrot.slane %v2086, 4
        %v2088 = vrot.slane %v1964, 5
        %v2089 = vsel %vm2043, %v2087, %v2088
        %v2090 = vrot.slane %v2088, 4
        %v2091 = vrot.slane %v1965, 5
        %v2092 = vsel %vm2043, %v2090, %v2091
        %v2093 = vrot.slane %v1966, 5
        %v2094 = vrot.slane %v2093, 4
        %v2095 = vrot.slane %v1967, 5
        %v2096 = vsel %vm2043, %v2094, %v2095
        %v2097 = vrot.slane %v2095, 4
        %v2098 = vrot.slane %v1968, 5
        %v2099 = vsel %vm2043, %v2097, %v2098
        %v2100 = vrot.slane %v1969, 5
        %v2101 = vrot.slane %v2100, 4
        %v2102 = vrot.slane %v1970, 5
        %v2103 = vsel %vm2043, %v2101, %v2102
        %v2104 = vrot.slane %v2102, 4
        %v2105 = vrot.slane %v1971, 5
        %v2106 = vsel %vm2043, %v2104, %v2105
        %v2107 = vrot.slane %v1972, 5
        %v2108 = vrot.slane %v2107, 4
        %v2109 = vrot.slane %v1973, 5
        %v2110 = vsel %vm2043, %v2108, %v2109
        %v2111 = vrot.slane %v2109, 4
        %v2112 = vrot.slane %v1974, 5
        %v2113 = vsel %vm2043, %v2111, %v2112
        %v2114 = vrot.slane %v1975, 5
        %v2115 = vrot.slane %v2114, 4
        %v2116 = vrot.slane %v1976, 5
        %v2117 = vsel %vm2043, %v2115, %v2116
        %v2118 = vrot.slane %v2116, 4
        %v2119 = vrot.slane %v1977, 5
        %v2120 = vsel %vm2043, %v2118, %v2119
        %v2121 = vrot.slane %v1978, 5
        %v2122 = vrot.slane %v2121, 4
        %v2123 = vrot.slane %v1979, 5
        %v2124 = vsel %vm2043, %v2122, %v2123
        %v2125 = vrot.slane %v2123, 4
        %v2126 = vrot.slane %v1980, 5
        %v2127 = vsel %vm2043, %v2125, %v2126
        %v2128 = vrot.slane %v1981, 5
        %v2129 = vrot.slane %v2128, 4
        %v2130 = vrot.slane %v1982, 5
        %v2131 = vsel %vm2043, %v2129, %v2130
        %v2132 = vrot.slane %v2130, 4
        %v2133 = vrot.slane %v1983, 5
        %v2134 = vsel %vm2043, %v2132, %v2133
        %v2135 = vrot.slane %v1984, 5
        %v2136 = vrot.slane %v2135, 4
        %v2137 = vrot.slane %v1985, 5
        %v2138 = vsel %vm2043, %v2136, %v2137
        %v2139 = vrot.slane %v2137, 4
        %v2140 = vrot.slane %v1986, 5
        %v2141 = vsel %vm2043, %v2139, %v2140
        %v2142 = vrot.slane %v1987, 5
        %v2143 = vrot.slane %v2142, 4
        %v2144 = vrot.slane %v1988, 5
        %v2145 = vsel %vm2043, %v2143, %v2144
        %v2146 = vrot.slane %v2144, 4
        %v2147 = vrot.slane %v1989, 5
        %v2148 = vsel %vm2043, %v2146, %v2147
        %v2149 = vrot.slane %v1990, 5
        %v2150 = vrot.slane %v2149, 4
        %v2151 = vrot.slane %v1991, 5
        %v2152 = vsel %vm2043, %v2150, %v2151
        %v2153 = vrot.slane %v2151, 4
        %v2154 = vrot.slane %v1992, 5
        %v2155 = vsel %vm2043, %v2153, %v2154
        %2188 = vst.msk [vmem:[#allocation3 + $0x4] sm:$0xf] %vm738, %v2047
        %2189 = vst.msk [vmem:[#allocation3 + $0x18] sm:$0xf] %vm738, %v2050
        %2190 = vst.msk [vmem:[#allocation3 + $0x2c] sm:$0xf] %vm738, %v2054
        %2191 = vst.msk [vmem:[#allocation3 + $0x40] sm:$0xf] %vm738, %v2057
        %2192 = vst.msk [vmem:[#allocation3 + $0x54] sm:$0xf] %vm738, %v2061
        %2193 = vst.msk [vmem:[#allocation3 + $0x68] sm:$0xf] %vm738, %v2064
        %2194 = vst.msk [vmem:[#allocation3 + $0x7c] sm:$0xf] %vm738, %v2068
        %2195 = vst.msk [vmem:[#allocation3 + $0x90] sm:$0xf] %vm738, %v2071
        %2196 = vst.msk [vmem:[#allocation3 + $0xa4] sm:$0xf] %vm738, %v2075
        %2197 = vst.msk [vmem:[#allocation3 + $0xb8] sm:$0xf] %vm738, %v2078
        %2198 = vst.msk [vmem:[#allocation3 + $0xcc] sm:$0xf] %vm738, %v2082
        %2199 = vst.msk [vmem:[#allocation3 + $0xe0] sm:$0xf] %vm738, %v2085
        %2200 = vst.msk [vmem:[#allocation3 + $0xf4] sm:$0xf] %vm738, %v2089
        %2201 = vst.msk [vmem:[#allocation3 + $0x108] sm:$0xf] %vm738, %v2092
        %2202 = vst.msk [vmem:[#allocation3 + $0x11c] sm:$0xf] %vm738, %v2096
        %2203 = vst.msk [vmem:[#allocation3 + $0x130] sm:$0xf] %vm738, %v2099
        %2204 = vst.msk [vmem:[#allocation3 + $0x144] sm:$0xf] %vm738, %v2103
        %2205 = vst.msk [vmem:[#allocation3 + $0x158] sm:$0xf] %vm738, %v2106
        %2206 = vst.msk [vmem:[#allocation3 + $0x16c] sm:$0xf] %vm738, %v2110
        %2207 = vst.msk [vmem:[#allocation3 + $0x180] sm:$0xf] %vm738, %v2113
        %2208 = vst.msk [vmem:[#allocation3 + $0x194] sm:$0xf] %vm738, %v2117
        %2209 = vst.msk [vmem:[#allocation3 + $0x1a8] sm:$0xf] %vm738, %v2120
        %2210 = vst.msk [vmem:[#allocation3 + $0x1bc] sm:$0xf] %vm738, %v2124
        %2211 = vst.msk [vmem:[#allocation3 + $0x1d0] sm:$0xf] %vm738, %v2127
        %2212 = vst.msk [vmem:[#allocation3 + $0x1e4] sm:$0xf] %vm738, %v2131
        %2213 = vst.msk [vmem:[#allocation3 + $0x1f8] sm:$0xf] %vm738, %v2134
        %2214 = vst.msk [vmem:[#allocation3 + $0x20c] sm:$0xf] %vm738, %v2138
        %2215 = vst.msk [vmem:[#allocation3 + $0x220] sm:$0xf] %vm738, %v2141
        %2216 = vst.msk [vmem:[#allocation3 + $0x234] sm:$0xf] %vm738, %v2145
        %2217 = vst.msk [vmem:[#allocation3 + $0x248] sm:$0xf] %vm738, %v2148
        %2218 = vst.msk [vmem:[#allocation3 + $0x25c] sm:$0xf] %vm738, %v2152
        %2219 = vst.msk [vmem:[#allocation3 + $0x270] sm:$0xf] %vm738, %v2155
        %v2220 = vld [vmem:[%s747] sm:$0xf]
        %v2221 = vld [vmem:[%s747 + $0x4] sm:$0xf]
        %v2222 = vld [vmem:[%s747 + $0xc] sm:$0xf]
        %v2223 = vld [vmem:[%s747 + $0x10] sm:$0xf]
        %v2224 = vld [vmem:[%s747 + $0x18] sm:$0xf]
        %v2225 = vld [vmem:[%s747 + $0x1c] sm:$0xf]
        %v2226 = vld [vmem:[%s747 + $0x24] sm:$0xf]
        %v2227 = vld [vmem:[%s747 + $0x28] sm:$0xf]
        %v2228 = vld [vmem:[%s747 + $0x30] sm:$0xf]
        %v2229 = vld [vmem:[%s747 + $0x34] sm:$0xf]
        %v2230 = vld [vmem:[%s747 + $0x3c] sm:$0xf]
        %v2231 = vld [vmem:[%s747 + $0x40] sm:$0xf]
        %v2232 = vld [vmem:[%s747 + $0x48] sm:$0xf]
        %v2233 = vld [vmem:[%s747 + $0x4c] sm:$0xf]
        %v2234 = vld [vmem:[%s747 + $0x54] sm:$0xf]
        %v2235 = vld [vmem:[%s747 + $0x58] sm:$0xf]
        %v2236 = vld [vmem:[%s747 + $0x60] sm:$0xf]
        %v2237 = vld [vmem:[%s747 + $0x64] sm:$0xf]
        %v2238 = vld [vmem:[%s747 + $0x6c] sm:$0xf]
        %v2239 = vld [vmem:[%s747 + $0x70] sm:$0xf]
        %v2240 = vld [vmem:[%s747 + $0x78] sm:$0xf]
        %v2241 = vld [vmem:[%s747 + $0x7c] sm:$0xf]
        %v2242 = vld [vmem:[%s747 + $0x84] sm:$0xf]
        %v2243 = vld [vmem:[%s747 + $0x88] sm:$0xf]
        %v2244 = vld [vmem:[%s747 + $0x90] sm:$0xf]
        %v2245 = vld [vmem:[%s747 + $0x94] sm:$0xf]
        %v2246 = vld [vmem:[%s747 + $0x9c] sm:$0xf]
        %v2247 = vld [vmem:[%s747 + $0xa0] sm:$0xf]
        %v2248 = vld [vmem:[%s747 + $0xa8] sm:$0xf]
        %v2249 = vld [vmem:[%s747 + $0xac] sm:$0xf]
        %v2250 = vld [vmem:[%s747 + $0xb4] sm:$0xf]
        %v2251 = vld [vmem:[%s747 + $0xb8] sm:$0xf]
        %2284 = vrot.lane.b32.xlu0 %v2220, 64
        %v2285 = vpop.permute.xlu0 %2284
        %2286 = vrot.lane.b32.xlu0 %v2221, 64
        %v2287 = vpop.permute.xlu0 %2286
        %2288 = vrot.lane.b32.xlu0 %v2222, 64
        %v2289 = vpop.permute.xlu0 %2288
        %2290 = vrot.lane.b32.xlu0 %v2223, 64
        %v2291 = vpop.permute.xlu0 %2290
        %2292 = vrot.lane.b32.xlu0 %v2224, 64
        %v2293 = vpop.permute.xlu0 %2292
        %2294 = vrot.lane.b32.xlu0 %v2225, 64
        %v2295 = vpop.permute.xlu0 %2294
        %2296 = vrot.lane.b32.xlu0 %v2226, 64
        %v2297 = vpop.permute.xlu0 %2296
        %2298 = vrot.lane.b32.xlu0 %v2227, 64
        %v2299 = vpop.permute.xlu0 %2298
        %2300 = vrot.lane.b32.xlu0 %v2228, 64
        %v2301 = vpop.permute.xlu0 %2300
        %2302 = vrot.lane.b32.xlu0 %v2229, 64
        %v2303 = vpop.permute.xlu0 %2302
        %2304 = vrot.lane.b32.xlu0 %v2230, 64
        %v2305 = vpop.permute.xlu0 %2304
        %2306 = vrot.lane.b32.xlu0 %v2231, 64
        %v2307 = vpop.permute.xlu0 %2306
        %2308 = vrot.lane.b32.xlu0 %v2232, 64
        %v2309 = vpop.permute.xlu0 %2308
        %2310 = vrot.lane.b32.xlu0 %v2233, 64
        %v2311 = vpop.permute.xlu0 %2310
        %2312 = vrot.lane.b32.xlu0 %v2234, 64
        %v2313 = vpop.permute.xlu0 %2312
        %2314 = vrot.lane.b32.xlu0 %v2235, 64
        %v2315 = vpop.permute.xlu0 %2314
        %2316 = vrot.lane.b32.xlu0 %v2236, 64
        %v2317 = vpop.permute.xlu0 %2316
        %2318 = vrot.lane.b32.xlu0 %v2237, 64
        %v2319 = vpop.permute.xlu0 %2318
        %2320 = vrot.lane.b32.xlu0 %v2238, 64
        %v2321 = vpop.permute.xlu0 %2320
        %2322 = vrot.lane.b32.xlu0 %v2239, 64
        %v2323 = vpop.permute.xlu0 %2322
        %2324 = vrot.lane.b32.xlu0 %v2240, 64
        %v2325 = vpop.permute.xlu0 %2324
        %2326 = vrot.lane.b32.xlu0 %v2241, 64
        %v2327 = vpop.permute.xlu0 %2326
        %2328 = vrot.lane.b32.xlu0 %v2242, 64
        %v2329 = vpop.permute.xlu0 %2328
        %2330 = vrot.lane.b32.xlu0 %v2243, 64
        %v2331 = vpop.permute.xlu0 %2330
        %2332 = vrot.lane.b32.xlu0 %v2244, 64
        %v2333 = vpop.permute.xlu0 %2332
        %2334 = vrot.lane.b32.xlu0 %v2245, 64
        %v2335 = vpop.permute.xlu0 %2334
        %2336 = vrot.lane.b32.xlu0 %v2246, 64
        %v2337 = vpop.permute.xlu0 %2336
        %2338 = vrot.lane.b32.xlu0 %v2247, 64
        %v2339 = vpop.permute.xlu0 %2338
        %2340 = vrot.lane.b32.xlu0 %v2248, 64
        %v2341 = vpop.permute.xlu0 %2340
        %2342 = vrot.lane.b32.xlu0 %v2249, 64
        %v2343 = vpop.permute.xlu0 %2342
        %2344 = vrot.lane.b32.xlu0 %v2250, 64
        %v2345 = vpop.permute.xlu0 %2344
        %2346 = vrot.lane.b32.xlu0 %v2251, 64
        %v2347 = vpop.permute.xlu0 %2346
        %2380 = vst.msk [vmem:[#allocation3 + $0x4] sm:$0xf] %vm1912, %v2285
        %2381 = vst.msk [vmem:[#allocation3 + $0x18] sm:$0xf] %vm1912, %v2287
        %2382 = vst.msk [vmem:[#allocation3 + $0x2c] sm:$0xf] %vm1912, %v2289
        %2383 = vst.msk [vmem:[#allocation3 + $0x40] sm:$0xf] %vm1912, %v2291
        %2384 = vst.msk [vmem:[#allocation3 + $0x54] sm:$0xf] %vm1912, %v2293
        %2385 = vst.msk [vmem:[#allocation3 + $0x68] sm:$0xf] %vm1912, %v2295
        %2386 = vst.msk [vmem:[#allocation3 + $0x7c] sm:$0xf] %vm1912, %v2297
        %2387 = vst.msk [vmem:[#allocation3 + $0x90] sm:$0xf] %vm1912, %v2299
        %2388 = vst.msk [vmem:[#allocation3 + $0xa4] sm:$0xf] %vm1912, %v2301
        %2389 = vst.msk [vmem:[#allocation3 + $0xb8] sm:$0xf] %vm1912, %v2303
        %2390 = vst.msk [vmem:[#allocation3 + $0xcc] sm:$0xf] %vm1912, %v2305
        %2391 = vst.msk [vmem:[#allocation3 + $0xe0] sm:$0xf] %vm1912, %v2307
        %2392 = vst.msk [vmem:[#allocation3 + $0xf4] sm:$0xf] %vm1912, %v2309
        %2393 = vst.msk [vmem:[#allocation3 + $0x108] sm:$0xf] %vm1912, %v2311
        %2394 = vst.msk [vmem:[#allocation3 + $0x11c] sm:$0xf] %vm1912, %v2313
        %2395 = vst.msk [vmem:[#allocation3 + $0x130] sm:$0xf] %vm1912, %v2315
        %2396 = vst.msk [vmem:[#allocation3 + $0x144] sm:$0xf] %vm1912, %v2317
        %2397 = vst.msk [vmem:[#allocation3 + $0x158] sm:$0xf] %vm1912, %v2319
        %2398 = vst.msk [vmem:[#allocation3 + $0x16c] sm:$0xf] %vm1912, %v2321
        %2399 = vst.msk [vmem:[#allocation3 + $0x180] sm:$0xf] %vm1912, %v2323
        %2400 = vst.msk [vmem:[#allocation3 + $0x194] sm:$0xf] %vm1912, %v2325
        %2401 = vst.msk [vmem:[#allocation3 + $0x1a8] sm:$0xf] %vm1912, %v2327
        %2402 = vst.msk [vmem:[#allocation3 + $0x1bc] sm:$0xf] %vm1912, %v2329
        %2403 = vst.msk [vmem:[#allocation3 + $0x1d0] sm:$0xf] %vm1912, %v2331
        %2404 = vst.msk [vmem:[#allocation3 + $0x1e4] sm:$0xf] %vm1912, %v2333
        %2405 = vst.msk [vmem:[#allocation3 + $0x1f8] sm:$0xf] %vm1912, %v2335
        %2406 = vst.msk [vmem:[#allocation3 + $0x20c] sm:$0xf] %vm1912, %v2337
        %2407 = vst.msk [vmem:[#allocation3 + $0x220] sm:$0xf] %vm1912, %v2339
        %2408 = vst.msk [vmem:[#allocation3 + $0x234] sm:$0xf] %vm1912, %v2341
        %2409 = vst.msk [vmem:[#allocation3 + $0x248] sm:$0xf] %vm1912, %v2343
        %2410 = vst.msk [vmem:[#allocation3 + $0x25c] sm:$0xf] %vm1912, %v2345
        %2411 = vst.msk [vmem:[#allocation3 + $0x270] sm:$0xf] %vm1912, %v2347
        %v2412 = vld [vmem:[%s747] sm:$0xf]
        %v2413 = vld [vmem:[%s747 + $0x4] sm:$0xf]
        %v2414 = vld [vmem:[%s747 + $0x8] sm:$0x1]
        %v2415 = vld [vmem:[%s747 + $0xc] sm:$0xf]
        %v2416 = vld [vmem:[%s747 + $0x10] sm:$0xf]
        %v2417 = vld [vmem:[%s747 + $0x14] sm:$0x1]
        %v2418 = vld [vmem:[%s747 + $0x18] sm:$0xf]
        %v2419 = vld [vmem:[%s747 + $0x1c] sm:$0xf]
        %v2420 = vld [vmem:[%s747 + $0x20] sm:$0x1]
        %v2421 = vld [vmem:[%s747 + $0x24] sm:$0xf]
        %v2422 = vld [vmem:[%s747 + $0x28] sm:$0xf]
        %v2423 = vld [vmem:[%s747 + $0x2c] sm:$0x1]
        %v2424 = vld [vmem:[%s747 + $0x30] sm:$0xf]
        %v2425 = vld [vmem:[%s747 + $0x34] sm:$0xf]
        %v2426 = vld [vmem:[%s747 + $0x38] sm:$0x1]
        %v2427 = vld [vmem:[%s747 + $0x3c] sm:$0xf]
        %v2428 = vld [vmem:[%s747 + $0x40] sm:$0xf]
        %v2429 = vld [vmem:[%s747 + $0x44] sm:$0x1]
        %v2430 = vld [vmem:[%s747 + $0x48] sm:$0xf]
        %v2431 = vld [vmem:[%s747 + $0x4c] sm:$0xf]
        %v2432 = vld [vmem:[%s747 + $0x50] sm:$0x1]
        %v2433 = vld [vmem:[%s747 + $0x54] sm:$0xf]
        %v2434 = vld [vmem:[%s747 + $0x58] sm:$0xf]
        %v2435 = vld [vmem:[%s747 + $0x5c] sm:$0x1]
        %v2436 = vld [vmem:[%s747 + $0x60] sm:$0xf]
        %v2437 = vld [vmem:[%s747 + $0x64] sm:$0xf]
        %v2438 = vld [vmem:[%s747 + $0x68] sm:$0x1]
        %v2439 = vld [vmem:[%s747 + $0x6c] sm:$0xf]
        %v2440 = vld [vmem:[%s747 + $0x70] sm:$0xf]
        %v2441 = vld [vmem:[%s747 + $0x74] sm:$0x1]
        %v2442 = vld [vmem:[%s747 + $0x78] sm:$0xf]
        %v2443 = vld [vmem:[%s747 + $0x7c] sm:$0xf]
        %v2444 = vld [vmem:[%s747 + $0x80] sm:$0x1]
        %v2445 = vld [vmem:[%s747 + $0x84] sm:$0xf]
        %v2446 = vld [vmem:[%s747 + $0x88] sm:$0xf]
        %v2447 = vld [vmem:[%s747 + $0x8c] sm:$0x1]
        %v2448 = vld [vmem:[%s747 + $0x90] sm:$0xf]
        %v2449 = vld [vmem:[%s747 + $0x94] sm:$0xf]
        %v2450 = vld [vmem:[%s747 + $0x98] sm:$0x1]
        %v2451 = vld [vmem:[%s747 + $0x9c] sm:$0xf]
        %v2452 = vld [vmem:[%s747 + $0xa0] sm:$0xf]
        %v2453 = vld [vmem:[%s747 + $0xa4] sm:$0x1]
        %v2454 = vld [vmem:[%s747 + $0xa8] sm:$0xf]
        %v2455 = vld [vmem:[%s747 + $0xac] sm:$0xf]
        %v2456 = vld [vmem:[%s747 + $0xb0] sm:$0x1]
        %v2457 = vld [vmem:[%s747 + $0xb4] sm:$0xf]
        %v2458 = vld [vmem:[%s747 + $0xb8] sm:$0xf]
        %v2459 = vld [vmem:[%s747 + $0xbc] sm:$0x1]
        %v2461 = vshrl.u32 %v2412, 16
        %v2463 = vrot.slane %v2461, 4
        %v2464 = vshll.u32 %v2412, 16
        %v2466 = vrot.slane %v2464, 5
        %v2467 = vor.u32 %v2463, %v2466
        %v2468 = vrot.slane %v2467, 4
        %v2470 = vshll.u32 %v2413, 16
        %v2472 = vrot.slane %v2470, 5
        %v2473 = vsel %vm1431, %v2468, %v2472
        %v2474 = vshrl.u32 %v2413, 16
        %v2476 = vrot.slane %v2474, 4
        %v2477 = vor.u32 %v2476, %v2472
        %v2478 = vrot.slane %v2477, 4
        %v2480 = vshll.u32 %v2414, 16
        %v2482 = vrot.slane %v2480, 5
        %v2483 = vsel %vm1431, %v2478, %v2482
        %v2485 = vshrl.u32 %v2415, 16
        %v2487 = vrot.slane %v2485, 4
        %v2488 = vshll.u32 %v2415, 16
        %v2490 = vrot.slane %v2488, 5
        %v2491 = vor.u32 %v2487, %v2490
        %v2492 = vrot.slane %v2491, 4
        %v2494 = vshll.u32 %v2416, 16
        %v2496 = vrot.slane %v2494, 5
        %v2497 = vsel %vm1431, %v2492, %v2496
        %v2498 = vshrl.u32 %v2416, 16
        %v2500 = vrot.slane %v2498, 4
        %v2501 = vor.u32 %v2500, %v2496
        %v2502 = vrot.slane %v2501, 4
        %v2504 = vshll.u32 %v2417, 16
        %v2506 = vrot.slane %v2504, 5
        %v2507 = vsel %vm1431, %v2502, %v2506
        %v2509 = vshrl.u32 %v2418, 16
        %v2511 = vrot.slane %v2509, 4
        %v2512 = vshll.u32 %v2418, 16
        %v2514 = vrot.slane %v2512, 5
        %v2515 = vor.u32 %v2511, %v2514
        %v2516 = vrot.slane %v2515, 4
        %v2518 = vshll.u32 %v2419, 16
        %v2520 = vrot.slane %v2518, 5
        %v2521 = vsel %vm1431, %v2516, %v2520
        %v2522 = vshrl.u32 %v2419, 16
        %v2524 = vrot.slane %v2522, 4
        %v2525 = vor.u32 %v2524, %v2520
        %v2526 = vrot.slane %v2525, 4
        %v2528 = vshll.u32 %v2420, 16
        %v2530 = vrot.slane %v2528, 5
        %v2531 = vsel %vm1431, %v2526, %v2530
        %v2533 = vshrl.u32 %v2421, 16
        %v2535 = vrot.slane %v2533, 4
        %v2536 = vshll.u32 %v2421, 16
        %v2538 = vrot.slane %v2536, 5
        %v2539 = vor.u32 %v2535, %v2538
        %v2540 = vrot.slane %v2539, 4
        %v2542 = vshll.u32 %v2422, 16
        %v2544 = vrot.slane %v2542, 5
        %v2545 = vsel %vm1431, %v2540, %v2544
        %v2546 = vshrl.u32 %v2422, 16
        %v2548 = vrot.slane %v2546, 4
        %v2549 = vor.u32 %v2548, %v2544
        %v2550 = vrot.slane %v2549, 4
        %v2552 = vshll.u32 %v2423, 16
        %v2554 = vrot.slane %v2552, 5
        %v2555 = vsel %vm1431, %v2550, %v2554
        %v2557 = vshrl.u32 %v2424, 16
        %v2559 = vrot.slane %v2557, 4
        %v2560 = vshll.u32 %v2424, 16
        %v2562 = vrot.slane %v2560, 5
        %v2563 = vor.u32 %v2559, %v2562
        %v2564 = vrot.slane %v2563, 4
        %v2566 = vshll.u32 %v2425, 16
        %v2568 = vrot.slane %v2566, 5
        %v2569 = vsel %vm1431, %v2564, %v2568
        %v2570 = vshrl.u32 %v2425, 16
        %v2572 = vrot.slane %v2570, 4
        %v2573 = vor.u32 %v2572, %v2568
        %v2574 = vrot.slane %v2573, 4
        %v2576 = vshll.u32 %v2426, 16
        %v2578 = vrot.slane %v2576, 5
        %v2579 = vsel %vm1431, %v2574, %v2578
        %v2581 = vshrl.u32 %v2427, 16
        %v2583 = vrot.slane %v2581, 4
        %v2584 = vshll.u32 %v2427, 16
        %v2586 = vrot.slane %v2584, 5
        %v2587 = vor.u32 %v2583, %v2586
        %v2588 = vrot.slane %v2587, 4
        %v2590 = vshll.u32 %v2428, 16
        %v2592 = vrot.slane %v2590, 5
        %v2593 = vsel %vm1431, %v2588, %v2592
        %v2594 = vshrl.u32 %v2428, 16
        %v2596 = vrot.slane %v2594, 4
        %v2597 = vor.u32 %v2596, %v2592
        %v2598 = vrot.slane %v2597, 4
        %v2600 = vshll.u32 %v2429, 16
        %v2602 = vrot.slane %v2600, 5
        %v2603 = vsel %vm1431, %v2598, %v2602
        %v2605 = vshrl.u32 %v2430, 16
        %v2607 = vrot.slane %v2605, 4
        %v2608 = vshll.u32 %v2430, 16
        %v2610 = vrot.slane %v2608, 5
        %v2611 = vor.u32 %v2607, %v2610
        %v2612 = vrot.slane %v2611, 4
        %v2614 = vshll.u32 %v2431, 16
        %v2616 = vrot.slane %v2614, 5
        %v2617 = vsel %vm1431, %v2612, %v2616
        %v2618 = vshrl.u32 %v2431, 16
        %v2620 = vrot.slane %v2618, 4
        %v2621 = vor.u32 %v2620, %v2616
        %v2622 = vrot.slane %v2621, 4
        %v2624 = vshll.u32 %v2432, 16
        %v2626 = vrot.slane %v2624, 5
        %v2627 = vsel %vm1431, %v2622, %v2626
        %v2629 = vshrl.u32 %v2433, 16
        %v2631 = vrot.slane %v2629, 4
        %v2632 = vshll.u32 %v2433, 16
        %v2634 = vrot.slane %v2632, 5
        %v2635 = vor.u32 %v2631, %v2634
        %v2636 = vrot.slane %v2635, 4
        %v2638 = vshll.u32 %v2434, 16
        %v2640 = vrot.slane %v2638, 5
        %v2641 = vsel %vm1431, %v2636, %v2640
        %v2642 = vshrl.u32 %v2434, 16
        %v2644 = vrot.slane %v2642, 4
        %v2645 = vor.u32 %v2644, %v2640
        %v2646 = vrot.slane %v2645, 4
        %v2648 = vshll.u32 %v2435, 16
        %v2650 = vrot.slane %v2648, 5
        %v2651 = vsel %vm1431, %v2646, %v2650
        %v2653 = vshrl.u32 %v2436, 16
        %v2655 = vrot.slane %v2653, 4
        %v2656 = vshll.u32 %v2436, 16
        %v2658 = vrot.slane %v2656, 5
        %v2659 = vor.u32 %v2655, %v2658
        %v2660 = vrot.slane %v2659, 4
        %v2662 = vshll.u32 %v2437, 16
        %v2664 = vrot.slane %v2662, 5
        %v2665 = vsel %vm1431, %v2660, %v2664
        %v2666 = vshrl.u32 %v2437, 16
        %v2668 = vrot.slane %v2666, 4
        %v2669 = vor.u32 %v2668, %v2664
        %v2670 = vrot.slane %v2669, 4
        %v2672 = vshll.u32 %v2438, 16
        %v2674 = vrot.slane %v2672, 5
        %v2675 = vsel %vm1431, %v2670, %v2674
        %v2677 = vshrl.u32 %v2439, 16
        %v2679 = vrot.slane %v2677, 4
        %v2680 = vshll.u32 %v2439, 16
        %v2682 = vrot.slane %v2680, 5
        %v2683 = vor.u32 %v2679, %v2682
        %v2684 = vrot.slane %v2683, 4
        %v2686 = vshll.u32 %v2440, 16
        %v2688 = vrot.slane %v2686, 5
        %v2689 = vsel %vm1431, %v2684, %v2688
        %v2690 = vshrl.u32 %v2440, 16
        %v2692 = vrot.slane %v2690, 4
        %v2693 = vor.u32 %v2692, %v2688
        %v2694 = vrot.slane %v2693, 4
        %v2696 = vshll.u32 %v2441, 16
        %v2698 = vrot.slane %v2696, 5
        %v2699 = vsel %vm1431, %v2694, %v2698
        %v2701 = vshrl.u32 %v2442, 16
        %v2703 = vrot.slane %v2701, 4
        %v2704 = vshll.u32 %v2442, 16
        %v2706 = vrot.slane %v2704, 5
        %v2707 = vor.u32 %v2703, %v2706
        %v2708 = vrot.slane %v2707, 4
        %v2710 = vshll.u32 %v2443, 16
        %v2712 = vrot.slane %v2710, 5
        %v2713 = vsel %vm1431, %v2708, %v2712
        %v2714 = vshrl.u32 %v2443, 16
        %v2716 = vrot.slane %v2714, 4
        %v2717 = vor.u32 %v2716, %v2712
        %v2718 = vrot.slane %v2717, 4
        %v2720 = vshll.u32 %v2444, 16
        %v2722 = vrot.slane %v2720, 5
        %v2723 = vsel %vm1431, %v2718, %v2722
        %v2725 = vshrl.u32 %v2445, 16
        %v2727 = vrot.slane %v2725, 4
        %v2728 = vshll.u32 %v2445, 16
        %v2730 = vrot.slane %v2728, 5
        %v2731 = vor.u32 %v2727, %v2730
        %v2732 = vrot.slane %v2731, 4
        %v2734 = vshll.u32 %v2446, 16
        %v2736 = vrot.slane %v2734, 5
        %v2737 = vsel %vm1431, %v2732, %v2736
        %v2738 = vshrl.u32 %v2446, 16
        %v2740 = vrot.slane %v2738, 4
        %v2741 = vor.u32 %v2740, %v2736
        %v2742 = vrot.slane %v2741, 4
        %v2744 = vshll.u32 %v2447, 16
        %v2746 = vrot.slane %v2744, 5
        %v2747 = vsel %vm1431, %v2742, %v2746
        %v2749 = vshrl.u32 %v2448, 16
        %v2751 = vrot.slane %v2749, 4
        %v2752 = vshll.u32 %v2448, 16
        %v2754 = vrot.slane %v2752, 5
        %v2755 = vor.u32 %v2751, %v2754
        %v2756 = vrot.slane %v2755, 4
        %v2758 = vshll.u32 %v2449, 16
        %v2760 = vrot.slane %v2758, 5
        %v2761 = vsel %vm1431, %v2756, %v2760
        %v2762 = vshrl.u32 %v2449, 16
        %v2764 = vrot.slane %v2762, 4
        %v2765 = vor.u32 %v2764, %v2760
        %v2766 = vrot.slane %v2765, 4
        %v2768 = vshll.u32 %v2450, 16
        %v2770 = vrot.slane %v2768, 5
        %v2771 = vsel %vm1431, %v2766, %v2770
        %v2773 = vshrl.u32 %v2451, 16
        %v2775 = vrot.slane %v2773, 4
        %v2776 = vshll.u32 %v2451, 16
        %v2778 = vrot.slane %v2776, 5
        %v2779 = vor.u32 %v2775, %v2778
        %v2780 = vrot.slane %v2779, 4
        %v2782 = vshll.u32 %v2452, 16
        %v2784 = vrot.slane %v2782, 5
        %v2785 = vsel %vm1431, %v2780, %v2784
        %v2786 = vshrl.u32 %v2452, 16
        %v2788 = vrot.slane %v2786, 4
        %v2789 = vor.u32 %v2788, %v2784
        %v2790 = vrot.slane %v2789, 4
        %v2792 = vshll.u32 %v2453, 16
        %v2794 = vrot.slane %v2792, 5
        %v2795 = vsel %vm1431, %v2790, %v2794
        %v2797 = vshrl.u32 %v2454, 16
        %v2799 = vrot.slane %v2797, 4
        %v2800 = vshll.u32 %v2454, 16
        %v2802 = vrot.slane %v2800, 5
        %v2803 = vor.u32 %v2799, %v2802
        %v2804 = vrot.slane %v2803, 4
        %v2806 = vshll.u32 %v2455, 16
        %v2808 = vrot.slane %v2806, 5
        %v2809 = vsel %vm1431, %v2804, %v2808
        %v2810 = vshrl.u32 %v2455, 16
        %v2812 = vrot.slane %v2810, 4
        %v2813 = vor.u32 %v2812, %v2808
        %v2814 = vrot.slane %v2813, 4
        %v2816 = vshll.u32 %v2456, 16
        %v2818 = vrot.slane %v2816, 5
        %v2819 = vsel %vm1431, %v2814, %v2818
        %v2821 = vshrl.u32 %v2457, 16
        %v2823 = vrot.slane %v2821, 4
        %v2824 = vshll.u32 %v2457, 16
        %v2826 = vrot.slane %v2824, 5
        %v2827 = vor.u32 %v2823, %v2826
        %v2828 = vrot.slane %v2827, 4
        %v2830 = vshll.u32 %v2458, 16
        %v2832 = vrot.slane %v2830, 5
        %v2833 = vsel %vm1431, %v2828, %v2832
        %v2834 = vshrl.u32 %v2458, 16
        %v2836 = vrot.slane %v2834, 4
        %v2837 = vor.u32 %v2836, %v2832
        %v2838 = vrot.slane %v2837, 4
        %v2840 = vshll.u32 %v2459, 16
        %v2842 = vrot.slane %v2840, 5
        %v2843 = vsel %vm1431, %v2838, %v2842
        %2876 = vst.msk [vmem:[#allocation3 + $0x8] sm:$0xf] %vm738, %v2473
        %2877 = vst.msk [vmem:[#allocation3 + $0x1c] sm:$0xf] %vm738, %v2483
        %2878 = vst.msk [vmem:[#allocation3 + $0x30] sm:$0xf] %vm738, %v2497
        %2879 = vst.msk [vmem:[#allocation3 + $0x44] sm:$0xf] %vm738, %v2507
        %2880 = vst.msk [vmem:[#allocation3 + $0x58] sm:$0xf] %vm738, %v2521
        %2881 = vst.msk [vmem:[#allocation3 + $0x6c] sm:$0xf] %vm738, %v2531
        %2882 = vst.msk [vmem:[#allocation3 + $0x80] sm:$0xf] %vm738, %v2545
        %2883 = vst.msk [vmem:[#allocation3 + $0x94] sm:$0xf] %vm738, %v2555
        %2884 = vst.msk [vmem:[#allocation3 + $0xa8] sm:$0xf] %vm738, %v2569
        %2885 = vst.msk [vmem:[#allocation3 + $0xbc] sm:$0xf] %vm738, %v2579
        %2886 = vst.msk [vmem:[#allocation3 + $0xd0] sm:$0xf] %vm738, %v2593
        %2887 = vst.msk [vmem:[#allocation3 + $0xe4] sm:$0xf] %vm738, %v2603
        %2888 = vst.msk [vmem:[#allocation3 + $0xf8] sm:$0xf] %vm738, %v2617
        %2889 = vst.msk [vmem:[#allocation3 + $0x10c] sm:$0xf] %vm738, %v2627
        %2890 = vst.msk [vmem:[#allocation3 + $0x120] sm:$0xf] %vm738, %v2641
        %2891 = vst.msk [vmem:[#allocation3 + $0x134] sm:$0xf] %vm738, %v2651
        %2892 = vst.msk [vmem:[#allocation3 + $0x148] sm:$0xf] %vm738, %v2665
        %2893 = vst.msk [vmem:[#allocation3 + $0x15c] sm:$0xf] %vm738, %v2675
        %2894 = vst.msk [vmem:[#allocation3 + $0x170] sm:$0xf] %vm738, %v2689
        %2895 = vst.msk [vmem:[#allocation3 + $0x184] sm:$0xf] %vm738, %v2699
        %2896 = vst.msk [vmem:[#allocation3 + $0x198] sm:$0xf] %vm738, %v2713
        %2897 = vst.msk [vmem:[#allocation3 + $0x1ac] sm:$0xf] %vm738, %v2723
        %2898 = vst.msk [vmem:[#allocation3 + $0x1c0] sm:$0xf] %vm738, %v2737
        %2899 = vst.msk [vmem:[#allocation3 + $0x1d4] sm:$0xf] %vm738, %v2747
        %2900 = vst.msk [vmem:[#allocation3 + $0x1e8] sm:$0xf] %vm738, %v2761
        %2901 = vst.msk [vmem:[#allocation3 + $0x1fc] sm:$0xf] %vm738, %v2771
        %2902 = vst.msk [vmem:[#allocation3 + $0x210] sm:$0xf] %vm738, %v2785
        %2903 = vst.msk [vmem:[#allocation3 + $0x224] sm:$0xf] %vm738, %v2795
        %2904 = vst.msk [vmem:[#allocation3 + $0x238] sm:$0xf] %vm738, %v2809
        %2905 = vst.msk [vmem:[#allocation3 + $0x24c] sm:$0xf] %vm738, %v2819
        %2906 = vst.msk [vmem:[#allocation3 + $0x260] sm:$0xf] %vm738, %v2833
        %2907 = vst.msk [vmem:[#allocation3 + $0x274] sm:$0xf] %vm738, %v2843
        %v2908 = vld [vmem:[%s747] sm:$0xe]
        %v2909 = vld [vmem:[%s747 + $0x4] sm:$0xf]
        %v2910 = vld [vmem:[%s747 + $0x8] sm:$0x1]
        %v2911 = vld [vmem:[%s747 + $0xc] sm:$0xe]
        %v2912 = vld [vmem:[%s747 + $0x10] sm:$0xf]
        %v2913 = vld [vmem:[%s747 + $0x14] sm:$0x1]
        %v2914 = vld [vmem:[%s747 + $0x18] sm:$0xe]
        %v2915 = vld [vmem:[%s747 + $0x1c] sm:$0xf]
        %v2916 = vld [vmem:[%s747 + $0x20] sm:$0x1]
        %v2917 = vld [vmem:[%s747 + $0x24] sm:$0xe]
        %v2918 = vld [vmem:[%s747 + $0x28] sm:$0xf]
        %v2919 = vld [vmem:[%s747 + $0x2c] sm:$0x1]
        %v2920 = vld [vmem:[%s747 + $0x30] sm:$0xe]
        %v2921 = vld [vmem:[%s747 + $0x34] sm:$0xf]
        %v2922 = vld [vmem:[%s747 + $0x38] sm:$0x1]
        %v2923 = vld [vmem:[%s747 + $0x3c] sm:$0xe]
        %v2924 = vld [vmem:[%s747 + $0x40] sm:$0xf]
        %v2925 = vld [vmem:[%s747 + $0x44] sm:$0x1]
        %v2926 = vld [vmem:[%s747 + $0x48] sm:$0xe]
        %v2927 = vld [vmem:[%s747 + $0x4c] sm:$0xf]
        %v2928 = vld [vmem:[%s747 + $0x50] sm:$0x1]
        %v2929 = vld [vmem:[%s747 + $0x54] sm:$0xe]
        %v2930 = vld [vmem:[%s747 + $0x58] sm:$0xf]
        %v2931 = vld [vmem:[%s747 + $0x5c] sm:$0x1]
        %v2932 = vld [vmem:[%s747 + $0x60] sm:$0xe]
        %v2933 = vld [vmem:[%s747 + $0x64] sm:$0xf]
        %v2934 = vld [vmem:[%s747 + $0x68] sm:$0x1]
        %v2935 = vld [vmem:[%s747 + $0x6c] sm:$0xe]
        %v2936 = vld [vmem:[%s747 + $0x70] sm:$0xf]
        %v2937 = vld [vmem:[%s747 + $0x74] sm:$0x1]
        %v2938 = vld [vmem:[%s747 + $0x78] sm:$0xe]
        %v2939 = vld [vmem:[%s747 + $0x7c] sm:$0xf]
        %v2940 = vld [vmem:[%s747 + $0x80] sm:$0x1]
        %v2941 = vld [vmem:[%s747 + $0x84] sm:$0xe]
        %v2942 = vld [vmem:[%s747 + $0x88] sm:$0xf]
        %v2943 = vld [vmem:[%s747 + $0x8c] sm:$0x1]
        %v2944 = vld [vmem:[%s747 + $0x90] sm:$0xe]
        %v2945 = vld [vmem:[%s747 + $0x94] sm:$0xf]
        %v2946 = vld [vmem:[%s747 + $0x98] sm:$0x1]
        %v2947 = vld [vmem:[%s747 + $0x9c] sm:$0xe]
        %v2948 = vld [vmem:[%s747 + $0xa0] sm:$0xf]
        %v2949 = vld [vmem:[%s747 + $0xa4] sm:$0x1]
        %v2950 = vld [vmem:[%s747 + $0xa8] sm:$0xe]
        %v2951 = vld [vmem:[%s747 + $0xac] sm:$0xf]
        %v2952 = vld [vmem:[%s747 + $0xb0] sm:$0x1]
        %v2953 = vld [vmem:[%s747 + $0xb4] sm:$0xe]
        %v2954 = vld [vmem:[%s747 + $0xb8] sm:$0xf]
        %v2955 = vld [vmem:[%s747 + $0xbc] sm:$0x1]
        %v3004 = vrot.slane %v2908, 5
        %v3005 = vrot.slane %v3004, 4
        %v3006 = vrot.slane %v2909, 5
        %v3007 = vsel %vm2043, %v3005, %v3006
        %v3008 = vrot.slane %v3006, 4
        %v3009 = vrot.slane %v2910, 5
        %v3010 = vsel %vm2043, %v3008, %v3009
        %v3011 = vrot.slane %v2911, 5
        %v3012 = vrot.slane %v3011, 4
        %v3013 = vrot.slane %v2912, 5
        %v3014 = vsel %vm2043, %v3012, %v3013
        %v3015 = vrot.slane %v3013, 4
        %v3016 = vrot.slane %v2913, 5
        %v3017 = vsel %vm2043, %v3015, %v3016
        %v3018 = vrot.slane %v2914, 5
        %v3019 = vrot.slane %v3018, 4
        %v3020 = vrot.slane %v2915, 5
        %v3021 = vsel %vm2043, %v3019, %v3020
        %v3022 = vrot.slane %v3020, 4
        %v3023 = vrot.slane %v2916, 5
        %v3024 = vsel %vm2043, %v3022, %v3023
        %v3025 = vrot.slane %v2917, 5
        %v3026 = vrot.slane %v3025, 4
        %v3027 = vrot.slane %v2918, 5
        %v3028 = vsel %vm2043, %v3026, %v3027
        %v3029 = vrot.slane %v3027, 4
        %v3030 = vrot.slane %v2919, 5
        %v3031 = vsel %vm2043, %v3029, %v3030
        %v3032 = vrot.slane %v2920, 5
        %v3033 = vrot.slane %v3032, 4
        %v3034 = vrot.slane %v2921, 5
        %v3035 = vsel %vm2043, %v3033, %v3034
        %v3036 = vrot.slane %v3034, 4
        %v3037 = vrot.slane %v2922, 5
        %v3038 = vsel %vm2043, %v3036, %v3037
        %v3039 = vrot.slane %v2923, 5
        %v3040 = vrot.slane %v3039, 4
        %v3041 = vrot.slane %v2924, 5
        %v3042 = vsel %vm2043, %v3040, %v3041
        %v3043 = vrot.slane %v3041, 4
        %v3044 = vrot.slane %v2925, 5
        %v3045 = vsel %vm2043, %v3043, %v3044
        %v3046 = vrot.slane %v2926, 5
        %v3047 = vrot.slane %v3046, 4
        %v3048 = vrot.slane %v2927, 5
        %v3049 = vsel %vm2043, %v3047, %v3048
        %v3050 = vrot.slane %v3048, 4
        %v3051 = vrot.slane %v2928, 5
        %v3052 = vsel %vm2043, %v3050, %v3051
        %v3053 = vrot.slane %v2929, 5
        %v3054 = vrot.slane %v3053, 4
        %v3055 = vrot.slane %v2930, 5
        %v3056 = vsel %vm2043, %v3054, %v3055
        %v3057 = vrot.slane %v3055, 4
        %v3058 = vrot.slane %v2931, 5
        %v3059 = vsel %vm2043, %v3057, %v3058
        %v3060 = vrot.slane %v2932, 5
        %v3061 = vrot.slane %v3060, 4
        %v3062 = vrot.slane %v2933, 5
        %v3063 = vsel %vm2043, %v3061, %v3062
        %v3064 = vrot.slane %v3062, 4
        %v3065 = vrot.slane %v2934, 5
        %v3066 = vsel %vm2043, %v3064, %v3065
        %v3067 = vrot.slane %v2935, 5
        %v3068 = vrot.slane %v3067, 4
        %v3069 = vrot.slane %v2936, 5
        %v3070 = vsel %vm2043, %v3068, %v3069
        %v3071 = vrot.slane %v3069, 4
        %v3072 = vrot.slane %v2937, 5
        %v3073 = vsel %vm2043, %v3071, %v3072
        %v3074 = vrot.slane %v2938, 5
        %v3075 = vrot.slane %v3074, 4
        %v3076 = vrot.slane %v2939, 5
        %v3077 = vsel %vm2043, %v3075, %v3076
        %v3078 = vrot.slane %v3076, 4
        %v3079 = vrot.slane %v2940, 5
        %v3080 = vsel %vm2043, %v3078, %v3079
        %v3081 = vrot.slane %v2941, 5
        %v3082 = vrot.slane %v3081, 4
        %v3083 = vrot.slane %v2942, 5
        %v3084 = vsel %vm2043, %v3082, %v3083
        %v3085 = vrot.slane %v3083, 4
        %v3086 = vrot.slane %v2943, 5
        %v3087 = vsel %vm2043, %v3085, %v3086
        %v3088 = vrot.slane %v2944, 5
        %v3089 = vrot.slane %v3088, 4
        %v3090 = vrot.slane %v2945, 5
        %v3091 = vsel %vm2043, %v3089, %v3090
        %v3092 = vrot.slane %v3090, 4
        %v3093 = vrot.slane %v2946, 5
        %v3094 = vsel %vm2043, %v3092, %v3093
        %v3095 = vrot.slane %v2947, 5
        %v3096 = vrot.slane %v3095, 4
        %v3097 = vrot.slane %v2948, 5
        %v3098 = vsel %vm2043, %v3096, %v3097
        %v3099 = vrot.slane %v3097, 4
        %v3100 = vrot.slane %v2949, 5
        %v3101 = vsel %vm2043, %v3099, %v3100
        %v3102 = vrot.slane %v2950, 5
        %v3103 = vrot.slane %v3102, 4
        %v3104 = vrot.slane %v2951, 5
        %v3105 = vsel %vm2043, %v3103, %v3104
        %v3106 = vrot.slane %v3104, 4
        %v3107 = vrot.slane %v2952, 5
        %v3108 = vsel %vm2043, %v3106, %v3107
        %v3109 = vrot.slane %v2953, 5
        %v3110 = vrot.slane %v3109, 4
        %v3111 = vrot.slane %v2954, 5
        %v3112 = vsel %vm2043, %v3110, %v3111
        %v3113 = vrot.slane %v3111, 4
        %v3114 = vrot.slane %v2955, 5
        %v3115 = vsel %vm2043, %v3113, %v3114
        %3116 = vrot.lane.b32.xlu0 %v3007, 64
        %v3117 = vpop.permute.xlu0 %3116
        %3118 = vrot.lane.b32.xlu0 %v3010, 64
        %v3119 = vpop.permute.xlu0 %3118
        %3120 = vrot.lane.b32.xlu0 %v3014, 64
        %v3121 = vpop.permute.xlu0 %3120
        %3122 = vrot.lane.b32.xlu0 %v3017, 64
        %v3123 = vpop.permute.xlu0 %3122
        %3124 = vrot.lane.b32.xlu0 %v3021, 64
        %v3125 = vpop.permute.xlu0 %3124
        %3126 = vrot.lane.b32.xlu0 %v3024, 64
        %v3127 = vpop.permute.xlu0 %3126
        %3128 = vrot.lane.b32.xlu0 %v3028, 64
        %v3129 = vpop.permute.xlu0 %3128
        %3130 = vrot.lane.b32.xlu0 %v3031, 64
        %v3131 = vpop.permute.xlu0 %3130
        %3132 = vrot.lane.b32.xlu0 %v3035, 64
        %v3133 = vpop.permute.xlu0 %3132
        %3134 = vrot.lane.b32.xlu0 %v3038, 64
        %v3135 = vpop.permute.xlu0 %3134
        %3136 = vrot.lane.b32.xlu0 %v3042, 64
        %v3137 = vpop.permute.xlu0 %3136
        %3138 = vrot.lane.b32.xlu0 %v3045, 64
        %v3139 = vpop.permute.xlu0 %3138
        %3140 = vrot.lane.b32.xlu0 %v3049, 64
        %v3141 = vpop.permute.xlu0 %3140
        %3142 = vrot.lane.b32.xlu0 %v3052, 64
        %v3143 = vpop.permute.xlu0 %3142
        %3144 = vrot.lane.b32.xlu0 %v3056, 64
        %v3145 = vpop.permute.xlu0 %3144
        %3146 = vrot.lane.b32.xlu0 %v3059, 64
        %v3147 = vpop.permute.xlu0 %3146
        %3148 = vrot.lane.b32.xlu0 %v3063, 64
        %v3149 = vpop.permute.xlu0 %3148
        %3150 = vrot.lane.b32.xlu0 %v3066, 64
        %v3151 = vpop.permute.xlu0 %3150
        %3152 = vrot.lane.b32.xlu0 %v3070, 64
        %v3153 = vpop.permute.xlu0 %3152
        %3154 = vrot.lane.b32.xlu0 %v3073, 64
        %v3155 = vpop.permute.xlu0 %3154
        %3156 = vrot.lane.b32.xlu0 %v3077, 64
        %v3157 = vpop.permute.xlu0 %3156
        %3158 = vrot.lane.b32.xlu0 %v3080, 64
        %v3159 = vpop.permute.xlu0 %3158
        %3160 = vrot.lane.b32.xlu0 %v3084, 64
        %v3161 = vpop.permute.xlu0 %3160
        %3162 = vrot.lane.b32.xlu0 %v3087, 64
        %v3163 = vpop.permute.xlu0 %3162
        %3164 = vrot.lane.b32.xlu0 %v3091, 64
        %v3165 = vpop.permute.xlu0 %3164
        %3166 = vrot.lane.b32.xlu0 %v3094, 64
        %v3167 = vpop.permute.xlu0 %3166
        %3168 = vrot.lane.b32.xlu0 %v3098, 64
        %v3169 = vpop.permute.xlu0 %3168
        %3170 = vrot.lane.b32.xlu0 %v3101, 64
        %v3171 = vpop.permute.xlu0 %3170
        %3172 = vrot.lane.b32.xlu0 %v3105, 64
        %v3173 = vpop.permute.xlu0 %3172
        %3174 = vrot.lane.b32.xlu0 %v3108, 64
        %v3175 = vpop.permute.xlu0 %3174
        %3176 = vrot.lane.b32.xlu0 %v3112, 64
        %v3177 = vpop.permute.xlu0 %3176
        %3178 = vrot.lane.b32.xlu0 %v3115, 64
        %v3179 = vpop.permute.xlu0 %3178
        %3212 = vst.msk [vmem:[#allocation3 + $0x8] sm:$0xf] %vm1912, %v3117
        %3213 = vst.msk [vmem:[#allocation3 + $0x1c] sm:$0xf] %vm1912, %v3119
        %3214 = vst.msk [vmem:[#allocation3 + $0x30] sm:$0xf] %vm1912, %v3121
        %3215 = vst.msk [vmem:[#allocation3 + $0x44] sm:$0xf] %vm1912, %v3123
        %3216 = vst.msk [vmem:[#allocation3 + $0x58] sm:$0xf] %vm1912, %v3125
        %3217 = vst.msk [vmem:[#allocation3 + $0x6c] sm:$0xf] %vm1912, %v3127
        %3218 = vst.msk [vmem:[#allocation3 + $0x80] sm:$0xf] %vm1912, %v3129
        %3219 = vst.msk [vmem:[#allocation3 + $0x94] sm:$0xf] %vm1912, %v3131
        %3220 = vst.msk [vmem:[#allocation3 + $0xa8] sm:$0xf] %vm1912, %v3133
        %3221 = vst.msk [vmem:[#allocation3 + $0xbc] sm:$0xf] %vm1912, %v3135
        %3222 = vst.msk [vmem:[#allocation3 + $0xd0] sm:$0xf] %vm1912, %v3137
        %3223 = vst.msk [vmem:[#allocation3 + $0xe4] sm:$0xf] %vm1912, %v3139
        %3224 = vst.msk [vmem:[#allocation3 + $0xf8] sm:$0xf] %vm1912, %v3141
        %3225 = vst.msk [vmem:[#allocation3 + $0x10c] sm:$0xf] %vm1912, %v3143
        %3226 = vst.msk [vmem:[#allocation3 + $0x120] sm:$0xf] %vm1912, %v3145
        %3227 = vst.msk [vmem:[#allocation3 + $0x134] sm:$0xf] %vm1912, %v3147
        %3228 = vst.msk [vmem:[#allocation3 + $0x148] sm:$0xf] %vm1912, %v3149
        %3229 = vst.msk [vmem:[#allocation3 + $0x15c] sm:$0xf] %vm1912, %v3151
        %3230 = vst.msk [vmem:[#allocation3 + $0x170] sm:$0xf] %vm1912, %v3153
        %3231 = vst.msk [vmem:[#allocation3 + $0x184] sm:$0xf] %vm1912, %v3155
        %3232 = vst.msk [vmem:[#allocation3 + $0x198] sm:$0xf] %vm1912, %v3157
        %3233 = vst.msk [vmem:[#allocation3 + $0x1ac] sm:$0xf] %vm1912, %v3159
        %3234 = vst.msk [vmem:[#allocation3 + $0x1c0] sm:$0xf] %vm1912, %v3161
        %3235 = vst.msk [vmem:[#allocation3 + $0x1d4] sm:$0xf] %vm1912, %v3163
        %3236 = vst.msk [vmem:[#allocation3 + $0x1e8] sm:$0xf] %vm1912, %v3165
        %3237 = vst.msk [vmem:[#allocation3 + $0x1fc] sm:$0xf] %vm1912, %v3167
        %3238 = vst.msk [vmem:[#allocation3 + $0x210] sm:$0xf] %vm1912, %v3169
        %3239 = vst.msk [vmem:[#allocation3 + $0x224] sm:$0xf] %vm1912, %v3171
        %3240 = vst.msk [vmem:[#allocation3 + $0x238] sm:$0xf] %vm1912, %v3173
        %3241 = vst.msk [vmem:[#allocation3 + $0x24c] sm:$0xf] %vm1912, %v3175
        %3242 = vst.msk [vmem:[#allocation3 + $0x260] sm:$0xf] %vm1912, %v3177
        %3243 = vst.msk [vmem:[#allocation3 + $0x274] sm:$0xf] %vm1912, %v3179
        %s3244 = scalar_lea.vmem [#allocation2], 24
        %v3245 = vld [vmem:[%s3244] sm:$0xf]
        %v3246 = vld [vmem:[%s3244 + $0x4] sm:$0xf]
        %v3247 = vld [vmem:[%s3244 + $0xc] sm:$0xf]
        %v3248 = vld [vmem:[%s3244 + $0x10] sm:$0xf]
        %v3249 = vld [vmem:[%s3244 + $0x18] sm:$0xf]
        %v3250 = vld [vmem:[%s3244 + $0x1c] sm:$0xf]
        %v3251 = vld [vmem:[%s3244 + $0x24] sm:$0xf]
        %v3252 = vld [vmem:[%s3244 + $0x28] sm:$0xf]
        %v3253 = vld [vmem:[%s3244 + $0x30] sm:$0xf]
        %v3254 = vld [vmem:[%s3244 + $0x34] sm:$0xf]
        %v3255 = vld [vmem:[%s3244 + $0x3c] sm:$0xf]
        %v3256 = vld [vmem:[%s3244 + $0x40] sm:$0xf]
        %v3257 = vld [vmem:[%s3244 + $0x48] sm:$0xf]
        %v3258 = vld [vmem:[%s3244 + $0x4c] sm:$0xf]
        %v3259 = vld [vmem:[%s3244 + $0x54] sm:$0xf]
        %v3260 = vld [vmem:[%s3244 + $0x58] sm:$0xf]
        %v3261 = vld [vmem:[%s3244 + $0x60] sm:$0xf]
        %v3262 = vld [vmem:[%s3244 + $0x64] sm:$0xf]
        %v3263 = vld [vmem:[%s3244 + $0x6c] sm:$0xf]
        %v3264 = vld [vmem:[%s3244 + $0x70] sm:$0xf]
        %v3265 = vld [vmem:[%s3244 + $0x78] sm:$0xf]
        %v3266 = vld [vmem:[%s3244 + $0x7c] sm:$0xf]
        %v3267 = vld [vmem:[%s3244 + $0x84] sm:$0xf]
        %v3268 = vld [vmem:[%s3244 + $0x88] sm:$0xf]
        %v3269 = vld [vmem:[%s3244 + $0x90] sm:$0xf]
        %v3270 = vld [vmem:[%s3244 + $0x94] sm:$0xf]
        %v3271 = vld [vmem:[%s3244 + $0x9c] sm:$0xf]
        %v3272 = vld [vmem:[%s3244 + $0xa0] sm:$0xf]
        %v3273 = vld [vmem:[%s3244 + $0xa8] sm:$0xf]
        %v3274 = vld [vmem:[%s3244 + $0xac] sm:$0xf]
        %v3275 = vld [vmem:[%s3244 + $0xb4] sm:$0xf]
        %v3276 = vld [vmem:[%s3244 + $0xb8] sm:$0xf]
        %3277 = vst.msk [vmem:[#allocation3 + $0xc] sm:$0xf] %vm738, %v3245
        %3278 = vst.msk [vmem:[#allocation3 + $0x20] sm:$0xf] %vm738, %v3246
        %3279 = vst.msk [vmem:[#allocation3 + $0x34] sm:$0xf] %vm738, %v3247
        %3280 = vst.msk [vmem:[#allocation3 + $0x48] sm:$0xf] %vm738, %v3248
        %3281 = vst.msk [vmem:[#allocation3 + $0x5c] sm:$0xf] %vm738, %v3249
        %3282 = vst.msk [vmem:[#allocation3 + $0x70] sm:$0xf] %vm738, %v3250
        %3283 = vst.msk [vmem:[#allocation3 + $0x84] sm:$0xf] %vm738, %v3251
        %3284 = vst.msk [vmem:[#allocation3 + $0x98] sm:$0xf] %vm738, %v3252
        %3285 = vst.msk [vmem:[#allocation3 + $0xac] sm:$0xf] %vm738, %v3253
        %3286 = vst.msk [vmem:[#allocation3 + $0xc0] sm:$0xf] %vm738, %v3254
        %3287 = vst.msk [vmem:[#allocation3 + $0xd4] sm:$0xf] %vm738, %v3255
        %3288 = vst.msk [vmem:[#allocation3 + $0xe8] sm:$0xf] %vm738, %v3256
        %3289 = vst.msk [vmem:[#allocation3 + $0xfc] sm:$0xf] %vm738, %v3257
        %3290 = vst.msk [vmem:[#allocation3 + $0x110] sm:$0xf] %vm738, %v3258
        %3291 = vst.msk [vmem:[#allocation3 + $0x124] sm:$0xf] %vm738, %v3259
        %3292 = vst.msk [vmem:[#allocation3 + $0x138] sm:$0xf] %vm738, %v3260
        %3293 = vst.msk [vmem:[#allocation3 + $0x14c] sm:$0xf] %vm738, %v3261
        %3294 = vst.msk [vmem:[#allocation3 + $0x160] sm:$0xf] %vm738, %v3262
        %3295 = vst.msk [vmem:[#allocation3 + $0x174] sm:$0xf] %vm738, %v3263
        %3296 = vst.msk [vmem:[#allocation3 + $0x188] sm:$0xf] %vm738, %v3264
        %3297 = vst.msk [vmem:[#allocation3 + $0x19c] sm:$0xf] %vm738, %v3265
        %3298 = vst.msk [vmem:[#allocation3 + $0x1b0] sm:$0xf] %vm738, %v3266
        %3299 = vst.msk [vmem:[#allocation3 + $0x1c4] sm:$0xf] %vm738, %v3267
        %3300 = vst.msk [vmem:[#allocation3 + $0x1d8] sm:$0xf] %vm738, %v3268
        %3301 = vst.msk [vmem:[#allocation3 + $0x1ec] sm:$0xf] %vm738, %v3269
        %3302 = vst.msk [vmem:[#allocation3 + $0x200] sm:$0xf] %vm738, %v3270
        %3303 = vst.msk [vmem:[#allocation3 + $0x214] sm:$0xf] %vm738, %v3271
        %3304 = vst.msk [vmem:[#allocation3 + $0x228] sm:$0xf] %vm738, %v3272
        %3305 = vst.msk [vmem:[#allocation3 + $0x23c] sm:$0xf] %vm738, %v3273
        %3306 = vst.msk [vmem:[#allocation3 + $0x250] sm:$0xf] %vm738, %v3274
        %3307 = vst.msk [vmem:[#allocation3 + $0x264] sm:$0xf] %vm738, %v3275
        %3308 = vst.msk [vmem:[#allocation3 + $0x278] sm:$0xf] %vm738, %v3276
        %v3309 = vld [vmem:[%s3244] sm:$0xf]
        %v3310 = vld [vmem:[%s3244 + $0x4] sm:$0xf]
        %v3311 = vld [vmem:[%s3244 + $0x8] sm:$0x1]
        %v3312 = vld [vmem:[%s3244 + $0xc] sm:$0xf]
        %v3313 = vld [vmem:[%s3244 + $0x10] sm:$0xf]
        %v3314 = vld [vmem:[%s3244 + $0x14] sm:$0x1]
        %v3315 = vld [vmem:[%s3244 + $0x18] sm:$0xf]
        %v3316 = vld [vmem:[%s3244 + $0x1c] sm:$0xf]
        %v3317 = vld [vmem:[%s3244 + $0x20] sm:$0x1]
        %v3318 = vld [vmem:[%s3244 + $0x24] sm:$0xf]
        %v3319 = vld [vmem:[%s3244 + $0x28] sm:$0xf]
        %v3320 = vld [vmem:[%s3244 + $0x2c] sm:$0x1]
        %v3321 = vld [vmem:[%s3244 + $0x30] sm:$0xf]
        %v3322 = vld [vmem:[%s3244 + $0x34] sm:$0xf]
        %v3323 = vld [vmem:[%s3244 + $0x38] sm:$0x1]
        %v3324 = vld [vmem:[%s3244 + $0x3c] sm:$0xf]
        %v3325 = vld [vmem:[%s3244 + $0x40] sm:$0xf]
        %v3326 = vld [vmem:[%s3244 + $0x44] sm:$0x1]
        %v3327 = vld [vmem:[%s3244 + $0x48] sm:$0xf]
        %v3328 = vld [vmem:[%s3244 + $0x4c] sm:$0xf]
        %v3329 = vld [vmem:[%s3244 + $0x50] sm:$0x1]
        %v3330 = vld [vmem:[%s3244 + $0x54] sm:$0xf]
        %v3331 = vld [vmem:[%s3244 + $0x58] sm:$0xf]
        %v3332 = vld [vmem:[%s3244 + $0x5c] sm:$0x1]
        %v3333 = vld [vmem:[%s3244 + $0x60] sm:$0xf]
        %v3334 = vld [vmem:[%s3244 + $0x64] sm:$0xf]
        %v3335 = vld [vmem:[%s3244 + $0x68] sm:$0x1]
        %v3336 = vld [vmem:[%s3244 + $0x6c] sm:$0xf]
        %v3337 = vld [vmem:[%s3244 + $0x70] sm:$0xf]
        %v3338 = vld [vmem:[%s3244 + $0x74] sm:$0x1]
        %v3339 = vld [vmem:[%s3244 + $0x78] sm:$0xf]
        %v3340 = vld [vmem:[%s3244 + $0x7c] sm:$0xf]
        %v3341 = vld [vmem:[%s3244 + $0x80] sm:$0x1]
        %v3342 = vld [vmem:[%s3244 + $0x84] sm:$0xf]
        %v3343 = vld [vmem:[%s3244 + $0x88] sm:$0xf]
        %v3344 = vld [vmem:[%s3244 + $0x8c] sm:$0x1]
        %v3345 = vld [vmem:[%s3244 + $0x90] sm:$0xf]
        %v3346 = vld [vmem:[%s3244 + $0x94] sm:$0xf]
        %v3347 = vld [vmem:[%s3244 + $0x98] sm:$0x1]
        %v3348 = vld [vmem:[%s3244 + $0x9c] sm:$0xf]
        %v3349 = vld [vmem:[%s3244 + $0xa0] sm:$0xf]
        %v3350 = vld [vmem:[%s3244 + $0xa4] sm:$0x1]
        %v3351 = vld [vmem:[%s3244 + $0xa8] sm:$0xf]
        %v3352 = vld [vmem:[%s3244 + $0xac] sm:$0xf]
        %v3353 = vld [vmem:[%s3244 + $0xb0] sm:$0x1]
        %v3354 = vld [vmem:[%s3244 + $0xb4] sm:$0xf]
        %v3355 = vld [vmem:[%s3244 + $0xb8] sm:$0xf]
        %v3356 = vld [vmem:[%s3244 + $0xbc] sm:$0x1]
        %v3358 = vshrl.u32 %v3309, 16
        %v3360 = vrot.slane %v3358, 4
        %v3361 = vshll.u32 %v3309, 16
        %v3363 = vrot.slane %v3361, 5
        %v3364 = vor.u32 %v3360, %v3363
        %v3365 = vrot.slane %v3364, 4
        %v3367 = vshll.u32 %v3310, 16
        %v3369 = vrot.slane %v3367, 5
        %v3370 = vsel %vm1431, %v3365, %v3369
        %v3371 = vshrl.u32 %v3310, 16
        %v3373 = vrot.slane %v3371, 4
        %v3374 = vor.u32 %v3373, %v3369
        %v3375 = vrot.slane %v3374, 4
        %v3377 = vshll.u32 %v3311, 16
        %v3379 = vrot.slane %v3377, 5
        %v3380 = vsel %vm1431, %v3375, %v3379
        %v3382 = vshrl.u32 %v3312, 16
        %v3384 = vrot.slane %v3382, 4
        %v3385 = vshll.u32 %v3312, 16
        %v3387 = vrot.slane %v3385, 5
        %v3388 = vor.u32 %v3384, %v3387
        %v3389 = vrot.slane %v3388, 4
        %v3391 = vshll.u32 %v3313, 16
        %v3393 = vrot.slane %v3391, 5
        %v3394 = vsel %vm1431, %v3389, %v3393
        %v3395 = vshrl.u32 %v3313, 16
        %v3397 = vrot.slane %v3395, 4
        %v3398 = vor.u32 %v3397, %v3393
        %v3399 = vrot.slane %v3398, 4
        %v3401 = vshll.u32 %v3314, 16
        %v3403 = vrot.slane %v3401, 5
        %v3404 = vsel %vm1431, %v3399, %v3403
        %v3406 = vshrl.u32 %v3315, 16
        %v3408 = vrot.slane %v3406, 4
        %v3409 = vshll.u32 %v3315, 16
        %v3411 = vrot.slane %v3409, 5
        %v3412 = vor.u32 %v3408, %v3411
        %v3413 = vrot.slane %v3412, 4
        %v3415 = vshll.u32 %v3316, 16
        %v3417 = vrot.slane %v3415, 5
        %v3418 = vsel %vm1431, %v3413, %v3417
        %v3419 = vshrl.u32 %v3316, 16
        %v3421 = vrot.slane %v3419, 4
        %v3422 = vor.u32 %v3421, %v3417
        %v3423 = vrot.slane %v3422, 4
        %v3425 = vshll.u32 %v3317, 16
        %v3427 = vrot.slane %v3425, 5
        %v3428 = vsel %vm1431, %v3423, %v3427
        %v3430 = vshrl.u32 %v3318, 16
        %v3432 = vrot.slane %v3430, 4
        %v3433 = vshll.u32 %v3318, 16
        %v3435 = vrot.slane %v3433, 5
        %v3436 = vor.u32 %v3432, %v3435
        %v3437 = vrot.slane %v3436, 4
        %v3439 = vshll.u32 %v3319, 16
        %v3441 = vrot.slane %v3439, 5
        %v3442 = vsel %vm1431, %v3437, %v3441
        %v3443 = vshrl.u32 %v3319, 16
        %v3445 = vrot.slane %v3443, 4
        %v3446 = vor.u32 %v3445, %v3441
        %v3447 = vrot.slane %v3446, 4
        %v3449 = vshll.u32 %v3320, 16
        %v3451 = vrot.slane %v3449, 5
        %v3452 = vsel %vm1431, %v3447, %v3451
        %v3454 = vshrl.u32 %v3321, 16
        %v3456 = vrot.slane %v3454, 4
        %v3457 = vshll.u32 %v3321, 16
        %v3459 = vrot.slane %v3457, 5
        %v3460 = vor.u32 %v3456, %v3459
        %v3461 = vrot.slane %v3460, 4
        %v3463 = vshll.u32 %v3322, 16
        %v3465 = vrot.slane %v3463, 5
        %v3466 = vsel %vm1431, %v3461, %v3465
        %v3467 = vshrl.u32 %v3322, 16
        %v3469 = vrot.slane %v3467, 4
        %v3470 = vor.u32 %v3469, %v3465
        %v3471 = vrot.slane %v3470, 4
        %v3473 = vshll.u32 %v3323, 16
        %v3475 = vrot.slane %v3473, 5
        %v3476 = vsel %vm1431, %v3471, %v3475
        %v3478 = vshrl.u32 %v3324, 16
        %v3480 = vrot.slane %v3478, 4
        %v3481 = vshll.u32 %v3324, 16
        %v3483 = vrot.slane %v3481, 5
        %v3484 = vor.u32 %v3480, %v3483
        %v3485 = vrot.slane %v3484, 4
        %v3487 = vshll.u32 %v3325, 16
        %v3489 = vrot.slane %v3487, 5
        %v3490 = vsel %vm1431, %v3485, %v3489
        %v3491 = vshrl.u32 %v3325, 16
        %v3493 = vrot.slane %v3491, 4
        %v3494 = vor.u32 %v3493, %v3489
        %v3495 = vrot.slane %v3494, 4
        %v3497 = vshll.u32 %v3326, 16
        %v3499 = vrot.slane %v3497, 5
        %v3500 = vsel %vm1431, %v3495, %v3499
        %v3502 = vshrl.u32 %v3327, 16
        %v3504 = vrot.slane %v3502, 4
        %v3505 = vshll.u32 %v3327, 16
        %v3507 = vrot.slane %v3505, 5
        %v3508 = vor.u32 %v3504, %v3507
        %v3509 = vrot.slane %v3508, 4
        %v3511 = vshll.u32 %v3328, 16
        %v3513 = vrot.slane %v3511, 5
        %v3514 = vsel %vm1431, %v3509, %v3513
        %v3515 = vshrl.u32 %v3328, 16
        %v3517 = vrot.slane %v3515, 4
        %v3518 = vor.u32 %v3517, %v3513
        %v3519 = vrot.slane %v3518, 4
        %v3521 = vshll.u32 %v3329, 16
        %v3523 = vrot.slane %v3521, 5
        %v3524 = vsel %vm1431, %v3519, %v3523
        %v3526 = vshrl.u32 %v3330, 16
        %v3528 = vrot.slane %v3526, 4
        %v3529 = vshll.u32 %v3330, 16
        %v3531 = vrot.slane %v3529, 5
        %v3532 = vor.u32 %v3528, %v3531
        %v3533 = vrot.slane %v3532, 4
        %v3535 = vshll.u32 %v3331, 16
        %v3537 = vrot.slane %v3535, 5
        %v3538 = vsel %vm1431, %v3533, %v3537
        %v3539 = vshrl.u32 %v3331, 16
        %v3541 = vrot.slane %v3539, 4
        %v3542 = vor.u32 %v3541, %v3537
        %v3543 = vrot.slane %v3542, 4
        %v3545 = vshll.u32 %v3332, 16
        %v3547 = vrot.slane %v3545, 5
        %v3548 = vsel %vm1431, %v3543, %v3547
        %v3550 = vshrl.u32 %v3333, 16
        %v3552 = vrot.slane %v3550, 4
        %v3553 = vshll.u32 %v3333, 16
        %v3555 = vrot.slane %v3553, 5
        %v3556 = vor.u32 %v3552, %v3555
        %v3557 = vrot.slane %v3556, 4
        %v3559 = vshll.u32 %v3334, 16
        %v3561 = vrot.slane %v3559, 5
        %v3562 = vsel %vm1431, %v3557, %v3561
        %v3563 = vshrl.u32 %v3334, 16
        %v3565 = vrot.slane %v3563, 4
        %v3566 = vor.u32 %v3565, %v3561
        %v3567 = vrot.slane %v3566, 4
        %v3569 = vshll.u32 %v3335, 16
        %v3571 = vrot.slane %v3569, 5
        %v3572 = vsel %vm1431, %v3567, %v3571
        %v3574 = vshrl.u32 %v3336, 16
        %v3576 = vrot.slane %v3574, 4
        %v3577 = vshll.u32 %v3336, 16
        %v3579 = vrot.slane %v3577, 5
        %v3580 = vor.u32 %v3576, %v3579
        %v3581 = vrot.slane %v3580, 4
        %v3583 = vshll.u32 %v3337, 16
        %v3585 = vrot.slane %v3583, 5
        %v3586 = vsel %vm1431, %v3581, %v3585
        %v3587 = vshrl.u32 %v3337, 16
        %v3589 = vrot.slane %v3587, 4
        %v3590 = vor.u32 %v3589, %v3585
        %v3591 = vrot.slane %v3590, 4
        %v3593 = vshll.u32 %v3338, 16
        %v3595 = vrot.slane %v3593, 5
        %v3596 = vsel %vm1431, %v3591, %v3595
        %v3598 = vshrl.u32 %v3339, 16
        %v3600 = vrot.slane %v3598, 4
        %v3601 = vshll.u32 %v3339, 16
        %v3603 = vrot.slane %v3601, 5
        %v3604 = vor.u32 %v3600, %v3603
        %v3605 = vrot.slane %v3604, 4
        %v3607 = vshll.u32 %v3340, 16
        %v3609 = vrot.slane %v3607, 5
        %v3610 = vsel %vm1431, %v3605, %v3609
        %v3611 = vshrl.u32 %v3340, 16
        %v3613 = vrot.slane %v3611, 4
        %v3614 = vor.u32 %v3613, %v3609
        %v3615 = vrot.slane %v3614, 4
        %v3617 = vshll.u32 %v3341, 16
        %v3619 = vrot.slane %v3617, 5
        %v3620 = vsel %vm1431, %v3615, %v3619
        %v3622 = vshrl.u32 %v3342, 16
        %v3624 = vrot.slane %v3622, 4
        %v3625 = vshll.u32 %v3342, 16
        %v3627 = vrot.slane %v3625, 5
        %v3628 = vor.u32 %v3624, %v3627
        %v3629 = vrot.slane %v3628, 4
        %v3631 = vshll.u32 %v3343, 16
        %v3633 = vrot.slane %v3631, 5
        %v3634 = vsel %vm1431, %v3629, %v3633
        %v3635 = vshrl.u32 %v3343, 16
        %v3637 = vrot.slane %v3635, 4
        %v3638 = vor.u32 %v3637, %v3633
        %v3639 = vrot.slane %v3638, 4
        %v3641 = vshll.u32 %v3344, 16
        %v3643 = vrot.slane %v3641, 5
        %v3644 = vsel %vm1431, %v3639, %v3643
        %v3646 = vshrl.u32 %v3345, 16
        %v3648 = vrot.slane %v3646, 4
        %v3649 = vshll.u32 %v3345, 16
        %v3651 = vrot.slane %v3649, 5
        %v3652 = vor.u32 %v3648, %v3651
        %v3653 = vrot.slane %v3652, 4
        %v3655 = vshll.u32 %v3346, 16
        %v3657 = vrot.slane %v3655, 5
        %v3658 = vsel %vm1431, %v3653, %v3657
        %v3659 = vshrl.u32 %v3346, 16
        %v3661 = vrot.slane %v3659, 4
        %v3662 = vor.u32 %v3661, %v3657
        %v3663 = vrot.slane %v3662, 4
        %v3665 = vshll.u32 %v3347, 16
        %v3667 = vrot.slane %v3665, 5
        %v3668 = vsel %vm1431, %v3663, %v3667
        %v3670 = vshrl.u32 %v3348, 16
        %v3672 = vrot.slane %v3670, 4
        %v3673 = vshll.u32 %v3348, 16
        %v3675 = vrot.slane %v3673, 5
        %v3676 = vor.u32 %v3672, %v3675
        %v3677 = vrot.slane %v3676, 4
        %v3679 = vshll.u32 %v3349, 16
        %v3681 = vrot.slane %v3679, 5
        %v3682 = vsel %vm1431, %v3677, %v3681
        %v3683 = vshrl.u32 %v3349, 16
        %v3685 = vrot.slane %v3683, 4
        %v3686 = vor.u32 %v3685, %v3681
        %v3687 = vrot.slane %v3686, 4
        %v3689 = vshll.u32 %v3350, 16
        %v3691 = vrot.slane %v3689, 5
        %v3692 = vsel %vm1431, %v3687, %v3691
        %v3694 = vshrl.u32 %v3351, 16
        %v3696 = vrot.slane %v3694, 4
        %v3697 = vshll.u32 %v3351, 16
        %v3699 = vrot.slane %v3697, 5
        %v3700 = vor.u32 %v3696, %v3699
        %v3701 = vrot.slane %v3700, 4
        %v3703 = vshll.u32 %v3352, 16
        %v3705 = vrot.slane %v3703, 5
        %v3706 = vsel %vm1431, %v3701, %v3705
        %v3707 = vshrl.u32 %v3352, 16
        %v3709 = vrot.slane %v3707, 4
        %v3710 = vor.u32 %v3709, %v3705
        %v3711 = vrot.slane %v3710, 4
        %v3713 = vshll.u32 %v3353, 16
        %v3715 = vrot.slane %v3713, 5
        %v3716 = vsel %vm1431, %v3711, %v3715
        %v3718 = vshrl.u32 %v3354, 16
        %v3720 = vrot.slane %v3718, 4
        %v3721 = vshll.u32 %v3354, 16
        %v3723 = vrot.slane %v3721, 5
        %v3724 = vor.u32 %v3720, %v3723
        %v3725 = vrot.slane %v3724, 4
        %v3727 = vshll.u32 %v3355, 16
        %v3729 = vrot.slane %v3727, 5
        %v3730 = vsel %vm1431, %v3725, %v3729
        %v3731 = vshrl.u32 %v3355, 16
        %v3733 = vrot.slane %v3731, 4
        %v3734 = vor.u32 %v3733, %v3729
        %v3735 = vrot.slane %v3734, 4
        %v3737 = vshll.u32 %v3356, 16
        %v3739 = vrot.slane %v3737, 5
        %v3740 = vsel %vm1431, %v3735, %v3739
        %3741 = vrot.lane.b32.xlu0 %v3370, 64
        %v3742 = vpop.permute.xlu0 %3741
        %3743 = vrot.lane.b32.xlu0 %v3380, 64
        %v3744 = vpop.permute.xlu0 %3743
        %3745 = vrot.lane.b32.xlu0 %v3394, 64
        %v3746 = vpop.permute.xlu0 %3745
        %3747 = vrot.lane.b32.xlu0 %v3404, 64
        %v3748 = vpop.permute.xlu0 %3747
        %3749 = vrot.lane.b32.xlu0 %v3418, 64
        %v3750 = vpop.permute.xlu0 %3749
        %3751 = vrot.lane.b32.xlu0 %v3428, 64
        %v3752 = vpop.permute.xlu0 %3751
        %3753 = vrot.lane.b32.xlu0 %v3442, 64
        %v3754 = vpop.permute.xlu0 %3753
        %3755 = vrot.lane.b32.xlu0 %v3452, 64
        %v3756 = vpop.permute.xlu0 %3755
        %3757 = vrot.lane.b32.xlu0 %v3466, 64
        %v3758 = vpop.permute.xlu0 %3757
        %3759 = vrot.lane.b32.xlu0 %v3476, 64
        %v3760 = vpop.permute.xlu0 %3759
        %3761 = vrot.lane.b32.xlu0 %v3490, 64
        %v3762 = vpop.permute.xlu0 %3761
        %3763 = vrot.lane.b32.xlu0 %v3500, 64
        %v3764 = vpop.permute.xlu0 %3763
        %3765 = vrot.lane.b32.xlu0 %v3514, 64
        %v3766 = vpop.permute.xlu0 %3765
        %3767 = vrot.lane.b32.xlu0 %v3524, 64
        %v3768 = vpop.permute.xlu0 %3767
        %3769 = vrot.lane.b32.xlu0 %v3538, 64
        %v3770 = vpop.permute.xlu0 %3769
        %3771 = vrot.lane.b32.xlu0 %v3548, 64
        %v3772 = vpop.permute.xlu0 %3771
        %3773 = vrot.lane.b32.xlu0 %v3562, 64
        %v3774 = vpop.permute.xlu0 %3773
        %3775 = vrot.lane.b32.xlu0 %v3572, 64
        %v3776 = vpop.permute.xlu0 %3775
        %3777 = vrot.lane.b32.xlu0 %v3586, 64
        %v3778 = vpop.permute.xlu0 %3777
        %3779 = vrot.lane.b32.xlu0 %v3596, 64
        %v3780 = vpop.permute.xlu0 %3779
        %3781 = vrot.lane.b32.xlu0 %v3610, 64
        %v3782 = vpop.permute.xlu0 %3781
        %3783 = vrot.lane.b32.xlu0 %v3620, 64
        %v3784 = vpop.permute.xlu0 %3783
        %3785 = vrot.lane.b32.xlu0 %v3634, 64
        %v3786 = vpop.permute.xlu0 %3785
        %3787 = vrot.lane.b32.xlu0 %v3644, 64
        %v3788 = vpop.permute.xlu0 %3787
        %3789 = vrot.lane.b32.xlu0 %v3658, 64
        %v3790 = vpop.permute.xlu0 %3789
        %3791 = vrot.lane.b32.xlu0 %v3668, 64
        %v3792 = vpop.permute.xlu0 %3791
        %3793 = vrot.lane.b32.xlu0 %v3682, 64
        %v3794 = vpop.permute.xlu0 %3793
        %3795 = vrot.lane.b32.xlu0 %v3692, 64
        %v3796 = vpop.permute.xlu0 %3795
        %3797 = vrot.lane.b32.xlu0 %v3706, 64
        %v3798 = vpop.permute.xlu0 %3797
        %3799 = vrot.lane.b32.xlu0 %v3716, 64
        %v3800 = vpop.permute.xlu0 %3799
        %3801 = vrot.lane.b32.xlu0 %v3730, 64
        %v3802 = vpop.permute.xlu0 %3801
        %3803 = vrot.lane.b32.xlu0 %v3740, 64
        %v3804 = vpop.permute.xlu0 %3803
        %3837 = vst.msk [vmem:[#allocation3 + $0xc] sm:$0xf] %vm1912, %v3742
        %3838 = vst.msk [vmem:[#allocation3 + $0x20] sm:$0xf] %vm1912, %v3744
        %3839 = vst.msk [vmem:[#allocation3 + $0x34] sm:$0xf] %vm1912, %v3746
        %3840 = vst.msk [vmem:[#allocation3 + $0x48] sm:$0xf] %vm1912, %v3748
        %3841 = vst.msk [vmem:[#allocation3 + $0x5c] sm:$0xf] %vm1912, %v3750
        %3842 = vst.msk [vmem:[#allocation3 + $0x70] sm:$0xf] %vm1912, %v3752
        %3843 = vst.msk [vmem:[#allocation3 + $0x84] sm:$0xf] %vm1912, %v3754
        %3844 = vst.msk [vmem:[#allocation3 + $0x98] sm:$0xf] %vm1912, %v3756
        %3845 = vst.msk [vmem:[#allocation3 + $0xac] sm:$0xf] %vm1912, %v3758
        %3846 = vst.msk [vmem:[#allocation3 + $0xc0] sm:$0xf] %vm1912, %v3760
        %3847 = vst.msk [vmem:[#allocation3 + $0xd4] sm:$0xf] %vm1912, %v3762
        %3848 = vst.msk [vmem:[#allocation3 + $0xe8] sm:$0xf] %vm1912, %v3764
        %3849 = vst.msk [vmem:[#allocation3 + $0xfc] sm:$0xf] %vm1912, %v3766
        %3850 = vst.msk [vmem:[#allocation3 + $0x110] sm:$0xf] %vm1912, %v3768
        %3851 = vst.msk [vmem:[#allocation3 + $0x124] sm:$0xf] %vm1912, %v3770
        %3852 = vst.msk [vmem:[#allocation3 + $0x138] sm:$0xf] %vm1912, %v3772
        %3853 = vst.msk [vmem:[#allocation3 + $0x14c] sm:$0xf] %vm1912, %v3774
        %3854 = vst.msk [vmem:[#allocation3 + $0x160] sm:$0xf] %vm1912, %v3776
        %3855 = vst.msk [vmem:[#allocation3 + $0x174] sm:$0xf] %vm1912, %v3778
        %3856 = vst.msk [vmem:[#allocation3 + $0x188] sm:$0xf] %vm1912, %v3780
        %3857 = vst.msk [vmem:[#allocation3 + $0x19c] sm:$0xf] %vm1912, %v3782
        %3858 = vst.msk [vmem:[#allocation3 + $0x1b0] sm:$0xf] %vm1912, %v3784
        %3859 = vst.msk [vmem:[#allocation3 + $0x1c4] sm:$0xf] %vm1912, %v3786
        %3860 = vst.msk [vmem:[#allocation3 + $0x1d8] sm:$0xf] %vm1912, %v3788
        %3861 = vst.msk [vmem:[#allocation3 + $0x1ec] sm:$0xf] %vm1912, %v3790
        %3862 = vst.msk [vmem:[#allocation3 + $0x200] sm:$0xf] %vm1912, %v3792
        %3863 = vst.msk [vmem:[#allocation3 + $0x214] sm:$0xf] %vm1912, %v3794
        %3864 = vst.msk [vmem:[#allocation3 + $0x228] sm:$0xf] %vm1912, %v3796
        %3865 = vst.msk [vmem:[#allocation3 + $0x23c] sm:$0xf] %vm1912, %v3798
        %3866 = vst.msk [vmem:[#allocation3 + $0x250] sm:$0xf] %vm1912, %v3800
        %3867 = vst.msk [vmem:[#allocation3 + $0x264] sm:$0xf] %vm1912, %v3802
        %3868 = vst.msk [vmem:[#allocation3 + $0x278] sm:$0xf] %vm1912, %v3804
        %v3869 = vld [vmem:[%s3244] sm:$0xe]
        %v3870 = vld [vmem:[%s3244 + $0x4] sm:$0xf]
        %v3871 = vld [vmem:[%s3244 + $0x8] sm:$0x1]
        %v3872 = vld [vmem:[%s3244 + $0xc] sm:$0xe]
        %v3873 = vld [vmem:[%s3244 + $0x10] sm:$0xf]
        %v3874 = vld [vmem:[%s3244 + $0x14] sm:$0x1]
        %v3875 = vld [vmem:[%s3244 + $0x18] sm:$0xe]
        %v3876 = vld [vmem:[%s3244 + $0x1c] sm:$0xf]
        %v3877 = vld [vmem:[%s3244 + $0x20] sm:$0x1]
        %v3878 = vld [vmem:[%s3244 + $0x24] sm:$0xe]
        %v3879 = vld [vmem:[%s3244 + $0x28] sm:$0xf]
        %v3880 = vld [vmem:[%s3244 + $0x2c] sm:$0x1]
        %v3881 = vld [vmem:[%s3244 + $0x30] sm:$0xe]
        %v3882 = vld [vmem:[%s3244 + $0x34] sm:$0xf]
        %v3883 = vld [vmem:[%s3244 + $0x38] sm:$0x1]
        %v3884 = vld [vmem:[%s3244 + $0x3c] sm:$0xe]
        %v3885 = vld [vmem:[%s3244 + $0x40] sm:$0xf]
        %v3886 = vld [vmem:[%s3244 + $0x44] sm:$0x1]
        %v3887 = vld [vmem:[%s3244 + $0x48] sm:$0xe]
        %v3888 = vld [vmem:[%s3244 + $0x4c] sm:$0xf]
        %v3889 = vld [vmem:[%s3244 + $0x50] sm:$0x1]
        %v3890 = vld [vmem:[%s3244 + $0x54] sm:$0xe]
        %v3891 = vld [vmem:[%s3244 + $0x58] sm:$0xf]
        %v3892 = vld [vmem:[%s3244 + $0x5c] sm:$0x1]
        %v3893 = vld [vmem:[%s3244 + $0x60] sm:$0xe]
        %v3894 = vld [vmem:[%s3244 + $0x64] sm:$0xf]
        %v3895 = vld [vmem:[%s3244 + $0x68] sm:$0x1]
        %v3896 = vld [vmem:[%s3244 + $0x6c] sm:$0xe]
        %v3897 = vld [vmem:[%s3244 + $0x70] sm:$0xf]
        %v3898 = vld [vmem:[%s3244 + $0x74] sm:$0x1]
        %v3899 = vld [vmem:[%s3244 + $0x78] sm:$0xe]
        %v3900 = vld [vmem:[%s3244 + $0x7c] sm:$0xf]
        %v3901 = vld [vmem:[%s3244 + $0x80] sm:$0x1]
        %v3902 = vld [vmem:[%s3244 + $0x84] sm:$0xe]
        %v3903 = vld [vmem:[%s3244 + $0x88] sm:$0xf]
        %v3904 = vld [vmem:[%s3244 + $0x8c] sm:$0x1]
        %v3905 = vld [vmem:[%s3244 + $0x90] sm:$0xe]
        %v3906 = vld [vmem:[%s3244 + $0x94] sm:$0xf]
        %v3907 = vld [vmem:[%s3244 + $0x98] sm:$0x1]
        %v3908 = vld [vmem:[%s3244 + $0x9c] sm:$0xe]
        %v3909 = vld [vmem:[%s3244 + $0xa0] sm:$0xf]
        %v3910 = vld [vmem:[%s3244 + $0xa4] sm:$0x1]
        %v3911 = vld [vmem:[%s3244 + $0xa8] sm:$0xe]
        %v3912 = vld [vmem:[%s3244 + $0xac] sm:$0xf]
        %v3913 = vld [vmem:[%s3244 + $0xb0] sm:$0x1]
        %v3914 = vld [vmem:[%s3244 + $0xb4] sm:$0xe]
        %v3915 = vld [vmem:[%s3244 + $0xb8] sm:$0xf]
        %v3916 = vld [vmem:[%s3244 + $0xbc] sm:$0x1]
        %v3965 = vrot.slane %v3869, 5
        %v3966 = vrot.slane %v3965, 4
        %v3967 = vrot.slane %v3870, 5
        %v3968 = vsel %vm2043, %v3966, %v3967
        %v3969 = vrot.slane %v3967, 4
        %v3970 = vrot.slane %v3871, 5
        %v3971 = vsel %vm2043, %v3969, %v3970
        %v3972 = vrot.slane %v3872, 5
        %v3973 = vrot.slane %v3972, 4
        %v3974 = vrot.slane %v3873, 5
        %v3975 = vsel %vm2043, %v3973, %v3974
        %v3976 = vrot.slane %v3974, 4
        %v3977 = vrot.slane %v3874, 5
        %v3978 = vsel %vm2043, %v3976, %v3977
        %v3979 = vrot.slane %v3875, 5
        %v3980 = vrot.slane %v3979, 4
        %v3981 = vrot.slane %v3876, 5
        %v3982 = vsel %vm2043, %v3980, %v3981
        %v3983 = vrot.slane %v3981, 4
        %v3984 = vrot.slane %v3877, 5
        %v3985 = vsel %vm2043, %v3983, %v3984
        %v3986 = vrot.slane %v3878, 5
        %v3987 = vrot.slane %v3986, 4
        %v3988 = vrot.slane %v3879, 5
        %v3989 = vsel %vm2043, %v3987, %v3988
        %v3990 = vrot.slane %v3988, 4
        %v3991 = vrot.slane %v3880, 5
        %v3992 = vsel %vm2043, %v3990, %v3991
        %v3993 = vrot.slane %v3881, 5
        %v3994 = vrot.slane %v3993, 4
        %v3995 = vrot.slane %v3882, 5
        %v3996 = vsel %vm2043, %v3994, %v3995
        %v3997 = vrot.slane %v3995, 4
        %v3998 = vrot.slane %v3883, 5
        %v3999 = vsel %vm2043, %v3997, %v3998
        %v4000 = vrot.slane %v3884, 5
        %v4001 = vrot.slane %v4000, 4
        %v4002 = vrot.slane %v3885, 5
        %v4003 = vsel %vm2043, %v4001, %v4002
        %v4004 = vrot.slane %v4002, 4
        %v4005 = vrot.slane %v3886, 5
        %v4006 = vsel %vm2043, %v4004, %v4005
        %v4007 = vrot.slane %v3887, 5
        %v4008 = vrot.slane %v4007, 4
        %v4009 = vrot.slane %v3888, 5
        %v4010 = vsel %vm2043, %v4008, %v4009
        %v4011 = vrot.slane %v4009, 4
        %v4012 = vrot.slane %v3889, 5
        %v4013 = vsel %vm2043, %v4011, %v4012
        %v4014 = vrot.slane %v3890, 5
        %v4015 = vrot.slane %v4014, 4
        %v4016 = vrot.slane %v3891, 5
        %v4017 = vsel %vm2043, %v4015, %v4016
        %v4018 = vrot.slane %v4016, 4
        %v4019 = vrot.slane %v3892, 5
        %v4020 = vsel %vm2043, %v4018, %v4019
        %v4021 = vrot.slane %v3893, 5
        %v4022 = vrot.slane %v4021, 4
        %v4023 = vrot.slane %v3894, 5
        %v4024 = vsel %vm2043, %v4022, %v4023
        %v4025 = vrot.slane %v4023, 4
        %v4026 = vrot.slane %v3895, 5
        %v4027 = vsel %vm2043, %v4025, %v4026
        %v4028 = vrot.slane %v3896, 5
        %v4029 = vrot.slane %v4028, 4
        %v4030 = vrot.slane %v3897, 5
        %v4031 = vsel %vm2043, %v4029, %v4030
        %v4032 = vrot.slane %v4030, 4
        %v4033 = vrot.slane %v3898, 5
        %v4034 = vsel %vm2043, %v4032, %v4033
        %v4035 = vrot.slane %v3899, 5
        %v4036 = vrot.slane %v4035, 4
        %v4037 = vrot.slane %v3900, 5
        %v4038 = vsel %vm2043, %v4036, %v4037
        %v4039 = vrot.slane %v4037, 4
        %v4040 = vrot.slane %v3901, 5
        %v4041 = vsel %vm2043, %v4039, %v4040
        %v4042 = vrot.slane %v3902, 5
        %v4043 = vrot.slane %v4042, 4
        %v4044 = vrot.slane %v3903, 5
        %v4045 = vsel %vm2043, %v4043, %v4044
        %v4046 = vrot.slane %v4044, 4
        %v4047 = vrot.slane %v3904, 5
        %v4048 = vsel %vm2043, %v4046, %v4047
        %v4049 = vrot.slane %v3905, 5
        %v4050 = vrot.slane %v4049, 4
        %v4051 = vrot.slane %v3906, 5
        %v4052 = vsel %vm2043, %v4050, %v4051
        %v4053 = vrot.slane %v4051, 4
        %v4054 = vrot.slane %v3907, 5
        %v4055 = vsel %vm2043, %v4053, %v4054
        %v4056 = vrot.slane %v3908, 5
        %v4057 = vrot.slane %v4056, 4
        %v4058 = vrot.slane %v3909, 5
        %v4059 = vsel %vm2043, %v4057, %v4058
        %v4060 = vrot.slane %v4058, 4
        %v4061 = vrot.slane %v3910, 5
        %v4062 = vsel %vm2043, %v4060, %v4061
        %v4063 = vrot.slane %v3911, 5
        %v4064 = vrot.slane %v4063, 4
        %v4065 = vrot.slane %v3912, 5
        %v4066 = vsel %vm2043, %v4064, %v4065
        %v4067 = vrot.slane %v4065, 4
        %v4068 = vrot.slane %v3913, 5
        %v4069 = vsel %vm2043, %v4067, %v4068
        %v4070 = vrot.slane %v3914, 5
        %v4071 = vrot.slane %v4070, 4
        %v4072 = vrot.slane %v3915, 5
        %v4073 = vsel %vm2043, %v4071, %v4072
        %v4074 = vrot.slane %v4072, 4
        %v4075 = vrot.slane %v3916, 5
        %v4076 = vsel %vm2043, %v4074, %v4075
        %4109 = vst.msk [vmem:[#allocation3 + $0x10] sm:$0xf] %vm738, %v3968
        %4110 = vst.msk [vmem:[#allocation3 + $0x24] sm:$0xf] %vm738, %v3971
        %4111 = vst.msk [vmem:[#allocation3 + $0x38] sm:$0xf] %vm738, %v3975
        %4112 = vst.msk [vmem:[#allocation3 + $0x4c] sm:$0xf] %vm738, %v3978
        %4113 = vst.msk [vmem:[#allocation3 + $0x60] sm:$0xf] %vm738, %v3982
        %4114 = vst.msk [vmem:[#allocation3 + $0x74] sm:$0xf] %vm738, %v3985
        %4115 = vst.msk [vmem:[#allocation3 + $0x88] sm:$0xf] %vm738, %v3989
        %4116 = vst.msk [vmem:[#allocation3 + $0x9c] sm:$0xf] %vm738, %v3992
        %4117 = vst.msk [vmem:[#allocation3 + $0xb0] sm:$0xf] %vm738, %v3996
        %4118 = vst.msk [vmem:[#allocation3 + $0xc4] sm:$0xf] %vm738, %v3999
        %4119 = vst.msk [vmem:[#allocation3 + $0xd8] sm:$0xf] %vm738, %v4003
        %4120 = vst.msk [vmem:[#allocation3 + $0xec] sm:$0xf] %vm738, %v4006
        %4121 = vst.msk [vmem:[#allocation3 + $0x100] sm:$0xf] %vm738, %v4010
        %4122 = vst.msk [vmem:[#allocation3 + $0x114] sm:$0xf] %vm738, %v4013
        %4123 = vst.msk [vmem:[#allocation3 + $0x128] sm:$0xf] %vm738, %v4017
        %4124 = vst.msk [vmem:[#allocation3 + $0x13c] sm:$0xf] %vm738, %v4020
        %4125 = vst.msk [vmem:[#allocation3 + $0x150] sm:$0xf] %vm738, %v4024
        %4126 = vst.msk [vmem:[#allocation3 + $0x164] sm:$0xf] %vm738, %v4027
        %4127 = vst.msk [vmem:[#allocation3 + $0x178] sm:$0xf] %vm738, %v4031
        %4128 = vst.msk [vmem:[#allocation3 + $0x18c] sm:$0xf] %vm738, %v4034
        %4129 = vst.msk [vmem:[#allocation3 + $0x1a0] sm:$0xf] %vm738, %v4038
        %4130 = vst.msk [vmem:[#allocation3 + $0x1b4] sm:$0xf] %vm738, %v4041
        %4131 = vst.msk [vmem:[#allocation3 + $0x1c8] sm:$0xf] %vm738, %v4045
        %4132 = vst.msk [vmem:[#allocation3 + $0x1dc] sm:$0xf] %vm738, %v4048
        %4133 = vst.msk [vmem:[#allocation3 + $0x1f0] sm:$0xf] %vm738, %v4052
        %4134 = vst.msk [vmem:[#allocation3 + $0x204] sm:$0xf] %vm738, %v4055
        %4135 = vst.msk [vmem:[#allocation3 + $0x218] sm:$0xf] %vm738, %v4059
        %4136 = vst.msk [vmem:[#allocation3 + $0x22c] sm:$0xf] %vm738, %v4062
        %4137 = vst.msk [vmem:[#allocation3 + $0x240] sm:$0xf] %vm738, %v4066
        %4138 = vst.msk [vmem:[#allocation3 + $0x254] sm:$0xf] %vm738, %v4069
        %4139 = vst.msk [vmem:[#allocation3 + $0x268] sm:$0xf] %vm738, %v4073
        %4140 = vst.msk [vmem:[#allocation3 + $0x27c] sm:$0xf] %vm738, %v4076
        %v4141 = vld [vmem:[#allocation3] sm:$0xff]
        %v4142 = vld [vmem:[#allocation3 + $0x8] sm:$0xff]
        %v4143 = vld [vmem:[#allocation3 + $0x10] sm:$0xf]
        %v4144 = vld [vmem:[#allocation3 + $0x14] sm:$0xff]
        %v4145 = vld [vmem:[#allocation3 + $0x1c] sm:$0xff]
        %v4146 = vld [vmem:[#allocation3 + $0x24] sm:$0xf]
        %v4147 = vld [vmem:[#allocation3 + $0x28] sm:$0xff]
        %v4148 = vld [vmem:[#allocation3 + $0x30] sm:$0xff]
        %v4149 = vld [vmem:[#allocation3 + $0x38] sm:$0xf]
        %v4150 = vld [vmem:[#allocation3 + $0x3c] sm:$0xff]
        %v4151 = vld [vmem:[#allocation3 + $0x44] sm:$0xff]
        %v4152 = vld [vmem:[#allocation3 + $0x4c] sm:$0xf]
        %v4153 = vld [vmem:[#allocation3 + $0x50] sm:$0xff]
        %v4154 = vld [vmem:[#allocation3 + $0x58] sm:$0xff]
        %v4155 = vld [vmem:[#allocation3 + $0x60] sm:$0xf]
        %v4156 = vld [vmem:[#allocation3 + $0x64] sm:$0xff]
        %v4157 = vld [vmem:[#allocation3 + $0x6c] sm:$0xff]
        %v4158 = vld [vmem:[#allocation3 + $0x74] sm:$0xf]
        %v4159 = vld [vmem:[#allocation3 + $0x78] sm:$0xff]
        %v4160 = vld [vmem:[#allocation3 + $0x80] sm:$0xff]
        %v4161 = vld [vmem:[#allocation3 + $0x88] sm:$0xf]
        %v4162 = vld [vmem:[#allocation3 + $0x8c] sm:$0xff]
        %v4163 = vld [vmem:[#allocation3 + $0x94] sm:$0xff]
        %v4164 = vld [vmem:[#allocation3 + $0x9c] sm:$0xf]
        %v4165 = vld [vmem:[#allocation3 + $0xa0] sm:$0xff]
        %v4166 = vld [vmem:[#allocation3 + $0xa8] sm:$0xff]
        %v4167 = vld [vmem:[#allocation3 + $0xb0] sm:$0xf]
        %v4168 = vld [vmem:[#allocation3 + $0xb4] sm:$0xff]
        %v4169 = vld [vmem:[#allocation3 + $0xbc] sm:$0xff]
        %v4170 = vld [vmem:[#allocation3 + $0xc4] sm:$0xf]
        %v4171 = vld [vmem:[#allocation3 + $0xc8] sm:$0xff]
        %v4172 = vld [vmem:[#allocation3 + $0xd0] sm:$0xff]
        %v4173 = vld [vmem:[#allocation3 + $0xd8] sm:$0xf]
        %v4174 = vld [vmem:[#allocation3 + $0xdc] sm:$0xff]
        %v4175 = vld [vmem:[#allocation3 + $0xe4] sm:$0xff]
        %v4176 = vld [vmem:[#allocation3 + $0xec] sm:$0xf]
        %v4177 = vld [vmem:[#allocation3 + $0xf0] sm:$0xff]
        %v4178 = vld [vmem:[#allocation3 + $0xf8] sm:$0xff]
        %v4179 = vld [vmem:[#allocation3 + $0x100] sm:$0xf]
        %v4180 = vld [vmem:[#allocation3 + $0x104] sm:$0xff]
        %v4181 = vld [vmem:[#allocation3 + $0x10c] sm:$0xff]
        %v4182 = vld [vmem:[#allocation3 + $0x114] sm:$0xf]
        %v4183 = vld [vmem:[#allocation3 + $0x118] sm:$0xff]
        %v4184 = vld [vmem:[#allocation3 + $0x120] sm:$0xff]
        %v4185 = vld [vmem:[#allocation3 + $0x128] sm:$0xf]
        %v4186 = vld [vmem:[#allocation3 + $0x12c] sm:$0xff]
        %v4187 = vld [vmem:[#allocation3 + $0x134] sm:$0xff]
        %v4188 = vld [vmem:[#allocation3 + $0x13c] sm:$0xf]
        %v4189 = vld [vmem:[#allocation3 + $0x140] sm:$0xff]
        %v4190 = vld [vmem:[#allocation3 + $0x148] sm:$0xff]
        %v4191 = vld [vmem:[#allocation3 + $0x150] sm:$0xf]
        %v4192 = vld [vmem:[#allocation3 + $0x154] sm:$0xff]
        %v4193 = vld [vmem:[#allocation3 + $0x15c] sm:$0xff]
        %v4194 = vld [vmem:[#allocation3 + $0x164] sm:$0xf]
        %v4195 = vld [vmem:[#allocation3 + $0x168] sm:$0xff]
        %v4196 = vld [vmem:[#allocation3 + $0x170] sm:$0xff]
        %v4197 = vld [vmem:[#allocation3 + $0x178] sm:$0xf]
        %v4198 = vld [vmem:[#allocation3 + $0x17c] sm:$0xff]
        %v4199 = vld [vmem:[#allocation3 + $0x184] sm:$0xff]
        %v4200 = vld [vmem:[#allocation3 + $0x18c] sm:$0xf]
        %v4201 = vld [vmem:[#allocation3 + $0x190] sm:$0xff]
        %v4202 = vld [vmem:[#allocation3 + $0x198] sm:$0xff]
        %v4203 = vld [vmem:[#allocation3 + $0x1a0] sm:$0xf]
        %v4204 = vld [vmem:[#allocation3 + $0x1a4] sm:$0xff]
        %v4205 = vld [vmem:[#allocation3 + $0x1ac] sm:$0xff]
        %v4206 = vld [vmem:[#allocation3 + $0x1b4] sm:$0xf]
        %v4207 = vld [vmem:[#allocation3 + $0x1b8] sm:$0xff]
        %v4208 = vld [vmem:[#allocation3 + $0x1c0] sm:$0xff]
        %v4209 = vld [vmem:[#allocation3 + $0x1c8] sm:$0xf]
        %v4210 = vld [vmem:[#allocation3 + $0x1cc] sm:$0xff]
        %v4211 = vld [vmem:[#allocation3 + $0x1d4] sm:$0xff]
        %v4212 = vld [vmem:[#allocation3 + $0x1dc] sm:$0xf]
        %v4213 = vld [vmem:[#allocation3 + $0x1e0] sm:$0xff]
        %v4214 = vld [vmem:[#allocation3 + $0x1e8] sm:$0xff]
        %v4215 = vld [vmem:[#allocation3 + $0x1f0] sm:$0xf]
        %v4216 = vld [vmem:[#allocation3 + $0x1f4] sm:$0xff]
        %v4217 = vld [vmem:[#allocation3 + $0x1fc] sm:$0xff]
        %v4218 = vld [vmem:[#allocation3 + $0x204] sm:$0xf]
        %v4219 = vld [vmem:[#allocation3 + $0x208] sm:$0xff]
        %v4220 = vld [vmem:[#allocation3 + $0x210] sm:$0xff]
        %v4221 = vld [vmem:[#allocation3 + $0x218] sm:$0xf]
        %v4222 = vld [vmem:[#allocation3 + $0x21c] sm:$0xff]
        %v4223 = vld [vmem:[#allocation3 + $0x224] sm:$0xff]
        %v4224 = vld [vmem:[#allocation3 + $0x22c] sm:$0xf]
        %v4225 = vld [vmem:[#allocation3 + $0x230] sm:$0xff]
        %v4226 = vld [vmem:[#allocation3 + $0x238] sm:$0xff]
        %v4227 = vld [vmem:[#allocation3 + $0x240] sm:$0xf]
        %v4228 = vld [vmem:[#allocation3 + $0x244] sm:$0xff]
        %v4229 = vld [vmem:[#allocation3 + $0x24c] sm:$0xff]
        %v4230 = vld [vmem:[#allocation3 + $0x254] sm:$0xf]
        %v4231 = vld [vmem:[#allocation3 + $0x258] sm:$0xff]
        %v4232 = vld [vmem:[#allocation3 + $0x260] sm:$0xff]
        %v4233 = vld [vmem:[#allocation3 + $0x268] sm:$0xf]
        %v4234 = vld [vmem:[#allocation3 + $0x26c] sm:$0xff]
        %v4235 = vld [vmem:[#allocation3 + $0x274] sm:$0xff]
        %v4236 = vld [vmem:[#allocation3 + $0x27c] sm:$0xf]
        %v4237 = vld [vmem:[%s3] sm:$0xf]
        %v4238 = vld [vmem:[%s3 + $0x4] sm:$0xf]
        %v4239 = vld [vmem:[%s3 + $0x8] sm:$0xf]
        %v4240 = vld [vmem:[%s3 + $0xc] sm:$0xf]
        %v4241 = vld [vmem:[%s3 + $0x10] sm:$0xf]
        %v4242 = vld [vmem:[%s3 + $0x14] sm:$0xf]
        %v4243 = vld [vmem:[%s3 + $0x18] sm:$0xf]
        %v4244 = vld [vmem:[%s3 + $0x1c] sm:$0xf]
        %v4245 = vld [vmem:[%s3 + $0x20] sm:$0xf]
        %v4246 = vld [vmem:[%s3 + $0x24] sm:$0xf]
        %v4247 = vld [vmem:[%s3 + $0x28] sm:$0xf]
        %v4248 = vld [vmem:[%s3 + $0x2c] sm:$0xf]
        %v4249 = vld [vmem:[%s3 + $0x30] sm:$0xf]
        %v4250 = vld [vmem:[%s3 + $0x34] sm:$0xf]
        %v4251 = vld [vmem:[%s3 + $0x38] sm:$0xf]
        %v4252 = vld [vmem:[%s3 + $0x3c] sm:$0xf]
        %v4253 = vld [vmem:[%s3 + $0x40] sm:$0xf]
        %v4254 = vld [vmem:[%s3 + $0x44] sm:$0xf]
        %v4255 = vld [vmem:[%s3 + $0x48] sm:$0xf]
        %v4256 = vld [vmem:[%s3 + $0x4c] sm:$0xf]
        %v4257 = vld [vmem:[%s3 + $0x50] sm:$0xf]
        %v4258 = vld [vmem:[%s3 + $0x54] sm:$0xf]
        %v4259 = vld [vmem:[%s3 + $0x58] sm:$0xf]
        %v4260 = vld [vmem:[%s3 + $0x5c] sm:$0xf]
        %v4261 = vld [vmem:[%s3 + $0x60] sm:$0xf]
        %v4262 = vld [vmem:[%s3 + $0x64] sm:$0xf]
        %v4263 = vld [vmem:[%s3 + $0x68] sm:$0xf]
        %v4264 = vld [vmem:[%s3 + $0x6c] sm:$0xf]
        %v4265 = vld [vmem:[%s3 + $0x70] sm:$0xf]
        %v4266 = vld [vmem:[%s3 + $0x74] sm:$0xf]
        %v4267 = vld [vmem:[%s3 + $0x78] sm:$0xf]
        %v4268 = vld [vmem:[%s3 + $0x7c] sm:$0xf]
        %v4269 = vld [vmem:[%s3 + $0x80] sm:$0xf]
        %v4270 = vld [vmem:[%s3 + $0x84] sm:$0xf]
        %v4271 = vld [vmem:[%s3 + $0x88] sm:$0xf]
        %v4272 = vld [vmem:[%s3 + $0x8c] sm:$0xf]
        %v4273 = vld [vmem:[%s3 + $0x90] sm:$0xf]
        %v4274 = vld [vmem:[%s3 + $0x94] sm:$0xf]
        %v4275 = vld [vmem:[%s3 + $0x98] sm:$0xf]
        %v4276 = vld [vmem:[%s3 + $0x9c] sm:$0xf]
        %v4277 = vld [vmem:[%s3 + $0xa0] sm:$0xf]
        %v4278 = vld [vmem:[%s3 + $0xa4] sm:$0xf]
        %v4279 = vld [vmem:[%s3 + $0xa8] sm:$0xf]
        %v4280 = vld [vmem:[%s3 + $0xac] sm:$0xf]
        %v4281 = vld [vmem:[%s3 + $0xb0] sm:$0xf]
        %v4282 = vld [vmem:[%s3 + $0xb4] sm:$0xf]
        %v4283 = vld [vmem:[%s3 + $0xb8] sm:$0xf]
        %v4284 = vld [vmem:[%s3 + $0xbc] sm:$0xf]
        %v4285 = vld [vmem:[%s3 + $0xc0] sm:$0xf]
        %v4286 = vld [vmem:[%s3 + $0xc4] sm:$0xf]
        %v4287 = vld [vmem:[%s3 + $0xc8] sm:$0xf]
        %v4288 = vld [vmem:[%s3 + $0xcc] sm:$0xf]
        %v4289 = vld [vmem:[%s3 + $0xd0] sm:$0xf]
        %v4290 = vld [vmem:[%s3 + $0xd4] sm:$0xf]
        %v4291 = vld [vmem:[%s3 + $0xd8] sm:$0xf]
        %v4292 = vld [vmem:[%s3 + $0xdc] sm:$0xf]
        %v4293 = vld [vmem:[%s3 + $0xe0] sm:$0xf]
        %v4294 = vld [vmem:[%s3 + $0xe4] sm:$0xf]
        %v4295 = vld [vmem:[%s3 + $0xe8] sm:$0xf]
        %v4296 = vld [vmem:[%s3 + $0xec] sm:$0xf]
        %v4297 = vld [vmem:[%s3 + $0xf0] sm:$0xf]
        %v4298 = vld [vmem:[%s3 + $0xf4] sm:$0xf]
        %v4299 = vld [vmem:[%s3 + $0xf8] sm:$0xf]
        %v4300 = vld [vmem:[%s3 + $0xfc] sm:$0xf]
        %v4301 = vld [vmem:[%s3 + $0x100] sm:$0xf]
        %v4302 = vld [vmem:[%s3 + $0x104] sm:$0xf]
        %v4303 = vld [vmem:[%s3 + $0x108] sm:$0xf]
        %v4304 = vld [vmem:[%s3 + $0x10c] sm:$0xf]
        %v4305 = vld [vmem:[%s3 + $0x110] sm:$0xf]
        %v4306 = vld [vmem:[%s3 + $0x114] sm:$0xf]
        %v4307 = vld [vmem:[%s3 + $0x118] sm:$0xf]
        %v4308 = vld [vmem:[%s3 + $0x11c] sm:$0xf]
        %v4309 = vld [vmem:[%s4] sm:$0x1]
        %v4311 = vperm.slane %v4309, 0
        %v4409 = vunpack.c.l.b16 %v4141
        %v4410 = vunpack.c.h.b16 %v4141
        %v4411 = vunpack.c.l.b16 %v4142
        %v4412 = vunpack.c.h.b16 %v4142
        %v4413 = vunpack.c.l.b16 %v4143
        %v4414 = vunpack.c.l.b16 %v4144
        %v4415 = vunpack.c.h.b16 %v4144
        %v4416 = vunpack.c.l.b16 %v4145
        %v4417 = vunpack.c.h.b16 %v4145
        %v4418 = vunpack.c.l.b16 %v4146
        %v4419 = vunpack.c.l.b16 %v4147
        %v4420 = vunpack.c.h.b16 %v4147
        %v4421 = vunpack.c.l.b16 %v4148
        %v4422 = vunpack.c.h.b16 %v4148
        %v4423 = vunpack.c.l.b16 %v4149
        %v4424 = vunpack.c.l.b16 %v4150
        %v4425 = vunpack.c.h.b16 %v4150
        %v4426 = vunpack.c.l.b16 %v4151
        %v4427 = vunpack.c.h.b16 %v4151
        %v4428 = vunpack.c.l.b16 %v4152
        %v4429 = vunpack.c.l.b16 %v4153
        %v4430 = vunpack.c.h.b16 %v4153
        %v4431 = vunpack.c.l.b16 %v4154
        %v4432 = vunpack.c.h.b16 %v4154
        %v4433 = vunpack.c.l.b16 %v4155
        %v4434 = vunpack.c.l.b16 %v4156
        %v4435 = vunpack.c.h.b16 %v4156
        %v4436 = vunpack.c.l.b16 %v4157
        %v4437 = vunpack.c.h.b16 %v4157
        %v4438 = vunpack.c.l.b16 %v4158
        %v4439 = vunpack.c.l.b16 %v4159
        %v4440 = vunpack.c.h.b16 %v4159
        %v4441 = vunpack.c.l.b16 %v4160
        %v4442 = vunpack.c.h.b16 %v4160
        %v4443 = vunpack.c.l.b16 %v4161
        %v4444 = vunpack.c.l.b16 %v4162
        %v4445 = vunpack.c.h.b16 %v4162
        %v4446 = vunpack.c.l.b16 %v4163
        %v4447 = vunpack.c.h.b16 %v4163
        %v4448 = vunpack.c.l.b16 %v4164
        %v4449 = vunpack.c.l.b16 %v4165
        %v4450 = vunpack.c.h.b16 %v4165
        %v4451 = vunpack.c.l.b16 %v4166
        %v4452 = vunpack.c.h.b16 %v4166
        %v4453 = vunpack.c.l.b16 %v4167
        %v4454 = vunpack.c.l.b16 %v4168
        %v4455 = vunpack.c.h.b16 %v4168
        %v4456 = vunpack.c.l.b16 %v4169
        %v4457 = vunpack.c.h.b16 %v4169
        %v4458 = vunpack.c.l.b16 %v4170
        %v4459 = vunpack.c.l.b16 %v4171
        %v4460 = vunpack.c.h.b16 %v4171
        %v4461 = vunpack.c.l.b16 %v4172
        %v4462 = vunpack.c.h.b16 %v4172
        %v4463 = vunpack.c.l.b16 %v4173
        %v4464 = vunpack.c.l.b16 %v4174
        %v4465 = vunpack.c.h.b16 %v4174
        %v4466 = vunpack.c.l.b16 %v4175
        %v4467 = vunpack.c.h.b16 %v4175
        %v4468 = vunpack.c.l.b16 %v4176
        %v4469 = vunpack.c.l.b16 %v4177
        %v4470 = vunpack.c.h.b16 %v4177
        %v4471 = vunpack.c.l.b16 %v4178
        %v4472 = vunpack.c.h.b16 %v4178
        %v4473 = vunpack.c.l.b16 %v4179
        %v4474 = vunpack.c.l.b16 %v4180
        %v4475 = vunpack.c.h.b16 %v4180
        %v4476 = vunpack.c.l.b16 %v4181
        %v4477 = vunpack.c.h.b16 %v4181
        %v4478 = vunpack.c.l.b16 %v4182
        %v4479 = vunpack.c.l.b16 %v4183
        %v4480 = vunpack.c.h.b16 %v4183
        %v4481 = vunpack.c.l.b16 %v4184
        %v4482 = vunpack.c.h.b16 %v4184
        %v4483 = vunpack.c.l.b16 %v4185
        %v4484 = vunpack.c.l.b16 %v4186
        %v4485 = vunpack.c.h.b16 %v4186
        %v4486 = vunpack.c.l.b16 %v4187
        %v4487 = vunpack.c.h.b16 %v4187
        %v4488 = vunpack.c.l.b16 %v4188
        %v4489 = vunpack.c.l.b16 %v4189
        %v4490 = vunpack.c.h.b16 %v4189
        %v4491 = vunpack.c.l.b16 %v4190
        %v4492 = vunpack.c.h.b16 %v4190
        %v4493 = vunpack.c.l.b16 %v4191
        %v4494 = vunpack.c.l.b16 %v4192
        %v4495 = vunpack.c.h.b16 %v4192
        %v4496 = vunpack.c.l.b16 %v4193
        %v4497 = vunpack.c.h.b16 %v4193
        %v4498 = vunpack.c.l.b16 %v4194
        %v4499 = vunpack.c.l.b16 %v4195
        %v4500 = vunpack.c.h.b16 %v4195
        %v4501 = vunpack.c.l.b16 %v4196
        %v4502 = vunpack.c.h.b16 %v4196
        %v4503 = vunpack.c.l.b16 %v4197
        %v4504 = vunpack.c.l.b16 %v4198
        %v4505 = vunpack.c.h.b16 %v4198
        %v4506 = vunpack.c.l.b16 %v4199
        %v4507 = vunpack.c.h.b16 %v4199
        %v4508 = vunpack.c.l.b16 %v4200
        %v4509 = vunpack.c.l.b16 %v4201
        %v4510 = vunpack.c.h.b16 %v4201
        %v4511 = vunpack.c.l.b16 %v4202
        %v4512 = vunpack.c.h.b16 %v4202
        %v4513 = vunpack.c.l.b16 %v4203
        %v4514 = vunpack.c.l.b16 %v4204
        %v4515 = vunpack.c.h.b16 %v4204
        %v4516 = vunpack.c.l.b16 %v4205
        %v4517 = vunpack.c.h.b16 %v4205
        %v4518 = vunpack.c.l.b16 %v4206
        %v4519 = vunpack.c.l.b16 %v4207
        %v4520 = vunpack.c.h.b16 %v4207
        %v4521 = vunpack.c.l.b16 %v4208
        %v4522 = vunpack.c.h.b16 %v4208
        %v4523 = vunpack.c.l.b16 %v4209
        %v4524 = vunpack.c.l.b16 %v4210
        %v4525 = vunpack.c.h.b16 %v4210
        %v4526 = vunpack.c.l.b16 %v4211
        %v4527 = vunpack.c.h.b16 %v4211
        %v4528 = vunpack.c.l.b16 %v4212
        %v4529 = vunpack.c.l.b16 %v4213
        %v4530 = vunpack.c.h.b16 %v4213
        %v4531 = vunpack.c.l.b16 %v4214
        %v4532 = vunpack.c.h.b16 %v4214
        %v4533 = vunpack.c.l.b16 %v4215
        %v4534 = vunpack.c.l.b16 %v4216
        %v4535 = vunpack.c.h.b16 %v4216
        %v4536 = vunpack.c.l.b16 %v4217
        %v4537 = vunpack.c.h.b16 %v4217
        %v4538 = vunpack.c.l.b16 %v4218
        %v4539 = vunpack.c.l.b16 %v4219
        %v4540 = vunpack.c.h.b16 %v4219
        %v4541 = vunpack.c.l.b16 %v4220
        %v4542 = vunpack.c.h.b16 %v4220
        %v4543 = vunpack.c.l.b16 %v4221
        %v4544 = vunpack.c.l.b16 %v4222
        %v4545 = vunpack.c.h.b16 %v4222
        %v4546 = vunpack.c.l.b16 %v4223
        %v4547 = vunpack.c.h.b16 %v4223
        %v4548 = vunpack.c.l.b16 %v4224
        %v4549 = vunpack.c.l.b16 %v4225
        %v4550 = vunpack.c.h.b16 %v4225
        %v4551 = vunpack.c.l.b16 %v4226
        %v4552 = vunpack.c.h.b16 %v4226
        %v4553 = vunpack.c.l.b16 %v4227
        %v4554 = vunpack.c.l.b16 %v4228
        %v4555 = vunpack.c.h.b16 %v4228
        %v4556 = vunpack.c.l.b16 %v4229
        %v4557 = vunpack.c.h.b16 %v4229
        %v4558 = vunpack.c.l.b16 %v4230
        %v4559 = vunpack.c.l.b16 %v4231
        %v4560 = vunpack.c.h.b16 %v4231
        %v4561 = vunpack.c.l.b16 %v4232
        %v4562 = vunpack.c.h.b16 %v4232
        %v4563 = vunpack.c.l.b16 %v4233
        %v4564 = vunpack.c.l.b16 %v4234
        %v4565 = vunpack.c.h.b16 %v4234
        %v4566 = vunpack.c.l.b16 %v4235
        %v4567 = vunpack.c.h.b16 %v4235
        %v4568 = vunpack.c.l.b16 %v4236
        %v4569 = vpack.c.b16 %v4414, %v4409
        %v4570 = vpack.c.b16 %v4415, %v4410
        %v4571 = vpack.c.b16 %v4416, %v4411
        %v4572 = vpack.c.b16 %v4417, %v4412
        %v4573 = vpack.c.b16 %v4418, %v4413
        %v4574 = vpack.c.b16 %v4424, %v4419
        %v4575 = vpack.c.b16 %v4425, %v4420
        %v4576 = vpack.c.b16 %v4426, %v4421
        %v4577 = vpack.c.b16 %v4427, %v4422
        %v4578 = vpack.c.b16 %v4428, %v4423
        %v4579 = vpack.c.b16 %v4434, %v4429
        %v4580 = vpack.c.b16 %v4435, %v4430
        %v4581 = vpack.c.b16 %v4436, %v4431
        %v4582 = vpack.c.b16 %v4437, %v4432
        %v4583 = vpack.c.b16 %v4438, %v4433
        %v4584 = vpack.c.b16 %v4444, %v4439
        %v4585 = vpack.c.b16 %v4445, %v4440
        %v4586 = vpack.c.b16 %v4446, %v4441
        %v4587 = vpack.c.b16 %v4447, %v4442
        %v4588 = vpack.c.b16 %v4448, %v4443
        %v4589 = vpack.c.b16 %v4454, %v4449
        %v4590 = vpack.c.b16 %v4455, %v4450
        %v4591 = vpack.c.b16 %v4456, %v4451
        %v4592 = vpack.c.b16 %v4457, %v4452
        %v4593 = vpack.c.b16 %v4458, %v4453
        %v4594 = vpack.c.b16 %v4464, %v4459
        %v4595 = vpack.c.b16 %v4465, %v4460
        %v4596 = vpack.c.b16 %v4466, %v4461
        %v4597 = vpack.c.b16 %v4467, %v4462
        %v4598 = vpack.c.b16 %v4468, %v4463
        %v4599 = vpack.c.b16 %v4474, %v4469
        %v4600 = vpack.c.b16 %v4475, %v4470
        %v4601 = vpack.c.b16 %v4476, %v4471
        %v4602 = vpack.c.b16 %v4477, %v4472
        %v4603 = vpack.c.b16 %v4478, %v4473
        %v4604 = vpack.c.b16 %v4484, %v4479
        %v4605 = vpack.c.b16 %v4485, %v4480
        %v4606 = vpack.c.b16 %v4486, %v4481
        %v4607 = vpack.c.b16 %v4487, %v4482
        %v4608 = vpack.c.b16 %v4488, %v4483
        %v4609 = vpack.c.b16 %v4494, %v4489
        %v4610 = vpack.c.b16 %v4495, %v4490
        %v4611 = vpack.c.b16 %v4496, %v4491
        %v4612 = vpack.c.b16 %v4497, %v4492
        %v4613 = vpack.c.b16 %v4498, %v4493
        %v4614 = vpack.c.b16 %v4504, %v4499
        %v4615 = vpack.c.b16 %v4505, %v4500
        %v4616 = vpack.c.b16 %v4506, %v4501
        %v4617 = vpack.c.b16 %v4507, %v4502
        %v4618 = vpack.c.b16 %v4508, %v4503
        %v4619 = vpack.c.b16 %v4514, %v4509
        %v4620 = vpack.c.b16 %v4515, %v4510
        %v4621 = vpack.c.b16 %v4516, %v4511
        %v4622 = vpack.c.b16 %v4517, %v4512
        %v4623 = vpack.c.b16 %v4518, %v4513
        %v4624 = vpack.c.b16 %v4524, %v4519
        %v4625 = vpack.c.b16 %v4525, %v4520
        %v4626 = vpack.c.b16 %v4526, %v4521
        %v4627 = vpack.c.b16 %v4527, %v4522
        %v4628 = vpack.c.b16 %v4528, %v4523
        %v4629 = vpack.c.b16 %v4534, %v4529
        %v4630 = vpack.c.b16 %v4535, %v4530
        %v4631 = vpack.c.b16 %v4536, %v4531
        %v4632 = vpack.c.b16 %v4537, %v4532
        %v4633 = vpack.c.b16 %v4538, %v4533
        %v4634 = vpack.c.b16 %v4544, %v4539
        %v4635 = vpack.c.b16 %v4545, %v4540
        %v4636 = vpack.c.b16 %v4546, %v4541
        %v4637 = vpack.c.b16 %v4547, %v4542
        %v4638 = vpack.c.b16 %v4548, %v4543
        %v4639 = vpack.c.b16 %v4554, %v4549
        %v4640 = vpack.c.b16 %v4555, %v4550
        %v4641 = vpack.c.b16 %v4556, %v4551
        %v4642 = vpack.c.b16 %v4557, %v4552
        %v4643 = vpack.c.b16 %v4558, %v4553
        %v4644 = vpack.c.b16 %v4564, %v4559
        %v4645 = vpack.c.b16 %v4565, %v4560
        %v4646 = vpack.c.b16 %v4566, %v4561
        %v4647 = vpack.c.b16 %v4567, %v4562
        %v4648 = vpack.c.b16 %v4568, %v4563
        %v4785 = vunpack.c.l.b16 %v4237
        %v4786 = vunpack.c.l.b16 %v4238
        %v4787 = vunpack.c.l.b16 %v4239
        %v4788 = vunpack.c.l.b16 %v4240
        %v4789 = vunpack.c.l.b16 %v4241
        %v4790 = vunpack.c.l.b16 %v4242
        %v4791 = vunpack.c.l.b16 %v4243
        %v4792 = vunpack.c.l.b16 %v4244
        %v4793 = vunpack.c.l.b16 %v4245
        %v4794 = vunpack.c.l.b16 %v4246
        %v4795 = vunpack.c.l.b16 %v4247
        %v4796 = vunpack.c.l.b16 %v4248
        %v4797 = vunpack.c.l.b16 %v4249
        %v4798 = vunpack.c.l.b16 %v4250
        %v4799 = vunpack.c.l.b16 %v4251
        %v4800 = vunpack.c.l.b16 %v4252
        %v4801 = vunpack.c.l.b16 %v4253
        %v4802 = vunpack.c.l.b16 %v4254
        %v4803 = vunpack.c.l.b16 %v4255
        %v4804 = vunpack.c.l.b16 %v4256
        %v4805 = vunpack.c.l.b16 %v4257
        %v4806 = vunpack.c.l.b16 %v4258
        %v4807 = vunpack.c.l.b16 %v4259
        %v4808 = vunpack.c.l.b16 %v4260
        %v4809 = vunpack.c.l.b16 %v4261
        %v4810 = vunpack.c.l.b16 %v4262
        %v4811 = vunpack.c.l.b16 %v4263
        %v4812 = vunpack.c.l.b16 %v4264
        %v4813 = vunpack.c.l.b16 %v4265
        %v4814 = vunpack.c.l.b16 %v4266
        %v4815 = vunpack.c.l.b16 %v4267
        %v4816 = vunpack.c.l.b16 %v4268
        %v4817 = vunpack.c.l.b16 %v4269
        %v4818 = vunpack.c.l.b16 %v4270
        %v4819 = vunpack.c.l.b16 %v4271
        %v4820 = vunpack.c.l.b16 %v4272
        %v4821 = vunpack.c.l.b16 %v4273
        %v4822 = vunpack.c.l.b16 %v4274
        %v4823 = vunpack.c.l.b16 %v4275
        %v4824 = vunpack.c.l.b16 %v4276
        %v4825 = vunpack.c.l.b16 %v4277
        %v4826 = vunpack.c.l.b16 %v4278
        %v4827 = vunpack.c.l.b16 %v4279
        %v4828 = vunpack.c.l.b16 %v4280
        %v4829 = vunpack.c.l.b16 %v4281
        %v4830 = vunpack.c.l.b16 %v4282
        %v4831 = vunpack.c.l.b16 %v4283
        %v4832 = vunpack.c.l.b16 %v4284
        %v4833 = vunpack.c.l.b16 %v4285
        %v4834 = vunpack.c.l.b16 %v4286
        %v4835 = vunpack.c.l.b16 %v4287
        %v4836 = vunpack.c.l.b16 %v4288
        %v4837 = vunpack.c.l.b16 %v4289
        %v4838 = vunpack.c.l.b16 %v4290
        %v4839 = vunpack.c.l.b16 %v4291
        %v4840 = vunpack.c.l.b16 %v4292
        %v4841 = vunpack.c.l.b16 %v4293
        %v4842 = vunpack.c.l.b16 %v4294
        %v4843 = vunpack.c.l.b16 %v4295
        %v4844 = vunpack.c.l.b16 %v4296
        %v4845 = vunpack.c.l.b16 %v4297
        %v4846 = vunpack.c.l.b16 %v4298
        %v4847 = vunpack.c.l.b16 %v4299
        %v4848 = vunpack.c.l.b16 %v4300
        %v4849 = vunpack.c.l.b16 %v4301
        %v4850 = vunpack.c.l.b16 %v4302
        %v4851 = vunpack.c.l.b16 %v4303
        %v4852 = vunpack.c.l.b16 %v4304
        %v4853 = vunpack.c.l.b16 %v4305
        %v4854 = vunpack.c.l.b16 %v4306
        %v4855 = vunpack.c.l.b16 %v4307
        %v4856 = vunpack.c.l.b16 %v4308
        %v4857 = vpack.c.b16 %v4786, %v4785
        %v4858 = vpack.c.b16 %v4788, %v4787
        %v4859 = vpack.c.b16 %v4790, %v4789
        %v4860 = vpack.c.b16 %v4792, %v4791
        %v4861 = vpack.c.b16 %v4794, %v4793
        %v4862 = vpack.c.b16 %v4796, %v4795
        %v4863 = vpack.c.b16 %v4798, %v4797
        %v4864 = vpack.c.b16 %v4800, %v4799
        %v4865 = vpack.c.b16 %v4802, %v4801
        %v4866 = vpack.c.b16 %v4804, %v4803
        %v4867 = vpack.c.b16 %v4806, %v4805
        %v4868 = vpack.c.b16 %v4808, %v4807
        %v4869 = vpack.c.b16 %v4810, %v4809
        %v4870 = vpack.c.b16 %v4812, %v4811
        %v4871 = vpack.c.b16 %v4814, %v4813
        %v4872 = vpack.c.b16 %v4816, %v4815
        %v4873 = vpack.c.b16 %v4818, %v4817
        %v4874 = vpack.c.b16 %v4820, %v4819
        %v4875 = vpack.c.b16 %v4822, %v4821
        %v4876 = vpack.c.b16 %v4824, %v4823
        %v4877 = vpack.c.b16 %v4826, %v4825
        %v4878 = vpack.c.b16 %v4828, %v4827
        %v4879 = vpack.c.b16 %v4830, %v4829
        %v4880 = vpack.c.b16 %v4832, %v4831
        %v4881 = vpack.c.b16 %v4834, %v4833
        %v4882 = vpack.c.b16 %v4836, %v4835
        %v4883 = vpack.c.b16 %v4838, %v4837
        %v4884 = vpack.c.b16 %v4840, %v4839
        %v4885 = vpack.c.b16 %v4842, %v4841
        %v4886 = vpack.c.b16 %v4844, %v4843
        %v4887 = vpack.c.b16 %v4846, %v4845
        %v4888 = vpack.c.b16 %v4848, %v4847
        %v4889 = vpack.c.b16 %v4850, %v4849
        %v4890 = vpack.c.b16 %v4852, %v4851
        %v4891 = vpack.c.b16 %v4854, %v4853
        %v4892 = vpack.c.b16 %v4856, %v4855
        %vm4929 = vcmask 523264
        %v4931 = vsel %vm4929, %v4573, 0
        %v4934 = vsel %vm4929, %v4578, 0
        %v4937 = vsel %vm4929, %v4583, 0
        %v4940 = vsel %vm4929, %v4588, 0
        %v4943 = vsel %vm4929, %v4593, 0
        %v4946 = vsel %vm4929, %v4598, 0
        %v4949 = vsel %vm4929, %v4603, 0
        %v4952 = vsel %vm4929, %v4608, 0
        %v4955 = vsel %vm4929, %v4613, 0
        %v4958 = vsel %vm4929, %v4618, 0
        %v4961 = vsel %vm4929, %v4623, 0
        %v4964 = vsel %vm4929, %v4628, 0
        %v4967 = vsel %vm4929, %v4633, 0
        %v4970 = vsel %vm4929, %v4638, 0
        %v4973 = vsel %vm4929, %v4643, 0
        %v4976 = vsel %vm4929, %v4648, 0
        %4978 = vmatpush.bf16.msra.mxu0 %v4864
        %4979 = vmatpush.bf16.msra.mxu0 %v4863
        %4980 = vmatpush.bf16.msra.mxu0 %v4862
        %4981 = vmatpush.bf16.msra.mxu0 %v4861
        %4982 = vmatpush.bf16.msra.mxu0 %v4860
        %4983 = vmatpush.bf16.msra.mxu0 %v4859
        %4984 = vmatpush.bf16.msra.mxu0 %v4858
        %4985 = vmatpush.bf16.msra.mxu0 %v4857
        %4986 = vmatmul.bf16.gmra.mxu0 %v4569
        %v4987 = vpop.f32.mrf.mxu0
        %v4988 = vadd.f32 %v4311, %v4987
        %v4989 = vpop.f32.mrf.mxu0
        %v4990 = vadd.f32 %v4311, %v4989
        %4991 = vmatmul.bf16.gmra.mxu0 %v4574
        %v4992 = vpop.f32.mrf.mxu0
        %v4993 = vadd.f32 %v4311, %v4992
        %v4994 = vpop.f32.mrf.mxu0
        %v4995 = vadd.f32 %v4311, %v4994
        %4996 = vmatmul.bf16.gmra.mxu0 %v4579
        %v4997 = vpop.f32.mrf.mxu0
        %v4998 = vadd.f32 %v4311, %v4997
        %v4999 = vpop.f32.mrf.mxu0
        %v5000 = vadd.f32 %v4311, %v4999
        %5001 = vmatmul.bf16.gmra.mxu0 %v4584
        %v5002 = vpop.f32.mrf.mxu0
        %v5003 = vadd.f32 %v4311, %v5002
        %v5004 = vpop.f32.mrf.mxu0
        %v5005 = vadd.f32 %v4311, %v5004
        %5006 = vmatmul.bf16.gmra.mxu0 %v4589
        %v5007 = vpop.f32.mrf.mxu0
        %v5008 = vadd.f32 %v4311, %v5007
        %v5009 = vpop.f32.mrf.mxu0
        %v5010 = vadd.f32 %v4311, %v5009
        %5011 = vmatmul.bf16.gmra.mxu0 %v4594
        %v5012 = vpop.f32.mrf.mxu0
        %v5013 = vadd.f32 %v4311, %v5012
        %v5014 = vpop.f32.mrf.mxu0
        %v5015 = vadd.f32 %v4311, %v5014
        %5016 = vmatmul.bf16.gmra.mxu0 %v4599
        %v5017 = vpop.f32.mrf.mxu0
        %v5018 = vadd.f32 %v4311, %v5017
        %v5019 = vpop.f32.mrf.mxu0
        %v5020 = vadd.f32 %v4311, %v5019
        %5021 = vmatmul.bf16.gmra.mxu0 %v4604
        %v5022 = vpop.f32.mrf.mxu0
        %v5023 = vadd.f32 %v4311, %v5022
        %v5024 = vpop.f32.mrf.mxu0
        %v5025 = vadd.f32 %v4311, %v5024
        %5026 = vmatmul.bf16.gmra.mxu0 %v4609
        %v5027 = vpop.f32.mrf.mxu0
        %v5028 = vadd.f32 %v4311, %v5027
        %v5029 = vpop.f32.mrf.mxu0
        %v5030 = vadd.f32 %v4311, %v5029
        %5031 = vmatmul.bf16.gmra.mxu0 %v4614
        %v5032 = vpop.f32.mrf.mxu0
        %v5033 = vadd.f32 %v4311, %v5032
        %v5034 = vpop.f32.mrf.mxu0
        %v5035 = vadd.f32 %v4311, %v5034
        %5036 = vmatmul.bf16.gmra.mxu0 %v4619
        %v5037 = vpop.f32.mrf.mxu0
        %v5038 = vadd.f32 %v4311, %v5037
        %v5039 = vpop.f32.mrf.mxu0
        %v5040 = vadd.f32 %v4311, %v5039
        %5041 = vmatmul.bf16.gmra.mxu0 %v4624
        %v5042 = vpop.f32.mrf.mxu0
        %v5043 = vadd.f32 %v4311, %v5042
        %v5044 = vpop.f32.mrf.mxu0
        %v5045 = vadd.f32 %v4311, %v5044
        %5046 = vmatmul.bf16.gmra.mxu0 %v4629
        %v5047 = vpop.f32.mrf.mxu0
        %v5048 = vadd.f32 %v4311, %v5047
        %v5049 = vpop.f32.mrf.mxu0
        %v5050 = vadd.f32 %v4311, %v5049
        %5051 = vmatmul.bf16.gmra.mxu0 %v4634
        %v5052 = vpop.f32.mrf.mxu0
        %v5053 = vadd.f32 %v4311, %v5052
        %v5054 = vpop.f32.mrf.mxu0
        %v5055 = vadd.f32 %v4311, %v5054
        %5056 = vmatmul.bf16.gmra.mxu0 %v4639
        %v5057 = vpop.f32.mrf.mxu0
        %v5058 = vadd.f32 %v4311, %v5057
        %v5059 = vpop.f32.mrf.mxu0
        %v5060 = vadd.f32 %v4311, %v5059
        %5061 = vmatmul.bf16.gmra.mxu0 %v4644
        %v5062 = vpop.f32.mrf.mxu0
        %v5063 = vadd.f32 %v4311, %v5062
        %v5064 = vpop.f32.mrf.mxu0
        %v5065 = vadd.f32 %v4311, %v5064
        %5066 = vdwg.mxu0
        %5067 = vmatpush.bf16.msra.mxu0 %v4872
        %5068 = vmatpush.bf16.msra.mxu0 %v4871
        %5069 = vmatpush.bf16.msra.mxu0 %v4870
        %5070 = vmatpush.bf16.msra.mxu0 %v4869
        %5071 = vmatpush.bf16.msra.mxu0 %v4868
        %5072 = vmatpush.bf16.msra.mxu0 %v4867
        %5073 = vmatpush.bf16.msra.mxu0 %v4866
        %5074 = vmatpush.bf16.msra.mxu0 %v4865
        %5075 = vmatmul.bf16.gmra.mxu0 %v4570
        %v5076 = vpop.f32.mrf.mxu0
        %v5077 = vadd.f32 %v4988, %v5076
        %v5078 = vpop.f32.mrf.mxu0
        %v5079 = vadd.f32 %v4990, %v5078
        %5080 = vmatmul.bf16.gmra.mxu0 %v4575
        %v5081 = vpop.f32.mrf.mxu0
        %v5082 = vadd.f32 %v4993, %v5081
        %v5083 = vpop.f32.mrf.mxu0
        %v5084 = vadd.f32 %v4995, %v5083
        %5085 = vmatmul.bf16.gmra.mxu0 %v4580
        %v5086 = vpop.f32.mrf.mxu0
        %v5087 = vadd.f32 %v4998, %v5086
        %v5088 = vpop.f32.mrf.mxu0
        %v5089 = vadd.f32 %v5000, %v5088
        %5090 = vmatmul.bf16.gmra.mxu0 %v4585
        %v5091 = vpop.f32.mrf.mxu0
        %v5092 = vadd.f32 %v5003, %v5091
        %v5093 = vpop.f32.mrf.mxu0
        %v5094 = vadd.f32 %v5005, %v5093
        %5095 = vmatmul.bf16.gmra.mxu0 %v4590
        %v5096 = vpop.f32.mrf.mxu0
        %v5097 = vadd.f32 %v5008, %v5096
        %v5098 = vpop.f32.mrf.mxu0
        %v5099 = vadd.f32 %v5010, %v5098
        %5100 = vmatmul.bf16.gmra.mxu0 %v4595
        %v5101 = vpop.f32.mrf.mxu0
        %v5102 = vadd.f32 %v5013, %v5101
        %v5103 = vpop.f32.mrf.mxu0
        %v5104 = vadd.f32 %v5015, %v5103
        %5105 = vmatmul.bf16.gmra.mxu0 %v4600
        %v5106 = vpop.f32.mrf.mxu0
        %v5107 = vadd.f32 %v5018, %v5106
        %v5108 = vpop.f32.mrf.mxu0
        %v5109 = vadd.f32 %v5020, %v5108
        %5110 = vmatmul.bf16.gmra.mxu0 %v4605
        %v5111 = vpop.f32.mrf.mxu0
        %v5112 = vadd.f32 %v5023, %v5111
        %v5113 = vpop.f32.mrf.mxu0
        %v5114 = vadd.f32 %v5025, %v5113
        %5115 = vmatmul.bf16.gmra.mxu0 %v4610
        %v5116 = vpop.f32.mrf.mxu0
        %v5117 = vadd.f32 %v5028, %v5116
        %v5118 = vpop.f32.mrf.mxu0
        %v5119 = vadd.f32 %v5030, %v5118
        %5120 = vmatmul.bf16.gmra.mxu0 %v4615
        %v5121 = vpop.f32.mrf.mxu0
        %v5122 = vadd.f32 %v5033, %v5121
        %v5123 = vpop.f32.mrf.mxu0
        %v5124 = vadd.f32 %v5035, %v5123
        %5125 = vmatmul.bf16.gmra.mxu0 %v4620
        %v5126 = vpop.f32.mrf.mxu0
        %v5127 = vadd.f32 %v5038, %v5126
        %v5128 = vpop.f32.mrf.mxu0
        %v5129 = vadd.f32 %v5040, %v5128
        %5130 = vmatmul.bf16.gmra.mxu0 %v4625
        %v5131 = vpop.f32.mrf.mxu0
        %v5132 = vadd.f32 %v5043, %v5131
        %v5133 = vpop.f32.mrf.mxu0
        %v5134 = vadd.f32 %v5045, %v5133
        %5135 = vmatmul.bf16.gmra.mxu0 %v4630
        %v5136 = vpop.f32.mrf.mxu0
        %v5137 = vadd.f32 %v5048, %v5136
        %v5138 = vpop.f32.mrf.mxu0
        %v5139 = vadd.f32 %v5050, %v5138
        %5140 = vmatmul.bf16.gmra.mxu0 %v4635
        %v5141 = vpop.f32.mrf.mxu0
        %v5142 = vadd.f32 %v5053, %v5141
        %v5143 = vpop.f32.mrf.mxu0
        %v5144 = vadd.f32 %v5055, %v5143
        %5145 = vmatmul.bf16.gmra.mxu0 %v4640
        %v5146 = vpop.f32.mrf.mxu0
        %v5147 = vadd.f32 %v5058, %v5146
        %v5148 = vpop.f32.mrf.mxu0
        %v5149 = vadd.f32 %v5060, %v5148
        %5150 = vmatmul.bf16.gmra.mxu0 %v4645
        %v5151 = vpop.f32.mrf.mxu0
        %v5152 = vadd.f32 %v5063, %v5151
        %v5153 = vpop.f32.mrf.mxu0
        %v5154 = vadd.f32 %v5065, %v5153
        %5155 = vdwg.mxu0
        %5156 = vmatpush.bf16.msra.mxu0 %v4880
        %5157 = vmatpush.bf16.msra.mxu0 %v4879
        %5158 = vmatpush.bf16.msra.mxu0 %v4878
        %5159 = vmatpush.bf16.msra.mxu0 %v4877
        %5160 = vmatpush.bf16.msra.mxu0 %v4876
        %5161 = vmatpush.bf16.msra.mxu0 %v4875
        %5162 = vmatpush.bf16.msra.mxu0 %v4874
        %5163 = vmatpush.bf16.msra.mxu0 %v4873
        %5164 = vmatmul.bf16.gmra.mxu0 %v4571
        %v5165 = vpop.f32.mrf.mxu0
        %v5166 = vadd.f32 %v5077, %v5165
        %v5167 = vpop.f32.mrf.mxu0
        %v5168 = vadd.f32 %v5079, %v5167
        %5169 = vmatmul.bf16.gmra.mxu0 %v4576
        %v5170 = vpop.f32.mrf.mxu0
        %v5171 = vadd.f32 %v5082, %v5170
        %v5172 = vpop.f32.mrf.mxu0
        %v5173 = vadd.f32 %v5084, %v5172
        %5174 = vmatmul.bf16.gmra.mxu0 %v4581
        %v5175 = vpop.f32.mrf.mxu0
        %v5176 = vadd.f32 %v5087, %v5175
        %v5177 = vpop.f32.mrf.mxu0
        %v5178 = vadd.f32 %v5089, %v5177
        %5179 = vmatmul.bf16.gmra.mxu0 %v4586
        %v5180 = vpop.f32.mrf.mxu0
        %v5181 = vadd.f32 %v5092, %v5180
        %v5182 = vpop.f32.mrf.mxu0
        %v5183 = vadd.f32 %v5094, %v5182
        %5184 = vmatmul.bf16.gmra.mxu0 %v4591
        %v5185 = vpop.f32.mrf.mxu0
        %v5186 = vadd.f32 %v5097, %v5185
        %v5187 = vpop.f32.mrf.mxu0
        %v5188 = vadd.f32 %v5099, %v5187
        %5189 = vmatmul.bf16.gmra.mxu0 %v4596
        %v5190 = vpop.f32.mrf.mxu0
        %v5191 = vadd.f32 %v5102, %v5190
        %v5192 = vpop.f32.mrf.mxu0
        %v5193 = vadd.f32 %v5104, %v5192
        %5194 = vmatmul.bf16.gmra.mxu0 %v4601
        %v5195 = vpop.f32.mrf.mxu0
        %v5196 = vadd.f32 %v5107, %v5195
        %v5197 = vpop.f32.mrf.mxu0
        %v5198 = vadd.f32 %v5109, %v5197
        %5199 = vmatmul.bf16.gmra.mxu0 %v4606
        %v5200 = vpop.f32.mrf.mxu0
        %v5201 = vadd.f32 %v5112, %v5200
        %v5202 = vpop.f32.mrf.mxu0
        %v5203 = vadd.f32 %v5114, %v5202
        %5204 = vmatmul.bf16.gmra.mxu0 %v4611
        %v5205 = vpop.f32.mrf.mxu0
        %v5206 = vadd.f32 %v5117, %v5205
        %v5207 = vpop.f32.mrf.mxu0
        %v5208 = vadd.f32 %v5119, %v5207
        %5209 = vmatmul.bf16.gmra.mxu0 %v4616
        %v5210 = vpop.f32.mrf.mxu0
        %v5211 = vadd.f32 %v5122, %v5210
        %v5212 = vpop.f32.mrf.mxu0
        %v5213 = vadd.f32 %v5124, %v5212
        %5214 = vmatmul.bf16.gmra.mxu0 %v4621
        %v5215 = vpop.f32.mrf.mxu0
        %v5216 = vadd.f32 %v5127, %v5215
        %v5217 = vpop.f32.mrf.mxu0
        %v5218 = vadd.f32 %v5129, %v5217
        %5219 = vmatmul.bf16.gmra.mxu0 %v4626
        %v5220 = vpop.f32.mrf.mxu0
        %v5221 = vadd.f32 %v5132, %v5220
        %v5222 = vpop.f32.mrf.mxu0
        %v5223 = vadd.f32 %v5134, %v5222
        %5224 = vmatmul.bf16.gmra.mxu0 %v4631
        %v5225 = vpop.f32.mrf.mxu0
        %v5226 = vadd.f32 %v5137, %v5225
        %v5227 = vpop.f32.mrf.mxu0
        %v5228 = vadd.f32 %v5139, %v5227
        %5229 = vmatmul.bf16.gmra.mxu0 %v4636
        %v5230 = vpop.f32.mrf.mxu0
        %v5231 = vadd.f32 %v5142, %v5230
        %v5232 = vpop.f32.mrf.mxu0
        %v5233 = vadd.f32 %v5144, %v5232
        %5234 = vmatmul.bf16.gmra.mxu0 %v4641
        %v5235 = vpop.f32.mrf.mxu0
        %v5236 = vadd.f32 %v5147, %v5235
        %v5237 = vpop.f32.mrf.mxu0
        %v5238 = vadd.f32 %v5149, %v5237
        %5239 = vmatmul.bf16.gmra.mxu0 %v4646
        %v5240 = vpop.f32.mrf.mxu0
        %v5241 = vadd.f32 %v5152, %v5240
        %v5242 = vpop.f32.mrf.mxu0
        %v5243 = vadd.f32 %v5154, %v5242
        %5244 = vdwg.mxu0
        %5245 = vmatpush.bf16.msra.mxu0 %v4888
        %5246 = vmatpush.bf16.msra.mxu0 %v4887
        %5247 = vmatpush.bf16.msra.mxu0 %v4886
        %5248 = vmatpush.bf16.msra.mxu0 %v4885
        %5249 = vmatpush.bf16.msra.mxu0 %v4884
        %5250 = vmatpush.bf16.msra.mxu0 %v4883
        %5251 = vmatpush.bf16.msra.mxu0 %v4882
        %5252 = vmatpush.bf16.msra.mxu0 %v4881
        %5253 = vmatmul.bf16.gmra.mxu0 %v4572
        %v5254 = vpop.f32.mrf.mxu0
        %v5255 = vadd.f32 %v5166, %v5254
        %v5256 = vpop.f32.mrf.mxu0
        %v5257 = vadd.f32 %v5168, %v5256
        %5258 = vmatmul.bf16.gmra.mxu0 %v4577
        %v5259 = vpop.f32.mrf.mxu0
        %v5260 = vadd.f32 %v5171, %v5259
        %v5261 = vpop.f32.mrf.mxu0
        %v5262 = vadd.f32 %v5173, %v5261
        %5263 = vmatmul.bf16.gmra.mxu0 %v4582
        %v5264 = vpop.f32.mrf.mxu0
        %v5265 = vadd.f32 %v5176, %v5264
        %v5266 = vpop.f32.mrf.mxu0
        %v5267 = vadd.f32 %v5178, %v5266
        %5268 = vmatmul.bf16.gmra.mxu0 %v4587
        %v5269 = vpop.f32.mrf.mxu0
        %v5270 = vadd.f32 %v5181, %v5269
        %v5271 = vpop.f32.mrf.mxu0
        %v5272 = vadd.f32 %v5183, %v5271
        %5273 = vmatmul.bf16.gmra.mxu0 %v4592
        %v5274 = vpop.f32.mrf.mxu0
        %v5275 = vadd.f32 %v5186, %v5274
        %v5276 = vpop.f32.mrf.mxu0
        %v5277 = vadd.f32 %v5188, %v5276
        %5278 = vmatmul.bf16.gmra.mxu0 %v4597
        %v5279 = vpop.f32.mrf.mxu0
        %v5280 = vadd.f32 %v5191, %v5279
        %v5281 = vpop.f32.mrf.mxu0
        %v5282 = vadd.f32 %v5193, %v5281
        %5283 = vmatmul.bf16.gmra.mxu0 %v4602
        %v5284 = vpop.f32.mrf.mxu0
        %v5285 = vadd.f32 %v5196, %v5284
        %v5286 = vpop.f32.mrf.mxu0
        %v5287 = vadd.f32 %v5198, %v5286
        %5288 = vmatmul.bf16.gmra.mxu0 %v4607
        %v5289 = vpop.f32.mrf.mxu0
        %v5290 = vadd.f32 %v5201, %v5289
        %v5291 = vpop.f32.mrf.mxu0
        %v5292 = vadd.f32 %v5203, %v5291
        %5293 = vmatmul.bf16.gmra.mxu0 %v4612
        %v5294 = vpop.f32.mrf.mxu0
        %v5295 = vadd.f32 %v5206, %v5294
        %v5296 = vpop.f32.mrf.mxu0
        %v5297 = vadd.f32 %v5208, %v5296
        %5298 = vmatmul.bf16.gmra.mxu0 %v4617
        %v5299 = vpop.f32.mrf.mxu0
        %v5300 = vadd.f32 %v5211, %v5299
        %v5301 = vpop.f32.mrf.mxu0
        %v5302 = vadd.f32 %v5213, %v5301
        %5303 = vmatmul.bf16.gmra.mxu0 %v4622
        %v5304 = vpop.f32.mrf.mxu0
        %v5305 = vadd.f32 %v5216, %v5304
        %v5306 = vpop.f32.mrf.mxu0
        %v5307 = vadd.f32 %v5218, %v5306
        %5308 = vmatmul.bf16.gmra.mxu0 %v4627
        %v5309 = vpop.f32.mrf.mxu0
        %v5310 = vadd.f32 %v5221, %v5309
        %v5311 = vpop.f32.mrf.mxu0
        %v5312 = vadd.f32 %v5223, %v5311
        %5313 = vmatmul.bf16.gmra.mxu0 %v4632
        %v5314 = vpop.f32.mrf.mxu0
        %v5315 = vadd.f32 %v5226, %v5314
        %v5316 = vpop.f32.mrf.mxu0
        %v5317 = vadd.f32 %v5228, %v5316
        %5318 = vmatmul.bf16.gmra.mxu0 %v4637
        %v5319 = vpop.f32.mrf.mxu0
        %v5320 = vadd.f32 %v5231, %v5319
        %v5321 = vpop.f32.mrf.mxu0
        %v5322 = vadd.f32 %v5233, %v5321
        %5323 = vmatmul.bf16.gmra.mxu0 %v4642
        %v5324 = vpop.f32.mrf.mxu0
        %v5325 = vadd.f32 %v5236, %v5324
        %v5326 = vpop.f32.mrf.mxu0
        %v5327 = vadd.f32 %v5238, %v5326
        %5328 = vmatmul.bf16.gmra.mxu0 %v4647
        %v5329 = vpop.f32.mrf.mxu0
        %v5330 = vadd.f32 %v5241, %v5329
        %v5331 = vpop.f32.mrf.mxu0
        %v5332 = vadd.f32 %v5243, %v5331
        %5333 = vdwg.mxu0
        %5334 = vmatpush.bf16.msra.mxu0 0
        %5335 = vmatpush.bf16.msra.mxu0 0
        %5336 = vmatpush.bf16.msra.mxu0 0
        %5337 = vmatpush.bf16.msra.mxu0 0
        %5338 = vmatpush.bf16.msra.mxu0 %v4892
        %5339 = vmatpush.bf16.msra.mxu0 %v4891
        %5340 = vmatpush.bf16.msra.mxu0 %v4890
        %5341 = vmatpush.bf16.msra.mxu0 %v4889
        %5342 = vmatmul.bf16.gmra.mxu0 %v4931
        %v5343 = vpop.f32.mrf.mxu0
        %v5344 = vadd.f32 %v5255, %v5343
        %v5345 = vpop.f32.mrf.mxu0
        %v5346 = vadd.f32 %v5257, %v5345
        %5347 = vmatmul.bf16.gmra.mxu0 %v4934
        %v5348 = vpop.f32.mrf.mxu0
        %v5349 = vadd.f32 %v5260, %v5348
        %v5350 = vpop.f32.mrf.mxu0
        %v5351 = vadd.f32 %v5262, %v5350
        %5352 = vmatmul.bf16.gmra.mxu0 %v4937
        %v5353 = vpop.f32.mrf.mxu0
        %v5354 = vadd.f32 %v5265, %v5353
        %v5355 = vpop.f32.mrf.mxu0
        %v5356 = vadd.f32 %v5267, %v5355
        %5357 = vmatmul.bf16.gmra.mxu0 %v4940
        %v5358 = vpop.f32.mrf.mxu0
        %v5359 = vadd.f32 %v5270, %v5358
        %v5360 = vpop.f32.mrf.mxu0
        %v5361 = vadd.f32 %v5272, %v5360
        %5362 = vmatmul.bf16.gmra.mxu0 %v4943
        %v5363 = vpop.f32.mrf.mxu0
        %v5364 = vadd.f32 %v5275, %v5363
        %v5365 = vpop.f32.mrf.mxu0
        %v5366 = vadd.f32 %v5277, %v5365
        %5367 = vmatmul.bf16.gmra.mxu0 %v4946
        %v5368 = vpop.f32.mrf.mxu0
        %v5369 = vadd.f32 %v5280, %v5368
        %v5370 = vpop.f32.mrf.mxu0
        %v5371 = vadd.f32 %v5282, %v5370
        %5372 = vmatmul.bf16.gmra.mxu0 %v4949
        %v5373 = vpop.f32.mrf.mxu0
        %v5374 = vadd.f32 %v5285, %v5373
        %v5375 = vpop.f32.mrf.mxu0
        %v5376 = vadd.f32 %v5287, %v5375
        %5377 = vmatmul.bf16.gmra.mxu0 %v4952
        %v5378 = vpop.f32.mrf.mxu0
        %v5379 = vadd.f32 %v5290, %v5378
        %v5380 = vpop.f32.mrf.mxu0
        %v5381 = vadd.f32 %v5292, %v5380
        %5382 = vmatmul.bf16.gmra.mxu0 %v4955
        %v5383 = vpop.f32.mrf.mxu0
        %v5384 = vadd.f32 %v5295, %v5383
        %v5385 = vpop.f32.mrf.mxu0
        %v5386 = vadd.f32 %v5297, %v5385
        %5387 = vmatmul.bf16.gmra.mxu0 %v4958
        %v5388 = vpop.f32.mrf.mxu0
        %v5389 = vadd.f32 %v5300, %v5388
        %v5390 = vpop.f32.mrf.mxu0
        %v5391 = vadd.f32 %v5302, %v5390
        %5392 = vmatmul.bf16.gmra.mxu0 %v4961
        %v5393 = vpop.f32.mrf.mxu0
        %v5394 = vadd.f32 %v5305, %v5393
        %v5395 = vpop.f32.mrf.mxu0
        %v5396 = vadd.f32 %v5307, %v5395
        %5397 = vmatmul.bf16.gmra.mxu0 %v4964
        %v5398 = vpop.f32.mrf.mxu0
        %v5399 = vadd.f32 %v5310, %v5398
        %v5400 = vpop.f32.mrf.mxu0
        %v5401 = vadd.f32 %v5312, %v5400
        %5402 = vmatmul.bf16.gmra.mxu0 %v4967
        %v5403 = vpop.f32.mrf.mxu0
        %v5404 = vadd.f32 %v5315, %v5403
        %v5405 = vpop.f32.mrf.mxu0
        %v5406 = vadd.f32 %v5317, %v5405
        %5407 = vmatmul.bf16.gmra.mxu0 %v4970
        %v5408 = vpop.f32.mrf.mxu0
        %v5409 = vadd.f32 %v5320, %v5408
        %v5410 = vpop.f32.mrf.mxu0
        %v5411 = vadd.f32 %v5322, %v5410
        %5412 = vmatmul.bf16.gmra.mxu0 %v4973
        %v5413 = vpop.f32.mrf.mxu0
        %v5414 = vadd.f32 %v5325, %v5413
        %v5415 = vpop.f32.mrf.mxu0
        %v5416 = vadd.f32 %v5327, %v5415
        %5417 = vmatmul.bf16.gmra.mxu0 %v4976
        %v5418 = vpop.f32.mrf.mxu0
        %v5419 = vadd.f32 %v5330, %v5418
        %v5420 = vpop.f32.mrf.mxu0
        %v5421 = vadd.f32 %v5332, %v5420
        %5422 = vdwg.mxu0
        %v5423 = vmax.f32 %v5344, 0.0
        %v5424 = vmax.f32 %v5346, 0.0
        %v5425 = vmax.f32 %v5349, 0.0
        %v5426 = vmax.f32 %v5351, 0.0
        %v5427 = vmax.f32 %v5354, 0.0
        %v5428 = vmax.f32 %v5356, 0.0
        %v5429 = vmax.f32 %v5359, 0.0
        %v5430 = vmax.f32 %v5361, 0.0
        %v5431 = vmax.f32 %v5364, 0.0
        %v5432 = vmax.f32 %v5366, 0.0
        %v5433 = vmax.f32 %v5369, 0.0
        %v5434 = vmax.f32 %v5371, 0.0
        %v5435 = vmax.f32 %v5374, 0.0
        %v5436 = vmax.f32 %v5376, 0.0
        %v5437 = vmax.f32 %v5379, 0.0
        %v5438 = vmax.f32 %v5381, 0.0
        %v5439 = vmax.f32 %v5384, 0.0
        %v5440 = vmax.f32 %v5386, 0.0
        %v5441 = vmax.f32 %v5389, 0.0
        %v5442 = vmax.f32 %v5391, 0.0
        %v5443 = vmax.f32 %v5394, 0.0
        %v5444 = vmax.f32 %v5396, 0.0
        %v5445 = vmax.f32 %v5399, 0.0
        %v5446 = vmax.f32 %v5401, 0.0
        %v5447 = vmax.f32 %v5404, 0.0
        %v5448 = vmax.f32 %v5406, 0.0
        %v5449 = vmax.f32 %v5409, 0.0
        %v5450 = vmax.f32 %v5411, 0.0
        %v5451 = vmax.f32 %v5414, 0.0
        %v5452 = vmax.f32 %v5416, 0.0
        %v5453 = vmax.f32 %v5419, 0.0
        %v5454 = vmax.f32 %v5421, 0.0
        %v5455 = vpack.c.bf16 %v5424, %v5423
        %v5456 = vpack.c.bf16 %v5426, %v5425
        %v5457 = vpack.c.bf16 %v5428, %v5427
        %v5458 = vpack.c.bf16 %v5430, %v5429
        %v5459 = vpack.c.bf16 %v5432, %v5431
        %v5460 = vpack.c.bf16 %v5434, %v5433
        %v5461 = vpack.c.bf16 %v5436, %v5435
        %v5462 = vpack.c.bf16 %v5438, %v5437
        %v5463 = vpack.c.bf16 %v5440, %v5439
        %v5464 = vpack.c.bf16 %v5442, %v5441
        %v5465 = vpack.c.bf16 %v5444, %v5443
        %v5466 = vpack.c.bf16 %v5446, %v5445
        %v5467 = vpack.c.bf16 %v5448, %v5447
        %v5468 = vpack.c.bf16 %v5450, %v5449
        %v5469 = vpack.c.bf16 %v5452, %v5451
        %v5470 = vpack.c.bf16 %v5454, %v5453
        %v5471 = vld [vmem:[%s5] sm:$0xff]
        %v5472 = vld [vmem:[%s5 + $0x8] sm:$0xff]
        %v5473 = vld [vmem:[%s5 + $0x10] sm:$0xff]
        %v5474 = vld [vmem:[%s5 + $0x18] sm:$0xff]
        %v5475 = vld [vmem:[%s5 + $0x20] sm:$0xff]
        %v5476 = vld [vmem:[%s5 + $0x28] sm:$0xff]
        %v5477 = vld [vmem:[%s5 + $0x30] sm:$0xff]
        %v5478 = vld [vmem:[%s5 + $0x38] sm:$0xff]
        %v5479 = vld [vmem:[%s267] sm:$0xff]
        %v5480 = vld [vmem:[%s267 + $0x8] sm:$0xff]
        %v5481 = vld [vmem:[%s267 + $0x10] sm:$0xff]
        %v5482 = vld [vmem:[%s267 + $0x18] sm:$0xff]
        %v5483 = vld [vmem:[%s267 + $0x20] sm:$0xff]
        %v5484 = vld [vmem:[%s267 + $0x28] sm:$0xff]
        %v5485 = vld [vmem:[%s267 + $0x30] sm:$0xff]
        %v5486 = vld [vmem:[%s267 + $0x38] sm:$0xff]
        %v5487 = vld [vmem:[%s267 + $0x40] sm:$0xff]
        %v5488 = vld [vmem:[%s267 + $0x48] sm:$0xff]
        %v5489 = vld [vmem:[%s267 + $0x50] sm:$0xff]
        %v5490 = vld [vmem:[%s267 + $0x58] sm:$0xff]
        %v5491 = vld [vmem:[%s267 + $0x60] sm:$0xff]
        %v5492 = vld [vmem:[%s267 + $0x68] sm:$0xff]
        %v5493 = vld [vmem:[%s267 + $0x70] sm:$0xff]
        %v5494 = vld [vmem:[%s267 + $0x78] sm:$0xff]
        %v5495 = vld [vmem:[%s267 + $0x80] sm:$0xff]
        %v5496 = vld [vmem:[%s267 + $0x88] sm:$0xff]
        %v5497 = vld [vmem:[%s267 + $0x90] sm:$0xff]
        %v5498 = vld [vmem:[%s267 + $0x98] sm:$0xff]
        %v5499 = vld [vmem:[%s267 + $0xa0] sm:$0xff]
        %v5500 = vld [vmem:[%s267 + $0xa8] sm:$0xff]
        %v5501 = vld [vmem:[%s267 + $0xb0] sm:$0xff]
        %v5502 = vld [vmem:[%s267 + $0xb8] sm:$0xff]
        %v5503 = vld [vmem:[%s267 + $0xc0] sm:$0xff]
        %v5504 = vld [vmem:[%s267 + $0xc8] sm:$0xff]
        %v5505 = vld [vmem:[%s267 + $0xd0] sm:$0xff]
        %v5506 = vld [vmem:[%s267 + $0xd8] sm:$0xff]
        %v5507 = vld [vmem:[%s267 + $0xe0] sm:$0xff]
        %v5508 = vld [vmem:[%s267 + $0xe8] sm:$0xff]
        %v5509 = vld [vmem:[%s267 + $0xf0] sm:$0xff]
        %v5510 = vld [vmem:[%s267 + $0xf8] sm:$0xff]
        %v5511 = vld [vmem:[%s267 + $0x100] sm:$0xff]
        %v5512 = vld [vmem:[%s267 + $0x108] sm:$0xff]
        %v5513 = vld [vmem:[%s267 + $0x110] sm:$0xff]
        %v5514 = vld [vmem:[%s267 + $0x118] sm:$0xff]
        %v5515 = vld [vmem:[%s267 + $0x120] sm:$0xff]
        %v5516 = vld [vmem:[%s267 + $0x128] sm:$0xff]
        %v5517 = vld [vmem:[%s267 + $0x130] sm:$0xff]
        %v5518 = vld [vmem:[%s267 + $0x138] sm:$0xff]
        %v5519 = vld [vmem:[%s267 + $0x140] sm:$0xff]
        %v5520 = vld [vmem:[%s267 + $0x148] sm:$0xff]
        %v5521 = vld [vmem:[%s267 + $0x150] sm:$0xff]
        %v5522 = vld [vmem:[%s267 + $0x158] sm:$0xff]
        %v5523 = vld [vmem:[%s267 + $0x160] sm:$0xff]
        %v5524 = vld [vmem:[%s267 + $0x168] sm:$0xff]
        %v5525 = vld [vmem:[%s267 + $0x170] sm:$0xff]
        %v5526 = vld [vmem:[%s267 + $0x178] sm:$0xff]
        %v5527 = vld [vmem:[%s267 + $0x180] sm:$0xff]
        %v5528 = vld [vmem:[%s267 + $0x188] sm:$0xff]
        %v5529 = vld [vmem:[%s267 + $0x190] sm:$0xff]
        %v5530 = vld [vmem:[%s267 + $0x198] sm:$0xff]
        %v5531 = vld [vmem:[%s267 + $0x1a0] sm:$0xff]
        %v5532 = vld [vmem:[%s267 + $0x1a8] sm:$0xff]
        %v5533 = vld [vmem:[%s267 + $0x1b0] sm:$0xff]
        %v5534 = vld [vmem:[%s267 + $0x1b8] sm:$0xff]
        %v5535 = vld [vmem:[%s267 + $0x1c0] sm:$0xff]
        %v5536 = vld [vmem:[%s267 + $0x1c8] sm:$0xff]
        %v5537 = vld [vmem:[%s267 + $0x1d0] sm:$0xff]
        %v5538 = vld [vmem:[%s267 + $0x1d8] sm:$0xff]
        %v5539 = vld [vmem:[%s267 + $0x1e0] sm:$0xff]
        %v5540 = vld [vmem:[%s267 + $0x1e8] sm:$0xff]
        %v5541 = vld [vmem:[%s267 + $0x1f0] sm:$0xff]
        %v5542 = vld [vmem:[%s267 + $0x1f8] sm:$0xff]
        %v5543 = vld [vmem:[%s6] sm:$0x3]
        %v5545 = vperm.slane %v5543, 0
        %v5546 = vperm.slane %v5543, 1
        %v5557 = vunpack.c.l.b16 %v5471
        %v5558 = vunpack.c.h.b16 %v5471
        %v5559 = vunpack.c.l.b16 %v5472
        %v5560 = vunpack.c.h.b16 %v5472
        %v5561 = vunpack.c.l.b16 %v5473
        %v5562 = vunpack.c.h.b16 %v5473
        %v5563 = vunpack.c.l.b16 %v5474
        %v5564 = vunpack.c.h.b16 %v5474
        %v5565 = vunpack.c.l.b16 %v5475
        %v5566 = vunpack.c.h.b16 %v5475
        %v5567 = vunpack.c.l.b16 %v5476
        %v5568 = vunpack.c.h.b16 %v5476
        %v5569 = vunpack.c.l.b16 %v5477
        %v5570 = vunpack.c.h.b16 %v5477
        %v5571 = vunpack.c.l.b16 %v5478
        %v5572 = vunpack.c.h.b16 %v5478
        %v5573 = vpack.c.b16 %v5559, %v5557
        %v5574 = vpack.c.b16 %v5560, %v5558
        %v5575 = vpack.c.b16 %v5563, %v5561
        %v5576 = vpack.c.b16 %v5564, %v5562
        %v5577 = vpack.c.b16 %v5567, %v5565
        %v5578 = vpack.c.b16 %v5568, %v5566
        %v5579 = vpack.c.b16 %v5571, %v5569
        %v5580 = vpack.c.b16 %v5572, %v5570
        %v5590 = vsel %vm4929, %v5455, 0
        %v5593 = vsel %vm4929, %v5456, 0
        %v5596 = vsel %vm4929, %v5457, 0
        %v5599 = vsel %vm4929, %v5458, 0
        %v5602 = vsel %vm4929, %v5459, 0
        %v5605 = vsel %vm4929, %v5460, 0
        %v5608 = vsel %vm4929, %v5461, 0
        %v5611 = vsel %vm4929, %v5462, 0
        %v5614 = vsel %vm4929, %v5463, 0
        %v5617 = vsel %vm4929, %v5464, 0
        %v5620 = vsel %vm4929, %v5465, 0
        %v5623 = vsel %vm4929, %v5466, 0
        %v5626 = vsel %vm4929, %v5467, 0
        %v5629 = vsel %vm4929, %v5468, 0
        %v5632 = vsel %vm4929, %v5469, 0
        %v5635 = vsel %vm4929, %v5470, 0
        %5637 = vmatpush.bf16.msra.mxu0 0
        %5638 = vmatpush.bf16.msra.mxu0 0
        %5639 = vmatpush.bf16.msra.mxu0 0
        %5640 = vmatpush.bf16.msra.mxu0 0
        %5641 = vmatpush.bf16.msra.mxu0 %v5579
        %5642 = vmatpush.bf16.msra.mxu0 %v5577
        %5643 = vmatpush.bf16.msra.mxu0 %v5575
        %5644 = vmatpush.bf16.msra.mxu0 %v5573
        %5645 = vmatmul.bf16.gmra.mxu0 %v5590
        %v5646 = vpop.f32.mrf.mxu0
        %v5647 = vadd.f32 %v5545, %v5646
        %v5648 = vpop.f32.mrf.mxu0
        %v5649 = vadd.f32 %v5545, %v5648
        %5650 = vmatmul.bf16.gmra.mxu0 %v5593
        %v5651 = vpop.f32.mrf.mxu0
        %v5652 = vadd.f32 %v5545, %v5651
        %v5653 = vpop.f32.mrf.mxu0
        %v5654 = vadd.f32 %v5545, %v5653
        %5655 = vmatmul.bf16.gmra.mxu0 %v5596
        %v5656 = vpop.f32.mrf.mxu0
        %v5657 = vadd.f32 %v5545, %v5656
        %v5658 = vpop.f32.mrf.mxu0
        %v5659 = vadd.f32 %v5545, %v5658
        %5660 = vmatmul.bf16.gmra.mxu0 %v5599
        %v5661 = vpop.f32.mrf.mxu0
        %v5662 = vadd.f32 %v5545, %v5661
        %v5663 = vpop.f32.mrf.mxu0
        %v5664 = vadd.f32 %v5545, %v5663
        %5665 = vmatmul.bf16.gmra.mxu0 %v5602
        %v5666 = vpop.f32.mrf.mxu0
        %v5667 = vadd.f32 %v5545, %v5666
        %v5668 = vpop.f32.mrf.mxu0
        %v5669 = vadd.f32 %v5545, %v5668
        %5670 = vmatmul.bf16.gmra.mxu0 %v5605
        %v5671 = vpop.f32.mrf.mxu0
        %v5672 = vadd.f32 %v5545, %v5671
        %v5673 = vpop.f32.mrf.mxu0
        %v5674 = vadd.f32 %v5545, %v5673
        %5675 = vmatmul.bf16.gmra.mxu0 %v5608
        %v5676 = vpop.f32.mrf.mxu0
        %v5677 = vadd.f32 %v5545, %v5676
        %v5678 = vpop.f32.mrf.mxu0
        %v5679 = vadd.f32 %v5545, %v5678
        %5680 = vmatmul.bf16.gmra.mxu0 %v5611
        %v5681 = vpop.f32.mrf.mxu0
        %v5682 = vadd.f32 %v5545, %v5681
        %v5683 = vpop.f32.mrf.mxu0
        %v5684 = vadd.f32 %v5545, %v5683
        %5685 = vmatmul.bf16.gmra.mxu0 %v5614
        %v5686 = vpop.f32.mrf.mxu0
        %v5687 = vadd.f32 %v5545, %v5686
        %v5688 = vpop.f32.mrf.mxu0
        %v5689 = vadd.f32 %v5545, %v5688
        %5690 = vmatmul.bf16.gmra.mxu0 %v5617
        %v5691 = vpop.f32.mrf.mxu0
        %v5692 = vadd.f32 %v5545, %v5691
        %v5693 = vpop.f32.mrf.mxu0
        %v5694 = vadd.f32 %v5545, %v5693
        %5695 = vmatmul.bf16.gmra.mxu0 %v5620
        %v5696 = vpop.f32.mrf.mxu0
        %v5697 = vadd.f32 %v5545, %v5696
        %v5698 = vpop.f32.mrf.mxu0
        %v5699 = vadd.f32 %v5545, %v5698
        %5700 = vmatmul.bf16.gmra.mxu0 %v5623
        %v5701 = vpop.f32.mrf.mxu0
        %v5702 = vadd.f32 %v5545, %v5701
        %v5703 = vpop.f32.mrf.mxu0
        %v5704 = vadd.f32 %v5545, %v5703
        %5705 = vmatmul.bf16.gmra.mxu0 %v5626
        %v5706 = vpop.f32.mrf.mxu0
        %v5707 = vadd.f32 %v5545, %v5706
        %v5708 = vpop.f32.mrf.mxu0
        %v5709 = vadd.f32 %v5545, %v5708
        %5710 = vmatmul.bf16.gmra.mxu0 %v5629
        %v5711 = vpop.f32.mrf.mxu0
        %v5712 = vadd.f32 %v5545, %v5711
        %v5713 = vpop.f32.mrf.mxu0
        %v5714 = vadd.f32 %v5545, %v5713
        %5715 = vmatmul.bf16.gmra.mxu0 %v5632
        %v5716 = vpop.f32.mrf.mxu0
        %v5717 = vadd.f32 %v5545, %v5716
        %v5718 = vpop.f32.mrf.mxu0
        %v5719 = vadd.f32 %v5545, %v5718
        %5720 = vmatmul.bf16.gmra.mxu0 %v5635
        %v5721 = vpop.f32.mrf.mxu0
        %v5722 = vadd.f32 %v5545, %v5721
        %v5723 = vpop.f32.mrf.mxu0
        %v5724 = vadd.f32 %v5545, %v5723
        %5725 = vdwg.mxu0
        %5726 = vmatpush.bf16.msra.mxu0 0
        %5727 = vmatpush.bf16.msra.mxu0 0
        %5728 = vmatpush.bf16.msra.mxu0 0
        %5729 = vmatpush.bf16.msra.mxu0 0
        %5730 = vmatpush.bf16.msra.mxu0 %v5580
        %5731 = vmatpush.bf16.msra.mxu0 %v5578
        %5732 = vmatpush.bf16.msra.mxu0 %v5576
        %5733 = vmatpush.bf16.msra.mxu0 %v5574
        %5734 = vmatmul.bf16.gmra.mxu0 %v5590
        %v5735 = vpop.f32.mrf.mxu0
        %v5736 = vadd.f32 %v5546, %v5735
        %v5737 = vpop.f32.mrf.mxu0
        %v5738 = vadd.f32 %v5546, %v5737
        %5739 = vmatmul.bf16.gmra.mxu0 %v5593
        %v5740 = vpop.f32.mrf.mxu0
        %v5741 = vadd.f32 %v5546, %v5740
        %v5742 = vpop.f32.mrf.mxu0
        %v5743 = vadd.f32 %v5546, %v5742
        %5744 = vmatmul.bf16.gmra.mxu0 %v5596
        %v5745 = vpop.f32.mrf.mxu0
        %v5746 = vadd.f32 %v5546, %v5745
        %v5747 = vpop.f32.mrf.mxu0
        %v5748 = vadd.f32 %v5546, %v5747
        %5749 = vmatmul.bf16.gmra.mxu0 %v5599
        %v5750 = vpop.f32.mrf.mxu0
        %v5751 = vadd.f32 %v5546, %v5750
        %v5752 = vpop.f32.mrf.mxu0
        %v5753 = vadd.f32 %v5546, %v5752
        %5754 = vmatmul.bf16.gmra.mxu0 %v5602
        %v5755 = vpop.f32.mrf.mxu0
        %v5756 = vadd.f32 %v5546, %v5755
        %v5757 = vpop.f32.mrf.mxu0
        %v5758 = vadd.f32 %v5546, %v5757
        %5759 = vmatmul.bf16.gmra.mxu0 %v5605
        %v5760 = vpop.f32.mrf.mxu0
        %v5761 = vadd.f32 %v5546, %v5760
        %v5762 = vpop.f32.mrf.mxu0
        %v5763 = vadd.f32 %v5546, %v5762
        %5764 = vmatmul.bf16.gmra.mxu0 %v5608
        %v5765 = vpop.f32.mrf.mxu0
        %v5766 = vadd.f32 %v5546, %v5765
        %v5767 = vpop.f32.mrf.mxu0
        %v5768 = vadd.f32 %v5546, %v5767
        %5769 = vmatmul.bf16.gmra.mxu0 %v5611
        %v5770 = vpop.f32.mrf.mxu0
        %v5771 = vadd.f32 %v5546, %v5770
        %v5772 = vpop.f32.mrf.mxu0
        %v5773 = vadd.f32 %v5546, %v5772
        %5774 = vmatmul.bf16.gmra.mxu0 %v5614
        %v5775 = vpop.f32.mrf.mxu0
        %v5776 = vadd.f32 %v5546, %v5775
        %v5777 = vpop.f32.mrf.mxu0
        %v5778 = vadd.f32 %v5546, %v5777
        %5779 = vmatmul.bf16.gmra.mxu0 %v5617
        %v5780 = vpop.f32.mrf.mxu0
        %v5781 = vadd.f32 %v5546, %v5780
        %v5782 = vpop.f32.mrf.mxu0
        %v5783 = vadd.f32 %v5546, %v5782
        %5784 = vmatmul.bf16.gmra.mxu0 %v5620
        %v5785 = vpop.f32.mrf.mxu0
        %v5786 = vadd.f32 %v5546, %v5785
        %v5787 = vpop.f32.mrf.mxu0
        %v5788 = vadd.f32 %v5546, %v5787
        %5789 = vmatmul.bf16.gmra.mxu0 %v5623
        %v5790 = vpop.f32.mrf.mxu0
        %v5791 = vadd.f32 %v5546, %v5790
        %v5792 = vpop.f32.mrf.mxu0
        %v5793 = vadd.f32 %v5546, %v5792
        %5794 = vmatmul.bf16.gmra.mxu0 %v5626
        %v5795 = vpop.f32.mrf.mxu0
        %v5796 = vadd.f32 %v5546, %v5795
        %v5797 = vpop.f32.mrf.mxu0
        %v5798 = vadd.f32 %v5546, %v5797
        %5799 = vmatmul.bf16.gmra.mxu0 %v5629
        %v5800 = vpop.f32.mrf.mxu0
        %v5801 = vadd.f32 %v5546, %v5800
        %v5802 = vpop.f32.mrf.mxu0
        %v5803 = vadd.f32 %v5546, %v5802
        %5804 = vmatmul.bf16.gmra.mxu0 %v5632
        %v5805 = vpop.f32.mrf.mxu0
        %v5806 = vadd.f32 %v5546, %v5805
        %v5807 = vpop.f32.mrf.mxu0
        %v5808 = vadd.f32 %v5546, %v5807
        %5809 = vmatmul.bf16.gmra.mxu0 %v5635
        %v5810 = vpop.f32.mrf.mxu0
        %v5811 = vadd.f32 %v5546, %v5810
        %v5812 = vpop.f32.mrf.mxu0
        %v5813 = vadd.f32 %v5546, %v5812
        %5814 = vdwg.mxu0
        %v5815 = vadd.f32 %v5647, %v5479
        %v5816 = vadd.f32 %v5736, %v5480
        %v5817 = vadd.f32 %v5649, %v5481
        %v5818 = vadd.f32 %v5738, %v5482
        %v5819 = vadd.f32 %v5652, %v5483
        %v5820 = vadd.f32 %v5741, %v5484
        %v5821 = vadd.f32 %v5654, %v5485
        %v5822 = vadd.f32 %v5743, %v5486
        %v5823 = vadd.f32 %v5657, %v5487
        %v5824 = vadd.f32 %v5746, %v5488
        %v5825 = vadd.f32 %v5659, %v5489
        %v5826 = vadd.f32 %v5748, %v5490
        %v5827 = vadd.f32 %v5662, %v5491
        %v5828 = vadd.f32 %v5751, %v5492
        %v5829 = vadd.f32 %v5664, %v5493
        %v5830 = vadd.f32 %v5753, %v5494
        %v5831 = vadd.f32 %v5667, %v5495
        %v5832 = vadd.f32 %v5756, %v5496
        %v5833 = vadd.f32 %v5669, %v5497
        %v5834 = vadd.f32 %v5758, %v5498
        %v5835 = vadd.f32 %v5672, %v5499
        %v5836 = vadd.f32 %v5761, %v5500
        %v5837 = vadd.f32 %v5674, %v5501
        %v5838 = vadd.f32 %v5763, %v5502
        %v5839 = vadd.f32 %v5677, %v5503
        %v5840 = vadd.f32 %v5766, %v5504
        %v5841 = vadd.f32 %v5679, %v5505
        %v5842 = vadd.f32 %v5768, %v5506
        %v5843 = vadd.f32 %v5682, %v5507
        %v5844 = vadd.f32 %v5771, %v5508
        %v5845 = vadd.f32 %v5684, %v5509
        %v5846 = vadd.f32 %v5773, %v5510
        %v5847 = vadd.f32 %v5687, %v5511
        %v5848 = vadd.f32 %v5776, %v5512
        %v5849 = vadd.f32 %v5689, %v5513
        %v5850 = vadd.f32 %v5778, %v5514
        %v5851 = vadd.f32 %v5692, %v5515
        %v5852 = vadd.f32 %v5781, %v5516
        %v5853 = vadd.f32 %v5694, %v5517
        %v5854 = vadd.f32 %v5783, %v5518
        %v5855 = vadd.f32 %v5697, %v5519
        %v5856 = vadd.f32 %v5786, %v5520
        %v5857 = vadd.f32 %v5699, %v5521
        %v5858 = vadd.f32 %v5788, %v5522
        %v5859 = vadd.f32 %v5702, %v5523
        %v5860 = vadd.f32 %v5791, %v5524
        %v5861 = vadd.f32 %v5704, %v5525
        %v5862 = vadd.f32 %v5793, %v5526
        %v5863 = vadd.f32 %v5707, %v5527
        %v5864 = vadd.f32 %v5796, %v5528
        %v5865 = vadd.f32 %v5709, %v5529
        %v5866 = vadd.f32 %v5798, %v5530
        %v5867 = vadd.f32 %v5712, %v5531
        %v5868 = vadd.f32 %v5801, %v5532
        %v5869 = vadd.f32 %v5714, %v5533
        %v5870 = vadd.f32 %v5803, %v5534
        %v5871 = vadd.f32 %v5717, %v5535
        %v5872 = vadd.f32 %v5806, %v5536
        %v5873 = vadd.f32 %v5719, %v5537
        %v5874 = vadd.f32 %v5808, %v5538
        %v5875 = vadd.f32 %v5722, %v5539
        %v5876 = vadd.f32 %v5811, %v5540
        %v5877 = vadd.f32 %v5724, %v5541
        %v5878 = vadd.f32 %v5813, %v5542
        %v5879 = vmax.f32 %v5815, 0.0
        %v5880 = vmax.f32 %v5816, 0.0
        %v5881 = vmax.f32 %v5817, 0.0
        %v5882 = vmax.f32 %v5818, 0.0
        %v5883 = vmax.f32 %v5819, 0.0
        %v5884 = vmax.f32 %v5820, 0.0
        %v5885 = vmax.f32 %v5821, 0.0
        %v5886 = vmax.f32 %v5822, 0.0
        %v5887 = vmax.f32 %v5823, 0.0
        %v5888 = vmax.f32 %v5824, 0.0
        %v5889 = vmax.f32 %v5825, 0.0
        %v5890 = vmax.f32 %v5826, 0.0
        %v5891 = vmax.f32 %v5827, 0.0
        %v5892 = vmax.f32 %v5828, 0.0
        %v5893 = vmax.f32 %v5829, 0.0
        %v5894 = vmax.f32 %v5830, 0.0
        %v5895 = vmax.f32 %v5831, 0.0
        %v5896 = vmax.f32 %v5832, 0.0
        %v5897 = vmax.f32 %v5833, 0.0
        %v5898 = vmax.f32 %v5834, 0.0
        %v5899 = vmax.f32 %v5835, 0.0
        %v5900 = vmax.f32 %v5836, 0.0
        %v5901 = vmax.f32 %v5837, 0.0
        %v5902 = vmax.f32 %v5838, 0.0
        %v5903 = vmax.f32 %v5839, 0.0
        %v5904 = vmax.f32 %v5840, 0.0
        %v5905 = vmax.f32 %v5841, 0.0
        %v5906 = vmax.f32 %v5842, 0.0
        %v5907 = vmax.f32 %v5843, 0.0
        %v5908 = vmax.f32 %v5844, 0.0
        %v5909 = vmax.f32 %v5845, 0.0
        %v5910 = vmax.f32 %v5846, 0.0
        %v5911 = vmax.f32 %v5847, 0.0
        %v5912 = vmax.f32 %v5848, 0.0
        %v5913 = vmax.f32 %v5849, 0.0
        %v5914 = vmax.f32 %v5850, 0.0
        %v5915 = vmax.f32 %v5851, 0.0
        %v5916 = vmax.f32 %v5852, 0.0
        %v5917 = vmax.f32 %v5853, 0.0
        %v5918 = vmax.f32 %v5854, 0.0
        %v5919 = vmax.f32 %v5855, 0.0
        %v5920 = vmax.f32 %v5856, 0.0
        %v5921 = vmax.f32 %v5857, 0.0
        %v5922 = vmax.f32 %v5858, 0.0
        %v5923 = vmax.f32 %v5859, 0.0
        %v5924 = vmax.f32 %v5860, 0.0
        %v5925 = vmax.f32 %v5861, 0.0
        %v5926 = vmax.f32 %v5862, 0.0
        %v5927 = vmax.f32 %v5863, 0.0
        %v5928 = vmax.f32 %v5864, 0.0
        %v5929 = vmax.f32 %v5865, 0.0
        %v5930 = vmax.f32 %v5866, 0.0
        %v5931 = vmax.f32 %v5867, 0.0
        %v5932 = vmax.f32 %v5868, 0.0
        %v5933 = vmax.f32 %v5869, 0.0
        %v5934 = vmax.f32 %v5870, 0.0
        %v5935 = vmax.f32 %v5871, 0.0
        %v5936 = vmax.f32 %v5872, 0.0
        %v5937 = vmax.f32 %v5873, 0.0
        %v5938 = vmax.f32 %v5874, 0.0
        %v5939 = vmax.f32 %v5875, 0.0
        %v5940 = vmax.f32 %v5876, 0.0
        %v5941 = vmax.f32 %v5877, 0.0
        %v5942 = vmax.f32 %v5878, 0.0
        %5943 = vst [vmem:[%s298] sm:$0xff] %v5879
        %5944 = vst [vmem:[%s298 + $0x8] sm:$0xff] %v5880
        %5945 = vst [vmem:[%s298 + $0x10] sm:$0xff] %v5881
        %5946 = vst [vmem:[%s298 + $0x18] sm:$0xff] %v5882
        %5947 = vst [vmem:[%s298 + $0x20] sm:$0xff] %v5883
        %5948 = vst [vmem:[%s298 + $0x28] sm:$0xff] %v5884
        %5949 = vst [vmem:[%s298 + $0x30] sm:$0xff] %v5885
        %5950 = vst [vmem:[%s298 + $0x38] sm:$0xff] %v5886
        %5951 = vst [vmem:[%s298 + $0x40] sm:$0xff] %v5887
        %5952 = vst [vmem:[%s298 + $0x48] sm:$0xff] %v5888
        %5953 = vst [vmem:[%s298 + $0x50] sm:$0xff] %v5889
        %5954 = vst [vmem:[%s298 + $0x58] sm:$0xff] %v5890
        %5955 = vst [vmem:[%s298 + $0x60] sm:$0xff] %v5891
        %5956 = vst [vmem:[%s298 + $0x68] sm:$0xff] %v5892
        %5957 = vst [vmem:[%s298 + $0x70] sm:$0xff] %v5893
        %5958 = vst [vmem:[%s298 + $0x78] sm:$0xff] %v5894
        %5959 = vst [vmem:[%s298 + $0x80] sm:$0xff] %v5895
        %5960 = vst [vmem:[%s298 + $0x88] sm:$0xff] %v5896
        %5961 = vst [vmem:[%s298 + $0x90] sm:$0xff] %v5897
        %5962 = vst [vmem:[%s298 + $0x98] sm:$0xff] %v5898
        %5963 = vst [vmem:[%s298 + $0xa0] sm:$0xff] %v5899
        %5964 = vst [vmem:[%s298 + $0xa8] sm:$0xff] %v5900
        %5965 = vst [vmem:[%s298 + $0xb0] sm:$0xff] %v5901
        %5966 = vst [vmem:[%s298 + $0xb8] sm:$0xff] %v5902
        %5967 = vst [vmem:[%s298 + $0xc0] sm:$0xff] %v5903
        %5968 = vst [vmem:[%s298 + $0xc8] sm:$0xff] %v5904
        %5969 = vst [vmem:[%s298 + $0xd0] sm:$0xff] %v5905
        %5970 = vst [vmem:[%s298 + $0xd8] sm:$0xff] %v5906
        %5971 = vst [vmem:[%s298 + $0xe0] sm:$0xff] %v5907
        %5972 = vst [vmem:[%s298 + $0xe8] sm:$0xff] %v5908
        %5973 = vst [vmem:[%s298 + $0xf0] sm:$0xff] %v5909
        %5974 = vst [vmem:[%s298 + $0xf8] sm:$0xff] %v5910
        %5975 = vst [vmem:[%s298 + $0x100] sm:$0xff] %v5911
        %5976 = vst [vmem:[%s298 + $0x108] sm:$0xff] %v5912
        %5977 = vst [vmem:[%s298 + $0x110] sm:$0xff] %v5913
        %5978 = vst [vmem:[%s298 + $0x118] sm:$0xff] %v5914
        %5979 = vst [vmem:[%s298 + $0x120] sm:$0xff] %v5915
        %5980 = vst [vmem:[%s298 + $0x128] sm:$0xff] %v5916
        %5981 = vst [vmem:[%s298 + $0x130] sm:$0xff] %v5917
        %5982 = vst [vmem:[%s298 + $0x138] sm:$0xff] %v5918
        %5983 = vst [vmem:[%s298 + $0x140] sm:$0xff] %v5919
        %5984 = vst [vmem:[%s298 + $0x148] sm:$0xff] %v5920
        %5985 = vst [vmem:[%s298 + $0x150] sm:$0xff] %v5921
        %5986 = vst [vmem:[%s298 + $0x158] sm:$0xff] %v5922
        %5987 = vst [vmem:[%s298 + $0x160] sm:$0xff] %v5923
        %5988 = vst [vmem:[%s298 + $0x168] sm:$0xff] %v5924
        %5989 = vst [vmem:[%s298 + $0x170] sm:$0xff] %v5925
        %5990 = vst [vmem:[%s298 + $0x178] sm:$0xff] %v5926
        %5991 = vst [vmem:[%s298 + $0x180] sm:$0xff] %v5927
        %5992 = vst [vmem:[%s298 + $0x188] sm:$0xff] %v5928
        %5993 = vst [vmem:[%s298 + $0x190] sm:$0xff] %v5929
        %5994 = vst [vmem:[%s298 + $0x198] sm:$0xff] %v5930
        %5995 = vst [vmem:[%s298 + $0x1a0] sm:$0xff] %v5931
        %5996 = vst [vmem:[%s298 + $0x1a8] sm:$0xff] %v5932
        %5997 = vst [vmem:[%s298 + $0x1b0] sm:$0xff] %v5933
        %5998 = vst [vmem:[%s298 + $0x1b8] sm:$0xff] %v5934
        %5999 = vst [vmem:[%s298 + $0x1c0] sm:$0xff] %v5935
        %6000 = vst [vmem:[%s298 + $0x1c8] sm:$0xff] %v5936
        %6001 = vst [vmem:[%s298 + $0x1d0] sm:$0xff] %v5937
        %6002 = vst [vmem:[%s298 + $0x1d8] sm:$0xff] %v5938
        %6003 = vst [vmem:[%s298 + $0x1e0] sm:$0xff] %v5939
        %6004 = vst [vmem:[%s298 + $0x1e8] sm:$0xff] %v5940
        %6005 = vst [vmem:[%s298 + $0x1f0] sm:$0xff] %v5941
        %6006 = vst [vmem:[%s298 + $0x1f8] sm:$0xff] %v5942
        %s6007 = sand.u32 %s184, 1
        %s6008 = scalar_lea.sflag [#allocation6], %s6007
        %s6009 = sand.u32 %s184, 1
        %s6010 = smul.addr %s6009, 512
        %s6011 = scalar_lea.vmem [#allocation7], %s6010
        // Predicated region
        $region53: #{tpu_custom_call.1} parent=47 // pred_check
          %p6012 = pneg %p194
        $region54: #{tpu_custom_call.1} parent=47 // pred_check_branch
          %6014 = sbr.rel (%p6012) target = $region56
        $region55: #{tpu_custom_call.1} parent=47 // pred_region
          %6016 = vsyncadd %s6008, 0
          %s6017 = smul.addr %s24, 64
          %s6018 = smul.addr %s6017, 8
          %s6019 = scalar_lea.hbm %s7, %s6018
          %s6020 = sshll.u32 %s6011, 4
          %s6021 = int_to_ptr.vmem [resolvable:$true] %s6020
          %s6022 = sshll.u32 %s6019, 4
          %s6023 = int_to_ptr.hbm [resolvable:$true] %s6022
          %6028 = dma.vmem_to_hbm [thread:$0]  %s6021, 8192, %s6023, %s6008, 256, 256, 16
        $region56: #{tpu_custom_call.1} parent=47 // pred_fallthru
          _
      $region48: #{tpu_custom_call.1} parent=5 // pred_fallthru
        _
      %p6029 = scmp.le.s32.totalorder 2, %s19
      // Predicated region
      $region57: #{tpu_custom_call.1} parent=5 // pred_check
        %p6030 = pneg %p6029
      $region58: #{tpu_custom_call.1} parent=5 // pred_check_branch
        %6032 = sbr.rel (%p6030) target = $region60
      $region59: #{tpu_custom_call.1} parent=5 // pred_region
        %s6033 = ssub.s32 %s19, 2
        // Predicated region
        $region61: #{tpu_custom_call.1} parent=59 // pred_check
          %p6034 = pneg %p200
        $region62: #{tpu_custom_call.1} parent=59 // pred_check_branch
          %6036 = sbr.rel (%p6034) target = $region64
        $region63: #{tpu_custom_call.1} parent=59 // pred_region
          %s6037 = sand.u32 %s185, 1
          %s6038 = scalar_lea.sflag [#allocation6], %s6037
          %s6039 = sand.u32 %s185, 1
          %s6040 = smul.addr %s6039, 512
          %s6041 = scalar_lea.vmem [#allocation7], %s6040
          %6043 = dma.done %s6038, 8192
        $region64: #{tpu_custom_call.1} parent=59 // pred_fallthru
          _
      $region60: #{tpu_custom_call.1} parent=5 // pred_fallthru
        _
    $region6: #{tpu_custom_call.1} parent=1 // loop_footer
      %s23 = sadd.s32 1, %s19
    $region7: #{tpu_custom_call.1} parent=1 // loop_footer_branch
      %18 = sbr.rel target = $region3
    $region8: #{tpu_custom_call.1} parent=1 // loop_exit
      _
    %6044 = vsyncpa [#allocation5], 1
    %s6045 = scalar_lea.sflag [#allocation5], 1
    %6046 = vsyncpa %s6045, 1
    %6047 = vsyncpa [#allocation6], 1
    %s6048 = scalar_lea.sflag [#allocation6], 1
    %6049 = vsyncpa %s6048, 1

</llo_original>
